<compile_context>
chip_gen: v5e
topology: v5e:2x2
jax: 0.10.0
libtpu: 0.0.40
codegen_flags: <defaults>
</compile_context>

<pallas_src>
import functools
import math

import jax
import jax.numpy as jnp
from jax.experimental import pallas as pl
from jax.experimental.pallas import tpu as pltpu


# ---------------------------------------------------------------------------
# Parameter slab layout (host-side packing -> single VMEM input, 1 DMA).
# ---------------------------------------------------------------------------
def _build_layout(n_feature, n_hidden):
    D, F = n_hidden, n_feature
    entries = [
        ("lstm_wih", D, 4 * D), ("lstm_whh", D, 4 * D), ("lstm_b", 1, 4 * D),
        ("enc_w", 3 * D, 4 * D), ("enc_b", 1, 4 * D),
        ("enc_wco", D, D), ("enc_bco", 1, D),
        ("gnn_w0", D, 2 * D), ("gnn_w1", D, 2 * D), ("gnn_w2", D, 2 * D),
        ("gnn_b", 3, 2 * D),
        ("wq_w", D, D), ("wq_b", 1, D),
        ("wref_w", D, D), ("wref_b", 1, D),
        ("v", 1, D),
        ("emb_x_w", F, D), ("emb_x_b", 1, D),
        ("emb_all_w", F, D), ("emb_all_b", 1, D),
        ("h0", 1, D), ("c0", 1, D),
    ]
    layout, off = {}, 0
    for name, r, c in entries:
        layout[name] = (off, r, c)          # 8-aligned row offsets: clean tiles
        off += ((r + 7) // 8) * 8
    return layout, off, 4 * D


def pack_params(params, S):
    """Fuse + pack every parameter into one (rows, 4D) f32 slab."""
    F, D = params["emb_x_w"].shape
    layout, rows, width = _build_layout(F, D)

    ew, eb = params["enc_w"], params["enc_b"]
    # custom LSTM cell, fused [x_emb | h | c] -> [i | f | g | o]
    enc_w = jnp.concatenate([
        jnp.concatenate([ew[0], ew[3], ew[6], ew[8]], axis=1),           # x rows
        jnp.concatenate([ew[1], ew[4], ew[7], ew[9]], axis=1),           # h rows
        jnp.concatenate([ew[2], ew[5], jnp.zeros((D, 2 * D), jnp.float32)],
                        axis=1),                                         # c rows
    ], axis=0)                                                           # (3D,4D)
    enc_b = jnp.concatenate([eb[0] + eb[1] + eb[2], eb[3] + eb[4] + eb[5],
                             eb[6] + eb[7], eb[8] + eb[9]])[None, :]     # (1,4D)

    # GNN: fold 1/(S-1) into agg weights, concat [W_l | agg_l'] -> (D, 2D)
    denom = 1.0 / float(S - 1)
    gw, gb = params["gnn_w"], params["gnn_b"]

    pieces = {
        "lstm_wih": params["lstm_wih"], "lstm_whh": params["lstm_whh"],
        "lstm_b": params["lstm_b"],
        "enc_w": enc_w, "enc_b": enc_b,
        "enc_wco": ew[10], "enc_bco": eb[10][None, :],
        "gnn_b": jnp.stack([jnp.concatenate([gb[2 * l], gb[2 * l + 1]])
                            for l in range(3)]),
        "wq_w": params["wq_w"], "wq_b": params["wq_b"],
        "wref_w": params["wref_w"], "wref_b": params["wref_b"],
        "v": params["v"],
        "emb_x_w": params["emb_x_w"], "emb_x_b": params["emb_x_b"],
        "emb_all_w": params["emb_all_w"], "emb_all_b": params["emb_all_b"],
        "h0": params["h0"], "c0": params["c0"],
    }
    for l in range(3):
        pieces[f"gnn_w{l}"] = jnp.concatenate([gw[2 * l], gw[2 * l + 1] * denom],
                                              axis=1)

    slab = jnp.zeros((rows, width), jnp.float32)
    for name, arr in pieces.items():
        r0, r, c = layout[name]
        slab = slab.at[r0:r0 + r, 0:c].set(
            jnp.asarray(arr, jnp.float32).reshape(r, c))
    return slab, layout


# ---------------------------------------------------------------------------
# Kernel
# ---------------------------------------------------------------------------
def _gnn_pointer_kernel(
    x_ref, xall_ref, mask_ref, latent_ref, h_in_ref, c_in_ref,
    slab_ref, scal_ref,                     # scal (SMEM,4): r1, r2, r3, alpha
    out_ref,                                # (B, 2S+2D) = [softmax|latent_u|h|c]
    *, layout, first_turn: bool, has_latent: bool,
):
    B, S, F = xall_ref.shape
    D = h_in_ref.shape[1]

    def w(name):                            # static slice = zero-cost view
        r0, r, c = layout[name]
        return slab_ref[r0:r0 + r, 0:c]

    # --- center coordinates on the current city; embed on the VPU ----------
    x = x_ref[...]                                   # (B, F)
    xall = xall_ref[...] - x[:, None, :]             # (B, S, F)

    wx, wall = w("emb_x_w"), w("emb_all_w")          # (F, D) each
    x_emb = jnp.broadcast_to(w("emb_x_b"), (B, D))
    ctx3 = jnp.broadcast_to(w("emb_all_b")[None, :, :], (B, S, D))
    for f in range(F):                               # F=2 broadcast-FMAs
        x_emb = x_emb + x[:, f:f + 1] * wx[f:f + 1, :]
        ctx3 = ctx3 + xall[:, :, f:f + 1] * wall[None, f:f + 1, :]
    ctx2d = ctx3.reshape(B * S, D)                   # (B*S, D)

    # --- initial h, c (first turn: nn.LSTM scan over the city sequence) ----
    if first_turn:
        h = jnp.broadcast_to(w("h0"), (B, D))
        c = jnp.broadcast_to(w("c0"), (B, D))
        # Input projection hoisted off the serial recurrence: one wide matmul.
        xproj = (jnp.dot(ctx2d, w("lstm_wih"),
                         preferred_element_type=jnp.float32)
                 + w("lstm_b")).reshape(B, S, 4 * D)
        w_hh = w("lstm_whh")                         # (D, 4D)
        for t in range(S):                           # static unrolled scan
            gates = xproj[:, t, :] + jnp.dot(
                h, w_hh, preferred_element_type=jnp.float32)     # (B, 4D)
            # Full-vreg EUP pushes (4D = 128 lanes), gate order i, f, g, o.
            sig = jax.nn.sigmoid(gates)
            tnh = jnp.tanh(gates)
            c = sig[:, D:2 * D] * c + sig[:, 0:D] * tnh[:, 2 * D:3 * D]
            h = sig[:, 3 * D:4 * D] * jnp.tanh(c)
    else:
        h = h_in_ref[...]
        c = c_in_ref[...]

    # --- 3 GNN mixing layers: one fused (D, 2D) matmul per layer ------------
    gnn_b = w("gnn_b")                               # (3, 2D)
    for l in range(3):
        r = scal_ref[l]
        z = (jnp.dot(ctx2d, w(f"gnn_w{l}"), preferred_element_type=jnp.float32)
             + gnn_b[l:l + 1, :])                    # (B*S, 2D)
        ctx2d = r * z[:, :D] + (1.0 - r) * jax.nn.relu(z[:, D:])

    # --- custom LSTM cell: single fused (B,3D)x(3D,4D) matmul + peephole-o --
    xhc = jnp.concatenate([x_emb, h, c], axis=1)     # (B, 3D)
    g = jnp.dot(xhc, w("enc_w"),
                preferred_element_type=jnp.float32) + w("enc_b")   # (B, 4D)
    i_g = jax.nn.sigmoid(g[:, 0:D])
    f_g = jax.nn.sigmoid(g[:, D:2 * D])
    c_new = f_g * c + i_g * jnp.tanh(g[:, 2 * D:3 * D])
    o_g = jax.nn.sigmoid(
        g[:, 3 * D:4 * D]
        + jnp.dot(c_new, w("enc_wco"), preferred_element_type=jnp.float32)
        + w("enc_bco"))
    h_new = o_g * jnp.tanh(c_new)

    # --- additive attention pointer -----------------------------------------
    qp = jnp.dot(h_new, w("wq_w"),
                 preferred_element_type=jnp.float32) + w("wq_b")     # (B, D)
    refp = (jnp.dot(ctx2d, w("wref_w"),
                    preferred_element_type=jnp.float32)
            + w("wref_b")).reshape(B, S, D)                          # (B, S, D)
    t_act = jnp.tanh(qp[:, None, :] + refp)
    u = jnp.sum(t_act * w("v")[None, :, :], axis=-1)                 # (B, S)

    # --- masked softmax + packed output --------------------------------------
    u2 = 10.0 * jnp.tanh(u) + mask_ref[...]
    if has_latent:
        u2 = u2 + scal_ref[3] * latent_ref[...]
    m = jnp.max(u2, axis=1, keepdims=True)
    e = jnp.exp(u2 - m)
    sm = e * pl.reciprocal(jnp.sum(e, axis=1, keepdims=True), approx=True)

    # single lane-packed store: [softmax | latent_u | h | c]
    out_ref[...] = jnp.concatenate([sm, u, h_new, c_new], axis=1)


# ---------------------------------------------------------------------------
# Wrapper
# ---------------------------------------------------------------------------
def gnn_pointer_forward(params, x, X_all, mask, h=None, c=None, latent=None):
    """Pallas implementation of GNNPointer.forward."""
    B, S, _ = X_all.shape
    D = params["emb_x_w"].shape[1]
    first_turn = (h is None) or (c is None)
    has_latent = latent is not None
    if first_turn:
        h = jnp.zeros((B, D), jnp.float32)
        c = jnp.zeros((B, D), jnp.float32)
    if latent is None:
        latent = jnp.zeros((B, S), jnp.float32)

    slab, layout = pack_params(params, S)   # one-time; cache across calls in prod

    kernel = functools.partial(_gnn_pointer_kernel, layout=layout,
                               first_turn=first_turn, has_latent=has_latent)

    inputs = (x, X_all, mask, latent, h, c, slab, params["scal"])
    in_specs = ([pl.BlockSpec(memory_space=pltpu.MemorySpace.VMEM)] * 7
                + [pl.BlockSpec(memory_space=pltpu.MemorySpace.SMEM)])

    out_w = 2 * S + 2 * D
    packed = pl.pallas_call(
        kernel,
        out_shape=jax.ShapeDtypeStruct((B, out_w), jnp.float32),
        in_specs=in_specs,
        out_specs=pl.BlockSpec(memory_space=pltpu.MemorySpace.VMEM),
    )(*inputs)

    softmax = packed[:, 0:S]
    latent_u = packed[:, S:2 * S]
    h_out = packed[:, 2 * S:2 * S + D]
    c_out = packed[:, 2 * S + D:2 * S + 2 * D]
    return softmax, h_out, c_out, latent_u


# ---------------------------------------------------------------------------
# Deterministic synthetic parameters + pure-JAX reference
# ---------------------------------------------------------------------------
def init_params(key, n_feature, n_hidden):
    """Deterministic synthetic parameters (shapes follow GNNPointer.__init__)."""
    D, F = n_hidden, n_feature
    keys = iter(jax.random.split(key, 32))
    bD = 1.0 / math.sqrt(D)
    bF = 1.0 / math.sqrt(F)

    def unif(shape, bound):
        return jax.random.uniform(next(keys), shape, jnp.float32, -bound, bound)

    p = {}
    p["emb_x_w"] = unif((F, D), bF)
    p["emb_x_b"] = unif((1, D), bF)
    p["emb_all_w"] = unif((F, D), bF)
    p["emb_all_b"] = unif((1, D), bF)
    p["lstm_wih"] = unif((D, 4 * D), bD)      # weight_ih_l0.T, gate order i,f,g,o
    p["lstm_whh"] = unif((D, 4 * D), bD)      # weight_hh_l0.T
    p["lstm_b"] = unif((1, 4 * D), bD)        # bias_ih + bias_hh combined
    p["h0"] = unif((1, D), bD)
    p["c0"] = unif((1, D), bD)
    p["gnn_w"] = unif((6, D, D), bD)          # [W1, agg1, W2, agg2, W3, agg3]
    p["gnn_b"] = unif((6, D), bD)
    p["enc_w"] = unif((11, D, D), bD)         # [Wxi,Whi,wci,Wxf,Whf,wcf,Wxc,Whc,Wxo,Who,wco]
    p["enc_b"] = unif((11, D), bD)
    p["wq_w"] = unif((D, D), bD)
    p["wq_b"] = unif((1, D), bD)
    p["wref_w"] = unif((D, D), bD)
    p["wref_b"] = unif((1, D), bD)
    p["v"] = unif((1, D), bD)
    # r1, r2, r3, alpha: module inits them to 1.0; use non-trivial values so the
    # aggregation / latent branches are actually exercised.
    p["scal"] = jnp.array([0.6, 0.7, 0.8, 0.5], jnp.float32)
    return p


def reference_forward(p, x, X_all, mask, latent):
    """Pure-JAX mirror of the PyTorch forward (first_turn=True path)."""
    B, S, F = X_all.shape
    D = p["emb_x_w"].shape[1]
    xall = X_all - x[:, None, :]
    x_emb = x @ p["emb_x_w"] + p["emb_x_b"]
    ctx = xall.reshape(B * S, F) @ p["emb_all_w"] + p["emb_all_b"]
    ctx3 = ctx.reshape(B, S, D)
    h = jnp.broadcast_to(p["h0"], (B, D))
    c = jnp.broadcast_to(p["c0"], (B, D))
    for t in range(S):
        g = ctx3[:, t, :] @ p["lstm_wih"] + h @ p["lstm_whh"] + p["lstm_b"]
        i = jax.nn.sigmoid(g[:, :D]); f = jax.nn.sigmoid(g[:, D:2 * D])
        gg = jnp.tanh(g[:, 2 * D:3 * D]); o = jax.nn.sigmoid(g[:, 3 * D:])
        c = f * c + i * gg
        h = o * jnp.tanh(c)
    denom = 1.0 / (S - 1)
    sc = p["scal"]
    for l in range(3):
        lin = ctx @ p["gnn_w"][2 * l] + p["gnn_b"][2 * l]
        agg = jax.nn.relu((ctx * denom) @ p["gnn_w"][2 * l + 1] + p["gnn_b"][2 * l + 1])
        ctx = sc[l] * lin + (1.0 - sc[l]) * agg

    def enc_lin(i, inp):
        return inp @ p["enc_w"][i] + p["enc_b"][i]

    i = jax.nn.sigmoid(enc_lin(0, x_emb) + enc_lin(1, h) + enc_lin(2, c))
    f = jax.nn.sigmoid(enc_lin(3, x_emb) + enc_lin(4, h) + enc_lin(5, c))
    c_new = f * c + i * jnp.tanh(enc_lin(6, x_emb) + enc_lin(7, h))
    o = jax.nn.sigmoid(enc_lin(8, x_emb) + enc_lin(9, h) + enc_lin(10, c_new))
    h_new = o * jnp.tanh(c_new)
    qp = h_new @ p["wq_w"] + p["wq_b"]
    refp = (ctx @ p["wref_w"] + p["wref_b"]).reshape(B, S, D)
    u = jnp.sum(jnp.tanh(qp[:, None, :] + refp) * p["v"][None], axis=-1)
    latent_u = u
    u2 = 10.0 * jnp.tanh(u) + mask + sc[3] * latent
    return jax.nn.softmax(u2, axis=1), h_new, c_new, latent_u


if __name__ == "__main__":
    # Full-precision matmuls for both kernel and reference -> tight parity.
    jax.config.update("jax_default_matmul_precision", "highest")

    B, S, F, D = 2, 8, 2, 32          # batch, city_size, n_feature, n_hidden
    key = jax.random.PRNGKey(0)
    kp, kx, kX, kl = jax.random.split(key, 4)

    params = init_params(kp, F, D)
    x = jax.random.normal(kx, (B, F), jnp.float32)
    X_all = jax.random.normal(kX, (B, S, F), jnp.float32)
    mask = jnp.zeros((B, S), jnp.float32).at[:, 0].set(-1e9)   # current city masked
    latent = jax.random.normal(kl, (B, S), jnp.float32)

    out = gnn_pointer_forward(params, x, X_all, mask, latent=latent)
    out = jax.block_until_ready(out)

    ref = reference_forward(params, x, X_all, mask, latent)
    names = ["softmax", "h", "c", "latent_u"]
    for name, o, r in zip(names, out, ref):
        assert o.shape == r.shape, (name, o.shape, r.shape)
        assert bool(jnp.all(jnp.isfinite(o))), name
        assert bool(jnp.allclose(o, r, atol=1e-2, rtol=1e-2)), (
            name, float(jnp.max(jnp.abs(o - r))))

    print("KERNEL_OK")
</pallas_src>

<mosaic_0001>
module attributes {stable_mosaic.version = 11 : i64} {
  func.func @_gnn_pointer_kernel(%arg0: memref<2x2xf32, #tpu.memory_space<vmem>>, %arg1: memref<2x8x2xf32, #tpu.memory_space<vmem>>, %arg2: memref<2x8xf32, #tpu.memory_space<vmem>>, %arg3: memref<2x8xf32, #tpu.memory_space<vmem>>, %arg4: memref<2x32xf32, #tpu.memory_space<vmem>>, %arg5: memref<2x32xf32, #tpu.memory_space<vmem>>, %arg6: memref<456x128xf32, #tpu.memory_space<vmem>>, %arg7: memref<4xf32, #tpu.memory_space<smem>>, %arg8: memref<2x80xf32, #tpu.memory_space<vmem>>) attributes {dimension_semantics = [], scalar_prefetch = 0 : i64, scratch_operands = 0 : i64, tpu.core_type = #tpu.core_type<tc>} {
    %c0 = arith.constant 0 : index
    %c0_0 = arith.constant 0 : index
    %0 = vector.load %arg0[%c0, %c0_0] : memref<2x2xf32, #tpu.memory_space<vmem>>, vector<2x2xf32>
    %c0_1 = arith.constant 0 : index
    %c0_2 = arith.constant 0 : index
    %c0_3 = arith.constant 0 : index
    %1 = vector.load %arg1[%c0_1, %c0_2, %c0_3] : memref<2x8x2xf32, #tpu.memory_space<vmem>>, vector<2x8x2xf32>
    %2 = vector.shape_cast %0 : vector<2x2xf32> to vector<2x1x2xf32>
    %3 = vector.broadcast %2 : vector<2x1x2xf32> to vector<2x8x2xf32>
    %4 = arith.subf %1, %3 : vector<2x8x2xf32>
    %c408 = arith.constant 408 : index
    %c0_4 = arith.constant 0 : index
    %5 = vector.load %arg6[%c408, %c0_4] : memref<456x128xf32, #tpu.memory_space<vmem>>, vector<2x32xf32>
    %c424 = arith.constant 424 : index
    %c0_5 = arith.constant 0 : index
    %6 = vector.load %arg6[%c424, %c0_5] : memref<456x128xf32, #tpu.memory_space<vmem>>, vector<2x32xf32>
    %c416 = arith.constant 416 : index
    %c0_6 = arith.constant 0 : index
    %7 = vector.load %arg6[%c416, %c0_6] : memref<456x128xf32, #tpu.memory_space<vmem>>, vector<1x32xf32>
    %8 = vector.shape_cast %7 : vector<1x32xf32> to vector<1x32xf32>
    %9 = vector.broadcast %8 : vector<1x32xf32> to vector<2x32xf32>
    %c432 = arith.constant 432 : index
    %c0_7 = arith.constant 0 : index
    %10 = vector.load %arg6[%c432, %c0_7] : memref<456x128xf32, #tpu.memory_space<vmem>>, vector<1x32xf32>
    %11 = vector.shape_cast %10 : vector<1x32xf32> to vector<1x1x32xf32>
    %12 = vector.shape_cast %11 : vector<1x1x32xf32> to vector<1x1x32xf32>
    %13 = vector.broadcast %12 : vector<1x1x32xf32> to vector<2x8x32xf32>
    %14 = vector.extract_strided_slice %0 {offsets = [0, 0], sizes = [2, 1], strides = [1, 1]} : vector<2x2xf32> to vector<2x1xf32>
    %15 = vector.extract_strided_slice %5 {offsets = [0, 0], sizes = [1, 32], strides = [1, 1]} : vector<2x32xf32> to vector<1x32xf32>
    %16 = vector.broadcast %14 : vector<2x1xf32> to vector<2x32xf32>
    %17 = vector.broadcast %15 : vector<1x32xf32> to vector<2x32xf32>
    %18 = arith.mulf %16, %17 : vector<2x32xf32>
    %19 = arith.addf %9, %18 : vector<2x32xf32>
    %20 = vector.extract_strided_slice %4 {offsets = [0, 0, 0], sizes = [2, 8, 1], strides = [1, 1, 1]} : vector<2x8x2xf32> to vector<2x8x1xf32>
    %21 = vector.extract_strided_slice %6 {offsets = [0, 0], sizes = [1, 32], strides = [1, 1]} : vector<2x32xf32> to vector<1x32xf32>
    %22 = vector.shape_cast %21 : vector<1x32xf32> to vector<1x1x32xf32>
    %23 = vector.broadcast %20 : vector<2x8x1xf32> to vector<2x8x32xf32>
    %24 = vector.broadcast %22 : vector<1x1x32xf32> to vector<2x8x32xf32>
    %25 = arith.mulf %23, %24 : vector<2x8x32xf32>
    %26 = arith.addf %13, %25 : vector<2x8x32xf32>
    %27 = vector.extract_strided_slice %0 {offsets = [0, 1], sizes = [2, 1], strides = [1, 1]} : vector<2x2xf32> to vector<2x1xf32>
    %28 = vector.extract_strided_slice %5 {offsets = [1, 0], sizes = [1, 32], strides = [1, 1]} : vector<2x32xf32> to vector<1x32xf32>
    %29 = vector.broadcast %27 : vector<2x1xf32> to vector<2x32xf32>
    %30 = vector.broadcast %28 : vector<1x32xf32> to vector<2x32xf32>
    %31 = arith.mulf %29, %30 : vector<2x32xf32>
    %32 = arith.addf %19, %31 : vector<2x32xf32>
    %33 = vector.extract_strided_slice %4 {offsets = [0, 0, 1], sizes = [2, 8, 1], strides = [1, 1, 1]} : vector<2x8x2xf32> to vector<2x8x1xf32>
    %34 = vector.extract_strided_slice %6 {offsets = [1, 0], sizes = [1, 32], strides = [1, 1]} : vector<2x32xf32> to vector<1x32xf32>
    %35 = vector.shape_cast %34 : vector<1x32xf32> to vector<1x1x32xf32>
    %36 = vector.broadcast %33 : vector<2x8x1xf32> to vector<2x8x32xf32>
    %37 = vector.broadcast %35 : vector<1x1x32xf32> to vector<2x8x32xf32>
    %38 = arith.mulf %36, %37 : vector<2x8x32xf32>
    %39 = arith.addf %26, %38 : vector<2x8x32xf32>
    %40 = vector.shape_cast %39 : vector<2x8x32xf32> to vector<16x32xf32>
    %c440 = arith.constant 440 : index
    %c0_8 = arith.constant 0 : index
    %41 = vector.load %arg6[%c440, %c0_8] : memref<456x128xf32, #tpu.memory_space<vmem>>, vector<1x32xf32>
    %42 = vector.shape_cast %41 : vector<1x32xf32> to vector<1x32xf32>
    %43 = vector.broadcast %42 : vector<1x32xf32> to vector<2x32xf32>
    %c448 = arith.constant 448 : index
    %c0_9 = arith.constant 0 : index
    %44 = vector.load %arg6[%c448, %c0_9] : memref<456x128xf32, #tpu.memory_space<vmem>>, vector<1x32xf32>
    %45 = vector.shape_cast %44 : vector<1x32xf32> to vector<1x32xf32>
    %46 = vector.broadcast %45 : vector<1x32xf32> to vector<2x32xf32>
    %c0_10 = arith.constant 0 : index
    %c0_11 = arith.constant 0 : index
    %47 = vector.load %arg6[%c0_10, %c0_11] : memref<456x128xf32, #tpu.memory_space<vmem>>, vector<32x128xf32>
    %cst = arith.constant dense<0.000000e+00> : vector<16x128xf32>
    %48 = tpu.matmul %40, %47, %cst {dimension_numbers = #tpu.dot_dimension_numbers<[1], [0], [0], [1], [0, 0, 1, 1], [], []>, precision = #tpu.contract_precision<fp32>} : vector<16x32xf32>, vector<32x128xf32>, vector<16x128xf32> -> vector<16x128xf32>
    %c64 = arith.constant 64 : index
    %c0_12 = arith.constant 0 : index
    %49 = vector.load %arg6[%c64, %c0_12] : memref<456x128xf32, #tpu.memory_space<vmem>>, vector<1x128xf32>
    %50 = vector.broadcast %49 : vector<1x128xf32> to vector<16x128xf32>
    %51 = arith.addf %48, %50 : vector<16x128xf32>
    %52 = vector.shape_cast %51 : vector<16x128xf32> to vector<2x8x128xf32>
    %c32 = arith.constant 32 : index
    %c0_13 = arith.constant 0 : index
    %53 = vector.load %arg6[%c32, %c0_13] : memref<456x128xf32, #tpu.memory_space<vmem>>, vector<32x128xf32>
    %54 = vector.extract_strided_slice %52 {offsets = [0, 0, 0], sizes = [2, 1, 128], strides = [1, 1, 1]} : vector<2x8x128xf32> to vector<2x1x128xf32>
    %55 = vector.shape_cast %54 : vector<2x1x128xf32> to vector<2x128xf32>
    %cst_14 = arith.constant dense<0.000000e+00> : vector<2x128xf32>
    %56 = tpu.matmul %43, %53, %cst_14 {dimension_numbers = #tpu.dot_dimension_numbers<[1], [0], [0], [1], [0, 0, 1, 1], [], []>, precision = #tpu.contract_precision<fp32>} : vector<2x32xf32>, vector<32x128xf32>, vector<2x128xf32> -> vector<2x128xf32>
    %57 = arith.addf %55, %56 : vector<2x128xf32>
    %58 = arith.negf %57 : vector<2x128xf32>
    %59 = math.exp %58 : vector<2x128xf32>
    %cst_15 = arith.constant 1.000000e+00 : f32
    %60 = vector.broadcast %cst_15 : f32 to vector<2x128xf32>
    %61 = arith.addf %60, %59 : vector<2x128xf32>
    %62 = arith.divf %60, %61 : vector<2x128xf32>
    %63 = math.tanh %57 : vector<2x128xf32>
    %64 = vector.extract_strided_slice %62 {offsets = [0, 32], sizes = [2, 32], strides = [1, 1]} : vector<2x128xf32> to vector<2x32xf32>
    %65 = arith.mulf %64, %46 : vector<2x32xf32>
    %66 = vector.extract_strided_slice %62 {offsets = [0, 0], sizes = [2, 32], strides = [1, 1]} : vector<2x128xf32> to vector<2x32xf32>
    %67 = vector.extract_strided_slice %63 {offsets = [0, 64], sizes = [2, 32], strides = [1, 1]} : vector<2x128xf32> to vector<2x32xf32>
    %68 = arith.mulf %66, %67 : vector<2x32xf32>
    %69 = arith.addf %65, %68 : vector<2x32xf32>
    %70 = vector.extract_strided_slice %62 {offsets = [0, 96], sizes = [2, 32], strides = [1, 1]} : vector<2x128xf32> to vector<2x32xf32>
    %71 = math.tanh %69 : vector<2x32xf32>
    %72 = arith.mulf %70, %71 : vector<2x32xf32>
    %73 = vector.extract_strided_slice %52 {offsets = [0, 1, 0], sizes = [2, 1, 128], strides = [1, 1, 1]} : vector<2x8x128xf32> to vector<2x1x128xf32>
    %74 = vector.shape_cast %73 : vector<2x1x128xf32> to vector<2x128xf32>
    %cst_16 = arith.constant dense<0.000000e+00> : vector<2x128xf32>
    %75 = tpu.matmul %72, %53, %cst_16 {dimension_numbers = #tpu.dot_dimension_numbers<[1], [0], [0], [1], [0, 0, 1, 1], [], []>, precision = #tpu.contract_precision<fp32>} : vector<2x32xf32>, vector<32x128xf32>, vector<2x128xf32> -> vector<2x128xf32>
    %76 = arith.addf %74, %75 : vector<2x128xf32>
    %77 = arith.negf %76 : vector<2x128xf32>
    %78 = math.exp %77 : vector<2x128xf32>
    %cst_17 = arith.constant 1.000000e+00 : f32
    %79 = vector.broadcast %cst_17 : f32 to vector<2x128xf32>
    %80 = arith.addf %79, %78 : vector<2x128xf32>
    %81 = arith.divf %79, %80 : vector<2x128xf32>
    %82 = math.tanh %76 : vector<2x128xf32>
    %83 = vector.extract_strided_slice %81 {offsets = [0, 32], sizes = [2, 32], strides = [1, 1]} : vector<2x128xf32> to vector<2x32xf32>
    %84 = arith.mulf %83, %69 : vector<2x32xf32>
    %85 = vector.extract_strided_slice %81 {offsets = [0, 0], sizes = [2, 32], strides = [1, 1]} : vector<2x128xf32> to vector<2x32xf32>
    %86 = vector.extract_strided_slice %82 {offsets = [0, 64], sizes = [2, 32], strides = [1, 1]} : vector<2x128xf32> to vector<2x32xf32>
    %87 = arith.mulf %85, %86 : vector<2x32xf32>
    %88 = arith.addf %84, %87 : vector<2x32xf32>
    %89 = vector.extract_strided_slice %81 {offsets = [0, 96], sizes = [2, 32], strides = [1, 1]} : vector<2x128xf32> to vector<2x32xf32>
    %90 = math.tanh %88 : vector<2x32xf32>
    %91 = arith.mulf %89, %90 : vector<2x32xf32>
    %92 = vector.extract_strided_slice %52 {offsets = [0, 2, 0], sizes = [2, 1, 128], strides = [1, 1, 1]} : vector<2x8x128xf32> to vector<2x1x128xf32>
    %93 = vector.shape_cast %92 : vector<2x1x128xf32> to vector<2x128xf32>
    %cst_18 = arith.constant dense<0.000000e+00> : vector<2x128xf32>
    %94 = tpu.matmul %91, %53, %cst_18 {dimension_numbers = #tpu.dot_dimension_numbers<[1], [0], [0], [1], [0, 0, 1, 1], [], []>, precision = #tpu.contract_precision<fp32>} : vector<2x32xf32>, vector<32x128xf32>, vector<2x128xf32> -> vector<2x128xf32>
    %95 = arith.addf %93, %94 : vector<2x128xf32>
    %96 = arith.negf %95 : vector<2x128xf32>
    %97 = math.exp %96 : vector<2x128xf32>
    %cst_19 = arith.constant 1.000000e+00 : f32
    %98 = vector.broadcast %cst_19 : f32 to vector<2x128xf32>
    %99 = arith.addf %98, %97 : vector<2x128xf32>
    %100 = arith.divf %98, %99 : vector<2x128xf32>
    %101 = math.tanh %95 : vector<2x128xf32>
    %102 = vector.extract_strided_slice %100 {offsets = [0, 32], sizes = [2, 32], strides = [1, 1]} : vector<2x128xf32> to vector<2x32xf32>
    %103 = arith.mulf %102, %88 : vector<2x32xf32>
    %104 = vector.extract_strided_slice %100 {offsets = [0, 0], sizes = [2, 32], strides = [1, 1]} : vector<2x128xf32> to vector<2x32xf32>
    %105 = vector.extract_strided_slice %101 {offsets = [0, 64], sizes = [2, 32], strides = [1, 1]} : vector<2x128xf32> to vector<2x32xf32>
    %106 = arith.mulf %104, %105 : vector<2x32xf32>
    %107 = arith.addf %103, %106 : vector<2x32xf32>
    %108 = vector.extract_strided_slice %100 {offsets = [0, 96], sizes = [2, 32], strides = [1, 1]} : vector<2x128xf32> to vector<2x32xf32>
    %109 = math.tanh %107 : vector<2x32xf32>
    %110 = arith.mulf %108, %109 : vector<2x32xf32>
    %111 = vector.extract_strided_slice %52 {offsets = [0, 3, 0], sizes = [2, 1, 128], strides = [1, 1, 1]} : vector<2x8x128xf32> to vector<2x1x128xf32>
    %112 = vector.shape_cast %111 : vector<2x1x128xf32> to vector<2x128xf32>
    %cst_20 = arith.constant dense<0.000000e+00> : vector<2x128xf32>
    %113 = tpu.matmul %110, %53, %cst_20 {dimension_numbers = #tpu.dot_dimension_numbers<[1], [0], [0], [1], [0, 0, 1, 1], [], []>, precision = #tpu.contract_precision<fp32>} : vector<2x32xf32>, vector<32x128xf32>, vector<2x128xf32> -> vector<2x128xf32>
    %114 = arith.addf %112, %113 : vector<2x128xf32>
    %115 = arith.negf %114 : vector<2x128xf32>
    %116 = math.exp %115 : vector<2x128xf32>
    %cst_21 = arith.constant 1.000000e+00 : f32
    %117 = vector.broadcast %cst_21 : f32 to vector<2x128xf32>
    %118 = arith.addf %117, %116 : vector<2x128xf32>
    %119 = arith.divf %117, %118 : vector<2x128xf32>
    %120 = math.tanh %114 : vector<2x128xf32>
    %121 = vector.extract_strided_slice %119 {offsets = [0, 32], sizes = [2, 32], strides = [1, 1]} : vector<2x128xf32> to vector<2x32xf32>
    %122 = arith.mulf %121, %107 : vector<2x32xf32>
    %123 = vector.extract_strided_slice %119 {offsets = [0, 0], sizes = [2, 32], strides = [1, 1]} : vector<2x128xf32> to vector<2x32xf32>
    %124 = vector.extract_strided_slice %120 {offsets = [0, 64], sizes = [2, 32], strides = [1, 1]} : vector<2x128xf32> to vector<2x32xf32>
    %125 = arith.mulf %123, %124 : vector<2x32xf32>
    %126 = arith.addf %122, %125 : vector<2x32xf32>
    %127 = vector.extract_strided_slice %119 {offsets = [0, 96], sizes = [2, 32], strides = [1, 1]} : vector<2x128xf32> to vector<2x32xf32>
    %128 = math.tanh %126 : vector<2x32xf32>
    %129 = arith.mulf %127, %128 : vector<2x32xf32>
    %130 = vector.extract_strided_slice %52 {offsets = [0, 4, 0], sizes = [2, 1, 128], strides = [1, 1, 1]} : vector<2x8x128xf32> to vector<2x1x128xf32>
    %131 = vector.shape_cast %130 : vector<2x1x128xf32> to vector<2x128xf32>
    %cst_22 = arith.constant dense<0.000000e+00> : vector<2x128xf32>
    %132 = tpu.matmul %129, %53, %cst_22 {dimension_numbers = #tpu.dot_dimension_numbers<[1], [0], [0], [1], [0, 0, 1, 1], [], []>, precision = #tpu.contract_precision<fp32>} : vector<2x32xf32>, vector<32x128xf32>, vector<2x128xf32> -> vector<2x128xf32>
    %133 = arith.addf %131, %132 : vector<2x128xf32>
    %134 = arith.negf %133 : vector<2x128xf32>
    %135 = math.exp %134 : vector<2x128xf32>
    %cst_23 = arith.constant 1.000000e+00 : f32
    %136 = vector.broadcast %cst_23 : f32 to vector<2x128xf32>
    %137 = arith.addf %136, %135 : vector<2x128xf32>
    %138 = arith.divf %136, %137 : vector<2x128xf32>
    %139 = math.tanh %133 : vector<2x128xf32>
    %140 = vector.extract_strided_slice %138 {offsets = [0, 32], sizes = [2, 32], strides = [1, 1]} : vector<2x128xf32> to vector<2x32xf32>
    %141 = arith.mulf %140, %126 : vector<2x32xf32>
    %142 = vector.extract_strided_slice %138 {offsets = [0, 0], sizes = [2, 32], strides = [1, 1]} : vector<2x128xf32> to vector<2x32xf32>
    %143 = vector.extract_strided_slice %139 {offsets = [0, 64], sizes = [2, 32], strides = [1, 1]} : vector<2x128xf32> to vector<2x32xf32>
    %144 = arith.mulf %142, %143 : vector<2x32xf32>
    %145 = arith.addf %141, %144 : vector<2x32xf32>
    %146 = vector.extract_strided_slice %138 {offsets = [0, 96], sizes = [2, 32], strides = [1, 1]} : vector<2x128xf32> to vector<2x32xf32>
    %147 = math.tanh %145 : vector<2x32xf32>
    %148 = arith.mulf %146, %147 : vector<2x32xf32>
    %149 = vector.extract_strided_slice %52 {offsets = [0, 5, 0], sizes = [2, 1, 128], strides = [1, 1, 1]} : vector<2x8x128xf32> to vector<2x1x128xf32>
    %150 = vector.shape_cast %149 : vector<2x1x128xf32> to vector<2x128xf32>
    %cst_24 = arith.constant dense<0.000000e+00> : vector<2x128xf32>
    %151 = tpu.matmul %148, %53, %cst_24 {dimension_numbers = #tpu.dot_dimension_numbers<[1], [0], [0], [1], [0, 0, 1, 1], [], []>, precision = #tpu.contract_precision<fp32>} : vector<2x32xf32>, vector<32x128xf32>, vector<2x128xf32> -> vector<2x128xf32>
    %152 = arith.addf %150, %151 : vector<2x128xf32>
    %153 = arith.negf %152 : vector<2x128xf32>
    %154 = math.exp %153 : vector<2x128xf32>
    %cst_25 = arith.constant 1.000000e+00 : f32
    %155 = vector.broadcast %cst_25 : f32 to vector<2x128xf32>
    %156 = arith.addf %155, %154 : vector<2x128xf32>
    %157 = arith.divf %155, %156 : vector<2x128xf32>
    %158 = math.tanh %152 : vector<2x128xf32>
    %159 = vector.extract_strided_slice %157 {offsets = [0, 32], sizes = [2, 32], strides = [1, 1]} : vector<2x128xf32> to vector<2x32xf32>
    %160 = arith.mulf %159, %145 : vector<2x32xf32>
    %161 = vector.extract_strided_slice %157 {offsets = [0, 0], sizes = [2, 32], strides = [1, 1]} : vector<2x128xf32> to vector<2x32xf32>
    %162 = vector.extract_strided_slice %158 {offsets = [0, 64], sizes = [2, 32], strides = [1, 1]} : vector<2x128xf32> to vector<2x32xf32>
    %163 = arith.mulf %161, %162 : vector<2x32xf32>
    %164 = arith.addf %160, %163 : vector<2x32xf32>
    %165 = vector.extract_strided_slice %157 {offsets = [0, 96], sizes = [2, 32], strides = [1, 1]} : vector<2x128xf32> to vector<2x32xf32>
    %166 = math.tanh %164 : vector<2x32xf32>
    %167 = arith.mulf %165, %166 : vector<2x32xf32>
    %168 = vector.extract_strided_slice %52 {offsets = [0, 6, 0], sizes = [2, 1, 128], strides = [1, 1, 1]} : vector<2x8x128xf32> to vector<2x1x128xf32>
    %169 = vector.shape_cast %168 : vector<2x1x128xf32> to vector<2x128xf32>
    %cst_26 = arith.constant dense<0.000000e+00> : vector<2x128xf32>
    %170 = tpu.matmul %167, %53, %cst_26 {dimension_numbers = #tpu.dot_dimension_numbers<[1], [0], [0], [1], [0, 0, 1, 1], [], []>, precision = #tpu.contract_precision<fp32>} : vector<2x32xf32>, vector<32x128xf32>, vector<2x128xf32> -> vector<2x128xf32>
    %171 = arith.addf %169, %170 : vector<2x128xf32>
    %172 = arith.negf %171 : vector<2x128xf32>
    %173 = math.exp %172 : vector<2x128xf32>
    %cst_27 = arith.constant 1.000000e+00 : f32
    %174 = vector.broadcast %cst_27 : f32 to vector<2x128xf32>
    %175 = arith.addf %174, %173 : vector<2x128xf32>
    %176 = arith.divf %174, %175 : vector<2x128xf32>
    %177 = math.tanh %171 : vector<2x128xf32>
    %178 = vector.extract_strided_slice %176 {offsets = [0, 32], sizes = [2, 32], strides = [1, 1]} : vector<2x128xf32> to vector<2x32xf32>
    %179 = arith.mulf %178, %164 : vector<2x32xf32>
    %180 = vector.extract_strided_slice %176 {offsets = [0, 0], sizes = [2, 32], strides = [1, 1]} : vector<2x128xf32> to vector<2x32xf32>
    %181 = vector.extract_strided_slice %177 {offsets = [0, 64], sizes = [2, 32], strides = [1, 1]} : vector<2x128xf32> to vector<2x32xf32>
    %182 = arith.mulf %180, %181 : vector<2x32xf32>
    %183 = arith.addf %179, %182 : vector<2x32xf32>
    %184 = vector.extract_strided_slice %176 {offsets = [0, 96], sizes = [2, 32], strides = [1, 1]} : vector<2x128xf32> to vector<2x32xf32>
    %185 = math.tanh %183 : vector<2x32xf32>
    %186 = arith.mulf %184, %185 : vector<2x32xf32>
    %187 = vector.extract_strided_slice %52 {offsets = [0, 7, 0], sizes = [2, 1, 128], strides = [1, 1, 1]} : vector<2x8x128xf32> to vector<2x1x128xf32>
    %188 = vector.shape_cast %187 : vector<2x1x128xf32> to vector<2x128xf32>
    %cst_28 = arith.constant dense<0.000000e+00> : vector<2x128xf32>
    %189 = tpu.matmul %186, %53, %cst_28 {dimension_numbers = #tpu.dot_dimension_numbers<[1], [0], [0], [1], [0, 0, 1, 1], [], []>, precision = #tpu.contract_precision<fp32>} : vector<2x32xf32>, vector<32x128xf32>, vector<2x128xf32> -> vector<2x128xf32>
    %190 = arith.addf %188, %189 : vector<2x128xf32>
    %191 = arith.negf %190 : vector<2x128xf32>
    %192 = math.exp %191 : vector<2x128xf32>
    %cst_29 = arith.constant 1.000000e+00 : f32
    %193 = vector.broadcast %cst_29 : f32 to vector<2x128xf32>
    %194 = arith.addf %193, %192 : vector<2x128xf32>
    %195 = arith.divf %193, %194 : vector<2x128xf32>
    %196 = math.tanh %190 : vector<2x128xf32>
    %197 = vector.extract_strided_slice %195 {offsets = [0, 32], sizes = [2, 32], strides = [1, 1]} : vector<2x128xf32> to vector<2x32xf32>
    %198 = arith.mulf %197, %183 : vector<2x32xf32>
    %199 = vector.extract_strided_slice %195 {offsets = [0, 0], sizes = [2, 32], strides = [1, 1]} : vector<2x128xf32> to vector<2x32xf32>
    %200 = vector.extract_strided_slice %196 {offsets = [0, 64], sizes = [2, 32], strides = [1, 1]} : vector<2x128xf32> to vector<2x32xf32>
    %201 = arith.mulf %199, %200 : vector<2x32xf32>
    %202 = arith.addf %198, %201 : vector<2x32xf32>
    %203 = vector.extract_strided_slice %195 {offsets = [0, 96], sizes = [2, 32], strides = [1, 1]} : vector<2x128xf32> to vector<2x32xf32>
    %204 = math.tanh %202 : vector<2x32xf32>
    %205 = arith.mulf %203, %204 : vector<2x32xf32>
    %c312 = arith.constant 312 : index
    %c0_30 = arith.constant 0 : index
    %206 = vector.load %arg6[%c312, %c0_30] : memref<456x128xf32, #tpu.memory_space<vmem>>, vector<3x64xf32>
    %c0_31 = arith.constant 0 : index
    %207 = memref.load %arg7[%c0_31] : memref<4xf32, #tpu.memory_space<smem>>
    %c216 = arith.constant 216 : index
    %c0_32 = arith.constant 0 : index
    %208 = vector.load %arg6[%c216, %c0_32] : memref<456x128xf32, #tpu.memory_space<vmem>>, vector<32x64xf32>
    %cst_33 = arith.constant dense<0.000000e+00> : vector<16x64xf32>
    %209 = tpu.matmul %40, %208, %cst_33 {dimension_numbers = #tpu.dot_dimension_numbers<[1], [0], [0], [1], [0, 0, 1, 1], [], []>, precision = #tpu.contract_precision<fp32>} : vector<16x32xf32>, vector<32x64xf32>, vector<16x64xf32> -> vector<16x64xf32>
    %210 = vector.extract_strided_slice %206 {offsets = [0, 0], sizes = [1, 64], strides = [1, 1]} : vector<3x64xf32> to vector<1x64xf32>
    %211 = vector.broadcast %210 : vector<1x64xf32> to vector<16x64xf32>
    %212 = arith.addf %209, %211 : vector<16x64xf32>
    %213 = vector.extract_strided_slice %212 {offsets = [0, 0], sizes = [16, 32], strides = [1, 1]} : vector<16x64xf32> to vector<16x32xf32>
    %214 = vector.broadcast %207 : f32 to vector<16x32xf32>
    %215 = arith.mulf %214, %213 : vector<16x32xf32>
    %cst_34 = arith.constant 1.000000e+00 : f32
    %216 = arith.subf %cst_34, %207 : f32
    %217 = vector.extract_strided_slice %212 {offsets = [0, 32], sizes = [16, 32], strides = [1, 1]} : vector<16x64xf32> to vector<16x32xf32>
    %cst_35 = arith.constant 0.000000e+00 : f32
    %218 = vector.broadcast %cst_35 : f32 to vector<16x32xf32>
    %219 = arith.maximumf %217, %218 : vector<16x32xf32>
    %220 = vector.broadcast %216 : f32 to vector<16x32xf32>
    %221 = arith.mulf %220, %219 : vector<16x32xf32>
    %222 = arith.addf %215, %221 : vector<16x32xf32>
    %c1 = arith.constant 1 : index
    %223 = memref.load %arg7[%c1] : memref<4xf32, #tpu.memory_space<smem>>
    %c248 = arith.constant 248 : index
    %c0_36 = arith.constant 0 : index
    %224 = vector.load %arg6[%c248, %c0_36] : memref<456x128xf32, #tpu.memory_space<vmem>>, vector<32x64xf32>
    %cst_37 = arith.constant dense<0.000000e+00> : vector<16x64xf32>
    %225 = tpu.matmul %222, %224, %cst_37 {dimension_numbers = #tpu.dot_dimension_numbers<[1], [0], [0], [1], [0, 0, 1, 1], [], []>, precision = #tpu.contract_precision<fp32>} : vector<16x32xf32>, vector<32x64xf32>, vector<16x64xf32> -> vector<16x64xf32>
    %226 = vector.extract_strided_slice %206 {offsets = [1, 0], sizes = [1, 64], strides = [1, 1]} : vector<3x64xf32> to vector<1x64xf32>
    %227 = vector.broadcast %226 : vector<1x64xf32> to vector<16x64xf32>
    %228 = arith.addf %225, %227 : vector<16x64xf32>
    %229 = vector.extract_strided_slice %228 {offsets = [0, 0], sizes = [16, 32], strides = [1, 1]} : vector<16x64xf32> to vector<16x32xf32>
    %230 = vector.broadcast %223 : f32 to vector<16x32xf32>
    %231 = arith.mulf %230, %229 : vector<16x32xf32>
    %cst_38 = arith.constant 1.000000e+00 : f32
    %232 = arith.subf %cst_38, %223 : f32
    %233 = vector.extract_strided_slice %228 {offsets = [0, 32], sizes = [16, 32], strides = [1, 1]} : vector<16x64xf32> to vector<16x32xf32>
    %cst_39 = arith.constant 0.000000e+00 : f32
    %234 = vector.broadcast %cst_39 : f32 to vector<16x32xf32>
    %235 = arith.maximumf %233, %234 : vector<16x32xf32>
    %236 = vector.broadcast %232 : f32 to vector<16x32xf32>
    %237 = arith.mulf %236, %235 : vector<16x32xf32>
    %238 = arith.addf %231, %237 : vector<16x32xf32>
    %c2 = arith.constant 2 : index
    %239 = memref.load %arg7[%c2] : memref<4xf32, #tpu.memory_space<smem>>
    %c280 = arith.constant 280 : index
    %c0_40 = arith.constant 0 : index
    %240 = vector.load %arg6[%c280, %c0_40] : memref<456x128xf32, #tpu.memory_space<vmem>>, vector<32x64xf32>
    %cst_41 = arith.constant dense<0.000000e+00> : vector<16x64xf32>
    %241 = tpu.matmul %238, %240, %cst_41 {dimension_numbers = #tpu.dot_dimension_numbers<[1], [0], [0], [1], [0, 0, 1, 1], [], []>, precision = #tpu.contract_precision<fp32>} : vector<16x32xf32>, vector<32x64xf32>, vector<16x64xf32> -> vector<16x64xf32>
    %242 = vector.extract_strided_slice %206 {offsets = [2, 0], sizes = [1, 64], strides = [1, 1]} : vector<3x64xf32> to vector<1x64xf32>
    %243 = vector.broadcast %242 : vector<1x64xf32> to vector<16x64xf32>
    %244 = arith.addf %241, %243 : vector<16x64xf32>
    %245 = vector.extract_strided_slice %244 {offsets = [0, 0], sizes = [16, 32], strides = [1, 1]} : vector<16x64xf32> to vector<16x32xf32>
    %246 = vector.broadcast %239 : f32 to vector<16x32xf32>
    %247 = arith.mulf %246, %245 : vector<16x32xf32>
    %cst_42 = arith.constant 1.000000e+00 : f32
    %248 = arith.subf %cst_42, %239 : f32
    %249 = vector.extract_strided_slice %244 {offsets = [0, 32], sizes = [16, 32], strides = [1, 1]} : vector<16x64xf32> to vector<16x32xf32>
    %cst_43 = arith.constant 0.000000e+00 : f32
    %250 = vector.broadcast %cst_43 : f32 to vector<16x32xf32>
    %251 = arith.maximumf %249, %250 : vector<16x32xf32>
    %252 = vector.broadcast %248 : f32 to vector<16x32xf32>
    %253 = arith.mulf %252, %251 : vector<16x32xf32>
    %254 = arith.addf %247, %253 : vector<16x32xf32>
    %255 = tpu.concatenate %32, %205, %202 in 1 : vector<2x32xf32>, vector<2x32xf32>, vector<2x32xf32> -> vector<2x96xf32>
    %c72 = arith.constant 72 : index
    %c0_44 = arith.constant 0 : index
    %256 = vector.load %arg6[%c72, %c0_44] : memref<456x128xf32, #tpu.memory_space<vmem>>, vector<96x128xf32>
    %cst_45 = arith.constant dense<0.000000e+00> : vector<2x128xf32>
    %257 = tpu.matmul %255, %256, %cst_45 {dimension_numbers = #tpu.dot_dimension_numbers<[1], [0], [0], [1], [0, 0, 1, 1], [], []>, precision = #tpu.contract_precision<fp32>} : vector<2x96xf32>, vector<96x128xf32>, vector<2x128xf32> -> vector<2x128xf32>
    %c168 = arith.constant 168 : index
    %c0_46 = arith.constant 0 : index
    %258 = vector.load %arg6[%c168, %c0_46] : memref<456x128xf32, #tpu.memory_space<vmem>>, vector<1x128xf32>
    %259 = vector.broadcast %258 : vector<1x128xf32> to vector<2x128xf32>
    %260 = arith.addf %257, %259 : vector<2x128xf32>
    %261 = vector.extract_strided_slice %260 {offsets = [0, 0], sizes = [2, 32], strides = [1, 1]} : vector<2x128xf32> to vector<2x32xf32>
    %262 = arith.negf %261 : vector<2x32xf32>
    %263 = math.exp %262 : vector<2x32xf32>
    %cst_47 = arith.constant 1.000000e+00 : f32
    %264 = vector.broadcast %cst_47 : f32 to vector<2x32xf32>
    %265 = arith.addf %264, %263 : vector<2x32xf32>
    %266 = arith.divf %264, %265 : vector<2x32xf32>
    %267 = vector.extract_strided_slice %260 {offsets = [0, 32], sizes = [2, 32], strides = [1, 1]} : vector<2x128xf32> to vector<2x32xf32>
    %268 = arith.negf %267 : vector<2x32xf32>
    %269 = math.exp %268 : vector<2x32xf32>
    %cst_48 = arith.constant 1.000000e+00 : f32
    %270 = vector.broadcast %cst_48 : f32 to vector<2x32xf32>
    %271 = arith.addf %270, %269 : vector<2x32xf32>
    %272 = arith.divf %270, %271 : vector<2x32xf32>
    %273 = arith.mulf %272, %202 : vector<2x32xf32>
    %274 = vector.extract_strided_slice %260 {offsets = [0, 64], sizes = [2, 32], strides = [1, 1]} : vector<2x128xf32> to vector<2x32xf32>
    %275 = math.tanh %274 : vector<2x32xf32>
    %276 = arith.mulf %266, %275 : vector<2x32xf32>
    %277 = arith.addf %273, %276 : vector<2x32xf32>
    %278 = vector.extract_strided_slice %260 {offsets = [0, 96], sizes = [2, 32], strides = [1, 1]} : vector<2x128xf32> to vector<2x32xf32>
    %c176 = arith.constant 176 : index
    %c0_49 = arith.constant 0 : index
    %279 = vector.load %arg6[%c176, %c0_49] : memref<456x128xf32, #tpu.memory_space<vmem>>, vector<32x32xf32>
    %cst_50 = arith.constant dense<0.000000e+00> : vector<2x32xf32>
    %280 = tpu.matmul %277, %279, %cst_50 {dimension_numbers = #tpu.dot_dimension_numbers<[1], [0], [0], [1], [0, 0, 1, 1], [], []>, precision = #tpu.contract_precision<fp32>} : vector<2x32xf32>, vector<32x32xf32>, vector<2x32xf32> -> vector<2x32xf32>
    %281 = arith.addf %278, %280 : vector<2x32xf32>
    %c208 = arith.constant 208 : index
    %c0_51 = arith.constant 0 : index
    %282 = vector.load %arg6[%c208, %c0_51] : memref<456x128xf32, #tpu.memory_space<vmem>>, vector<1x32xf32>
    %283 = vector.broadcast %282 : vector<1x32xf32> to vector<2x32xf32>
    %284 = arith.addf %281, %283 : vector<2x32xf32>
    %285 = arith.negf %284 : vector<2x32xf32>
    %286 = math.exp %285 : vector<2x32xf32>
    %cst_52 = arith.constant 1.000000e+00 : f32
    %287 = vector.broadcast %cst_52 : f32 to vector<2x32xf32>
    %288 = arith.addf %287, %286 : vector<2x32xf32>
    %289 = arith.divf %287, %288 : vector<2x32xf32>
    %290 = math.tanh %277 : vector<2x32xf32>
    %291 = arith.mulf %289, %290 : vector<2x32xf32>
    %c320 = arith.constant 320 : index
    %c0_53 = arith.constant 0 : index
    %292 = vector.load %arg6[%c320, %c0_53] : memref<456x128xf32, #tpu.memory_space<vmem>>, vector<32x32xf32>
    %cst_54 = arith.constant dense<0.000000e+00> : vector<2x32xf32>
    %293 = tpu.matmul %291, %292, %cst_54 {dimension_numbers = #tpu.dot_dimension_numbers<[1], [0], [0], [1], [0, 0, 1, 1], [], []>, precision = #tpu.contract_precision<fp32>} : vector<2x32xf32>, vector<32x32xf32>, vector<2x32xf32> -> vector<2x32xf32>
    %c352 = arith.constant 352 : index
    %c0_55 = arith.constant 0 : index
    %294 = vector.load %arg6[%c352, %c0_55] : memref<456x128xf32, #tpu.memory_space<vmem>>, vector<1x32xf32>
    %295 = vector.broadcast %294 : vector<1x32xf32> to vector<2x32xf32>
    %296 = arith.addf %293, %295 : vector<2x32xf32>
    %c360 = arith.constant 360 : index
    %c0_56 = arith.constant 0 : index
    %297 = vector.load %arg6[%c360, %c0_56] : memref<456x128xf32, #tpu.memory_space<vmem>>, vector<32x32xf32>
    %cst_57 = arith.constant dense<0.000000e+00> : vector<16x32xf32>
    %298 = tpu.matmul %254, %297, %cst_57 {dimension_numbers = #tpu.dot_dimension_numbers<[1], [0], [0], [1], [0, 0, 1, 1], [], []>, precision = #tpu.contract_precision<fp32>} : vector<16x32xf32>, vector<32x32xf32>, vector<16x32xf32> -> vector<16x32xf32>
    %c392 = arith.constant 392 : index
    %c0_58 = arith.constant 0 : index
    %299 = vector.load %arg6[%c392, %c0_58] : memref<456x128xf32, #tpu.memory_space<vmem>>, vector<1x32xf32>
    %300 = vector.broadcast %299 : vector<1x32xf32> to vector<16x32xf32>
    %301 = arith.addf %298, %300 : vector<16x32xf32>
    %302 = vector.shape_cast %301 : vector<16x32xf32> to vector<2x8x32xf32>
    %303 = vector.shape_cast %296 : vector<2x32xf32> to vector<2x1x32xf32>
    %304 = vector.broadcast %303 : vector<2x1x32xf32> to vector<2x8x32xf32>
    %305 = arith.addf %304, %302 : vector<2x8x32xf32>
    %306 = math.tanh %305 : vector<2x8x32xf32>
    %c400 = arith.constant 400 : index
    %c0_59 = arith.constant 0 : index
    %307 = vector.load %arg6[%c400, %c0_59] : memref<456x128xf32, #tpu.memory_space<vmem>>, vector<1x32xf32>
    %308 = vector.shape_cast %307 : vector<1x32xf32> to vector<1x1x32xf32>
    %309 = vector.broadcast %308 : vector<1x1x32xf32> to vector<2x8x32xf32>
    %310 = arith.mulf %306, %309 : vector<2x8x32xf32>
    %cst_60 = arith.constant dense<0.000000e+00> : vector<2x8xf32>
    %311 = vector.multi_reduction <add>, %310, %cst_60 [2] : vector<2x8x32xf32> to vector<2x8xf32>
    %312 = math.tanh %311 : vector<2x8xf32>
    %cst_61 = arith.constant 1.000000e+01 : f32
    %313 = vector.broadcast %cst_61 : f32 to vector<2x8xf32>
    %314 = arith.mulf %313, %312 : vector<2x8xf32>
    %c0_62 = arith.constant 0 : index
    %c0_63 = arith.constant 0 : index
    %315 = vector.load %arg2[%c0_62, %c0_63] : memref<2x8xf32, #tpu.memory_space<vmem>>, vector<2x8xf32>
    %316 = arith.addf %314, %315 : vector<2x8xf32>
    %c3 = arith.constant 3 : index
    %317 = memref.load %arg7[%c3] : memref<4xf32, #tpu.memory_space<smem>>
    %c0_64 = arith.constant 0 : index
    %c0_65 = arith.constant 0 : index
    %318 = vector.load %arg3[%c0_64, %c0_65] : memref<2x8xf32, #tpu.memory_space<vmem>>, vector<2x8xf32>
    %319 = vector.broadcast %317 : f32 to vector<2x8xf32>
    %320 = arith.mulf %319, %318 : vector<2x8xf32>
    %321 = arith.addf %316, %320 : vector<2x8xf32>
    %cst_66 = arith.constant dense<0xFF800000> : vector<2xf32>
    %322 = vector.multi_reduction <maximumf>, %321, %cst_66 [1] : vector<2x8xf32> to vector<2xf32>
    %323 = vector.shape_cast %322 : vector<2xf32> to vector<2x1xf32>
    %324 = vector.broadcast %323 : vector<2x1xf32> to vector<2x8xf32>
    %325 = arith.subf %321, %324 : vector<2x8xf32>
    %326 = math.exp %325 : vector<2x8xf32>
    %cst_67 = arith.constant dense<0.000000e+00> : vector<2xf32>
    %327 = vector.multi_reduction <add>, %326, %cst_67 [1] : vector<2x8xf32> to vector<2xf32>
    %328 = vector.shape_cast %327 : vector<2xf32> to vector<2x1xf32>
    %329 = tpu.reciprocal %328 {approx = true} : vector<2x1xf32> -> vector<2x1xf32>
    %330 = vector.broadcast %329 : vector<2x1xf32> to vector<2x8xf32>
    %331 = arith.mulf %326, %330 : vector<2x8xf32>
    %332 = tpu.concatenate %331, %311, %291, %277 in 1 : vector<2x8xf32>, vector<2x8xf32>, vector<2x32xf32>, vector<2x32xf32> -> vector<2x80xf32>
    %c0_68 = arith.constant 0 : index
    %c0_69 = arith.constant 0 : index
    %333 = vector.load %arg8[%c0_68, %c0_69] : memref<2x80xf32, #tpu.memory_space<vmem>>, vector<2x80xf32>
    tpu.vector_store %arg8[%c0_68, %c0_69], %332 {strides = array<i32>} : memref<2x80xf32, #tpu.memory_space<vmem>>, vector<2x80xf32>,
    return
  }
}

</mosaic_0001>

<llo_original>
// kernel: tpu_custom_call.1
$region0: #{tpu_custom_call.1}
  #allocation0 [shape = 'u32[]', space=smem, size = 0x4, offset = 0x4, fixed_abs, tag = 'smem constant byte address 0x4 - core index']
  #allocation1 [shape = 'u32[72,128]{1,0:T(1,128)}', space=vmem, size = 0x9000, scoped, tag = 'internal scratch']
  %s0 = inlined_call_operand.vmem [shape: f32[2,2], index: 0, kind: input, shape index: {}]
  %s1 = inlined_call_operand.vmem [shape: f32[2,8,2], index: 1, kind: input, shape index: {}]
  %s2 = inlined_call_operand.vmem [shape: f32[2,8], index: 2, kind: input, shape index: {}]
  %s3 = inlined_call_operand.vmem [shape: f32[2,8], index: 3, kind: input, shape index: {}]
  %s4 = inlined_call_operand.vmem [shape: f32[2,32], index: 4, kind: input, shape index: {}]
  %s5 = inlined_call_operand.vmem [shape: f32[2,32], index: 5, kind: input, shape index: {}]
  %s6 = inlined_call_operand.hbm [shape: f32[456,128], index: 6, kind: input, shape index: {}]
  %s7 = inlined_call_operand.vmem [shape: f32[4], index: 7, kind: input, shape index: {}]
  %s8 = inlined_call_operand.hbm [shape: f32[2,80], index: 8, kind: output, shape index: {}]
  %s9 = sld [smem:[#allocation0]]
  $region50: #{tpu_custom_call.1} parent=0
    _
  %s11 = ssub.s32 1, %s9
  %s12 = scalar_select 0, %s11, %s9
  $region1: #{tpu_custom_call.1} parent=0
    #allocation2 [shape = 'u8[233472]{0}', space=vmem, size = 0x39000, scoped, tag = 'input window, operand 6, single buffered']
    #allocation3 [shape = 's32[1]{0}', space=sflag, size = 0x4, scoped, tag = 'scoped memory for tpu_custom_call.1']
    #allocation4 [shape = 's32[1]{0}', space=sflag, size = 0x4, scoped, tag = 'scoped memory for tpu_custom_call.1']
    #allocation5 [shape = 's32[1]{0}', space=sflag, size = 0x4, scoped, tag = 'scoped memory for tpu_custom_call.1']
    #allocation6 [shape = 'u8[512]{0}', space=smem, size = 0x200, scoped, tag = 'input window, operand 7, single buffered']
    #allocation7 [shape = 'u8[1024]{0}', space=vmem, size = 0x400, scoped, tag = 'output window, operand 0, single buffered']
    %13 = vsyncpa [#allocation3], 0
    %14 = vsyncpa [#allocation5], 0
    %15 = vsyncpa [#allocation4], 0
    // Predicated region
    $region2: #{tpu_custom_call.1} parent=1 // pred_check
      _
    $region3: #{tpu_custom_call.1} parent=1 // pred_check_branch
      %17 = sbr.rel (0) target = $region5
    $region4: #{tpu_custom_call.1} parent=1 // pred_region
      _
    $region5: #{tpu_custom_call.1} parent=1 // pred_fallthru
      _
    // Predicated region
    $region6: #{tpu_custom_call.1} parent=1 // pred_check
      _
    $region7: #{tpu_custom_call.1} parent=1 // pred_check_branch
      %19 = sbr.rel (0) target = $region9
    $region8: #{tpu_custom_call.1} parent=1 // pred_region
      _
    $region9: #{tpu_custom_call.1} parent=1 // pred_fallthru
      _
    // Predicated region
    $region10: #{tpu_custom_call.1} parent=1 // pred_check
      _
    $region11: #{tpu_custom_call.1} parent=1 // pred_check_branch
      %21 = sbr.rel (0) target = $region13
    $region12: #{tpu_custom_call.1} parent=1 // pred_region
      _
    $region13: #{tpu_custom_call.1} parent=1 // pred_fallthru
      _
    // Predicated region
    $region14: #{tpu_custom_call.1} parent=1 // pred_check
      _
    $region15: #{tpu_custom_call.1} parent=1 // pred_check_branch
      %23 = sbr.rel (0) target = $region17
    $region16: #{tpu_custom_call.1} parent=1 // pred_region
      _
    $region17: #{tpu_custom_call.1} parent=1 // pred_fallthru
      _
    // Predicated region
    $region18: #{tpu_custom_call.1} parent=1 // pred_check
      _
    $region19: #{tpu_custom_call.1} parent=1 // pred_check_branch
      %25 = sbr.rel (0) target = $region21
    $region20: #{tpu_custom_call.1} parent=1 // pred_region
      _
    $region21: #{tpu_custom_call.1} parent=1 // pred_fallthru
      _
    // Predicated region
    $region22: #{tpu_custom_call.1} parent=1 // pred_check
      _
    $region23: #{tpu_custom_call.1} parent=1 // pred_check_branch
      %27 = sbr.rel (0) target = $region25
    $region24: #{tpu_custom_call.1} parent=1 // pred_region
      _
    $region25: #{tpu_custom_call.1} parent=1 // pred_fallthru
      _
    // Predicated region
    $region26: #{tpu_custom_call.1} parent=1 // pred_check
      _
    $region27: #{tpu_custom_call.1} parent=1 // pred_check_branch
      %29 = sbr.rel (0) target = $region29
    $region28: #{tpu_custom_call.1} parent=1 // pred_region
      %31 = vsyncadd [#allocation3], 0
      %s32 = sshll.u32 %s6, 4
      %s33 = int_to_ptr.hbm [resolvable:$true] %s32
      %s34 = sshll.u32 [#allocation2], 4
      %s35 = int_to_ptr.vmem [resolvable:$true] %s34
      %40 = dma.hbm_to_vmem [thread:$0]  %s33, 7296, %s35, [#allocation3], 128, 128, 8
    $region29: #{tpu_custom_call.1} parent=1 // pred_fallthru
      _
    // Predicated region
    $region30: #{tpu_custom_call.1} parent=1 // pred_check
      _
    $region31: #{tpu_custom_call.1} parent=1 // pred_check_branch
      %42 = sbr.rel (0) target = $region33
    $region32: #{tpu_custom_call.1} parent=1 // pred_region
      %44 = vsyncadd [#allocation5], 0
      %s46 = sshll.u32 %s7, 4
      %s47 = int_to_ptr.vmem [resolvable:$true] %s46
      %49 = dma.vmem_to_smem %s47, 16, [#allocation6], [#allocation5]
    $region33: #{tpu_custom_call.1} parent=1 // pred_fallthru
      _
    // Predicated region
    $region34: #{tpu_custom_call.1} parent=1 // pred_check
      _
    $region35: #{tpu_custom_call.1} parent=1 // pred_check_branch
      %51 = sbr.rel (0) target = $region37
    $region36: #{tpu_custom_call.1} parent=1 // pred_region
      %53 = dma.done [#allocation3], 7296
    $region37: #{tpu_custom_call.1} parent=1 // pred_fallthru
      _
    // Predicated region
    $region38: #{tpu_custom_call.1} parent=1 // pred_check
      _
    $region39: #{tpu_custom_call.1} parent=1 // pred_check_branch
      %55 = sbr.rel (0) target = $region41
    $region40: #{tpu_custom_call.1} parent=1 // pred_region
      %57 = dma.done [#allocation5], 16
    $region41: #{tpu_custom_call.1} parent=1 // pred_fallthru
      _
    %58 = sfence
    %v59 = vld [vmem:[%s0] sm:$0x3]
    %v60 = vld [vmem:[%s1] sm:$0xff]
    %v61 = vld [vmem:[%s1 + $0x8] sm:$0xff]
    %v63 = vrot.slane %v59, 1
    %v64 = vperm.slane %v59, 0
    %v65 = vperm.slane %v63, 0
    %v68 = vsub.f32 %v60, %v64
    %v69 = vsub.f32 %v61, %v65
    %v70 = vld [vmem:[#allocation2 + $0x198] sm:$0x3]
    %v71 = vld [vmem:[#allocation2 + $0x1a8] sm:$0x3]
    %v72 = vld [vmem:[#allocation2 + $0x1a0] sm:$0x1]
    %v73 = vperm.slane %v72, 0
    %v74 = vld [vmem:[#allocation2 + $0x1b0] sm:$0x1]
    %v75 = vperm.slane %v74, 0
    %76 = vset.pattern.permute.xlu0 0
    %77 = vperm.xlu0 %76, %v59
    %v78 = vpop.permute.xlu0 %77
    %v80 = vperm.slane %v70, 0
    %v81 = vmul.f32 %v78, %v80
    %v82 = vadd.f32 %v73, %v81
    %84 = vset.pattern.permute.xlu0 0
    %85 = vperm.xlu0 %84, %v68
    %v86 = vpop.permute.xlu0 %85
    %89 = vset.pattern.permute.xlu0 0
    %90 = vperm.xlu0 %89, %v69
    %v91 = vpop.permute.xlu0 %90
    %v93 = vperm.slane %v71, 0
    %v94 = vmul.f32 %v86, %v93
    %v95 = vmul.f32 %v91, %v93
    %v96 = vadd.f32 %v75, %v94
    %v97 = vadd.f32 %v75, %v95
    %98 = vset.pattern.permute.xlu0 1
    %99 = vperm.xlu0 %98, %v59
    %v100 = vpop.permute.xlu0 %99
    %v102 = vperm.slane %v70, 1
    %v103 = vmul.f32 %v100, %v102
    %v104 = vadd.f32 %v82, %v103
    %105 = vset.pattern.permute.xlu0 1
    %106 = vperm.xlu0 %105, %v68
    %v107 = vpop.permute.xlu0 %106
    %109 = vset.pattern.permute.xlu0 1
    %110 = vperm.xlu0 %109, %v69
    %v111 = vpop.permute.xlu0 %110
    %v113 = vperm.slane %v71, 1
    %v114 = vmul.f32 %v107, %v113
    %v115 = vmul.f32 %v111, %v113
    %v116 = vadd.f32 %v96, %v114
    %v117 = vadd.f32 %v97, %v115
    %v118 = vld [vmem:[#allocation2 + $0x1b8] sm:$0x1]
    %v119 = vperm.slane %v118, 0
    %v120 = vld [vmem:[#allocation2 + $0x1c0] sm:$0x1]
    %v121 = vperm.slane %v120, 0
    %v122 = vld [vmem:[#allocation2] sm:$0xff]
    %v123 = vld [vmem:[#allocation2 + $0x8] sm:$0xff]
    %v124 = vld [vmem:[#allocation2 + $0x10] sm:$0xff]
    %v125 = vld [vmem:[#allocation2 + $0x18] sm:$0xff]
    %v126 = vld [vmem:[#allocation2 + $0x40] sm:$0x1]
    %v127 = vperm.slane %v126, 0
    %vm128 = vcmask 261120
    %v130 = vsel %vm128, %v116, 0
    %v133 = vsel %vm128, %v117, 0
    %135 = vmatpush.msra.mxu0 0.0
    %136 = vmatpush.msra.mxu0 0.0
    %137 = vmatpush.msra.mxu0 0.0
    %138 = vmatpush.msra.mxu0 0.0
    %139 = vmatpush.msra.mxu0 0.0
    %140 = vmatpush.msra.mxu0 0.0
    %141 = vmatpush.msra.mxu0 0.0
    %142 = vmatpush.msra.mxu0 0.0
    %143 = vmatpush.msra.mxu0 0.0
    %144 = vmatpush.msra.mxu0 0.0
    %145 = vmatpush.msra.mxu0 0.0
    %146 = vmatpush.msra.mxu0 0.0
    %v147 = vand.u32 %v125, 4294901760
    %148 = vmatpush.msra.mxu0 %v147
    %v149 = vand.u32 %v124, 4294901760
    %150 = vmatpush.msra.mxu0 %v149
    %v151 = vand.u32 %v123, 4294901760
    %152 = vmatpush.msra.mxu0 %v151
    %v153 = vand.u32 %v122, 4294901760
    %154 = vmatpush.msra.mxu0 %v153
    %v155 = vand.u32 %v130, 4294901760
    %v156 = vsub.f32 %v130, %v155
    %v157 = vand.u32 %v156, 4294901760
    %v158 = vsub.f32 %v156, %v157
    %v159 = vand.u32 %v158, 4294901760
    %160 = vmatmul.f32.gmra.mxu0 %v159
    %v161 = vpop.f32.mrf.mxu0
    %v162 = vadd.f32 %v127, %v161
    %v163 = vand.u32 %v133, 4294901760
    %v164 = vsub.f32 %v133, %v163
    %v165 = vand.u32 %v164, 4294901760
    %v166 = vsub.f32 %v164, %v165
    %v167 = vand.u32 %v166, 4294901760
    %168 = vmatmul.f32.gmra.mxu0 %v167
    %v169 = vpop.f32.mrf.mxu0
    %v170 = vadd.f32 %v127, %v169
    %171 = vdwg.mxu0
    %172 = vmatpush.msra.mxu0 0.0
    %173 = vmatpush.msra.mxu0 0.0
    %174 = vmatpush.msra.mxu0 0.0
    %175 = vmatpush.msra.mxu0 0.0
    %176 = vmatpush.msra.mxu0 0.0
    %177 = vmatpush.msra.mxu0 0.0
    %178 = vmatpush.msra.mxu0 0.0
    %179 = vmatpush.msra.mxu0 0.0
    %180 = vmatpush.msra.mxu0 0.0
    %181 = vmatpush.msra.mxu0 0.0
    %182 = vmatpush.msra.mxu0 0.0
    %183 = vmatpush.msra.mxu0 0.0
    %v184 = vand.u32 %v125, 4294901760
    %v185 = vsub.f32 %v125, %v184
    %v186 = vand.u32 %v185, 4294901760
    %v187 = vsub.f32 %v185, %v186
    %v188 = vand.u32 %v187, 4294901760
    %189 = vmatpush.msra.mxu0 %v188
    %v190 = vand.u32 %v124, 4294901760
    %v191 = vsub.f32 %v124, %v190
    %v192 = vand.u32 %v191, 4294901760
    %v193 = vsub.f32 %v191, %v192
    %v194 = vand.u32 %v193, 4294901760
    %195 = vmatpush.msra.mxu0 %v194
    %v196 = vand.u32 %v123, 4294901760
    %v197 = vsub.f32 %v123, %v196
    %v198 = vand.u32 %v197, 4294901760
    %v199 = vsub.f32 %v197, %v198
    %v200 = vand.u32 %v199, 4294901760
    %201 = vmatpush.msra.mxu0 %v200
    %v202 = vand.u32 %v122, 4294901760
    %v203 = vsub.f32 %v122, %v202
    %v204 = vand.u32 %v203, 4294901760
    %v205 = vsub.f32 %v203, %v204
    %v206 = vand.u32 %v205, 4294901760
    %207 = vmatpush.msra.mxu0 %v206
    %v208 = vand.u32 %v130, 4294901760
    %209 = vmatmul.f32.gmra.mxu0 %v208
    %v210 = vpop.f32.mrf.mxu0
    %v211 = vadd.f32 %v162, %v210
    %v212 = vand.u32 %v133, 4294901760
    %213 = vmatmul.f32.gmra.mxu0 %v212
    %v214 = vpop.f32.mrf.mxu0
    %v215 = vadd.f32 %v170, %v214
    %216 = vdwg.mxu0
    %217 = vmatpush.msra.mxu0 0.0
    %218 = vmatpush.msra.mxu0 0.0
    %219 = vmatpush.msra.mxu0 0.0
    %220 = vmatpush.msra.mxu0 0.0
    %221 = vmatpush.msra.mxu0 0.0
    %222 = vmatpush.msra.mxu0 0.0
    %223 = vmatpush.msra.mxu0 0.0
    %224 = vmatpush.msra.mxu0 0.0
    %225 = vmatpush.msra.mxu0 0.0
    %226 = vmatpush.msra.mxu0 0.0
    %227 = vmatpush.msra.mxu0 0.0
    %228 = vmatpush.msra.mxu0 0.0
    %v229 = vand.u32 %v125, 4294901760
    %v230 = vsub.f32 %v125, %v229
    %231 = vmatpush.msra.mxu0 %v230
    %v232 = vand.u32 %v124, 4294901760
    %v233 = vsub.f32 %v124, %v232
    %234 = vmatpush.msra.mxu0 %v233
    %v235 = vand.u32 %v123, 4294901760
    %v236 = vsub.f32 %v123, %v235
    %237 = vmatpush.msra.mxu0 %v236
    %v238 = vand.u32 %v122, 4294901760
    %v239 = vsub.f32 %v122, %v238
    %240 = vmatpush.msra.mxu0 %v239
    %v241 = vand.u32 %v130, 4294901760
    %v242 = vsub.f32 %v130, %v241
    %243 = vmatmul.f32.gmra.mxu0 %v242
    %v244 = vpop.f32.mrf.mxu0
    %v245 = vadd.f32 %v211, %v244
    %v246 = vand.u32 %v133, 4294901760
    %v247 = vsub.f32 %v133, %v246
    %248 = vmatmul.f32.gmra.mxu0 %v247
    %v249 = vpop.f32.mrf.mxu0
    %v250 = vadd.f32 %v215, %v249
    %251 = vdwg.mxu0
    %252 = vmatpush.msra.mxu0 0.0
    %253 = vmatpush.msra.mxu0 0.0
    %254 = vmatpush.msra.mxu0 0.0
    %255 = vmatpush.msra.mxu0 0.0
    %256 = vmatpush.msra.mxu0 0.0
    %257 = vmatpush.msra.mxu0 0.0
    %258 = vmatpush.msra.mxu0 0.0
    %259 = vmatpush.msra.mxu0 0.0
    %260 = vmatpush.msra.mxu0 0.0
    %261 = vmatpush.msra.mxu0 0.0
    %262 = vmatpush.msra.mxu0 0.0
    %263 = vmatpush.msra.mxu0 0.0
    %v264 = vand.u32 %v125, 4294901760
    %265 = vmatpush.msra.mxu0 %v264
    %v266 = vand.u32 %v124, 4294901760
    %267 = vmatpush.msra.mxu0 %v266
    %v268 = vand.u32 %v123, 4294901760
    %269 = vmatpush.msra.mxu0 %v268
    %v270 = vand.u32 %v122, 4294901760
    %271 = vmatpush.msra.mxu0 %v270
    %v272 = vand.u32 %v130, 4294901760
    %v273 = vsub.f32 %v130, %v272
    %v274 = vand.u32 %v273, 4294901760
    %275 = vmatmul.f32.gmra.mxu0 %v274
    %v276 = vpop.f32.mrf.mxu0
    %v277 = vadd.f32 %v245, %v276
    %v278 = vand.u32 %v133, 4294901760
    %v279 = vsub.f32 %v133, %v278
    %v280 = vand.u32 %v279, 4294901760
    %281 = vmatmul.f32.gmra.mxu0 %v280
    %v282 = vpop.f32.mrf.mxu0
    %v283 = vadd.f32 %v250, %v282
    %284 = vdwg.mxu0
    %285 = vmatpush.msra.mxu0 0.0
    %286 = vmatpush.msra.mxu0 0.0
    %287 = vmatpush.msra.mxu0 0.0
    %288 = vmatpush.msra.mxu0 0.0
    %289 = vmatpush.msra.mxu0 0.0
    %290 = vmatpush.msra.mxu0 0.0
    %291 = vmatpush.msra.mxu0 0.0
    %292 = vmatpush.msra.mxu0 0.0
    %293 = vmatpush.msra.mxu0 0.0
    %294 = vmatpush.msra.mxu0 0.0
    %295 = vmatpush.msra.mxu0 0.0
    %296 = vmatpush.msra.mxu0 0.0
    %v297 = vand.u32 %v125, 4294901760
    %v298 = vsub.f32 %v125, %v297
    %v299 = vand.u32 %v298, 4294901760
    %300 = vmatpush.msra.mxu0 %v299
    %v301 = vand.u32 %v124, 4294901760
    %v302 = vsub.f32 %v124, %v301
    %v303 = vand.u32 %v302, 4294901760
    %304 = vmatpush.msra.mxu0 %v303
    %v305 = vand.u32 %v123, 4294901760
    %v306 = vsub.f32 %v123, %v305
    %v307 = vand.u32 %v306, 4294901760
    %308 = vmatpush.msra.mxu0 %v307
    %v309 = vand.u32 %v122, 4294901760
    %v310 = vsub.f32 %v122, %v309
    %v311 = vand.u32 %v310, 4294901760
    %312 = vmatpush.msra.mxu0 %v311
    %v313 = vand.u32 %v130, 4294901760
    %314 = vmatmul.f32.gmra.mxu0 %v313
    %v315 = vpop.f32.mrf.mxu0
    %v316 = vadd.f32 %v277, %v315
    %v317 = vand.u32 %v133, 4294901760
    %318 = vmatmul.f32.gmra.mxu0 %v317
    %v319 = vpop.f32.mrf.mxu0
    %v320 = vadd.f32 %v283, %v319
    %321 = vdwg.mxu0
    %322 = vmatpush.msra.mxu0 0.0
    %323 = vmatpush.msra.mxu0 0.0
    %324 = vmatpush.msra.mxu0 0.0
    %325 = vmatpush.msra.mxu0 0.0
    %326 = vmatpush.msra.mxu0 0.0
    %327 = vmatpush.msra.mxu0 0.0
    %328 = vmatpush.msra.mxu0 0.0
    %329 = vmatpush.msra.mxu0 0.0
    %330 = vmatpush.msra.mxu0 0.0
    %331 = vmatpush.msra.mxu0 0.0
    %332 = vmatpush.msra.mxu0 0.0
    %333 = vmatpush.msra.mxu0 0.0
    %v334 = vand.u32 %v125, 4294901760
    %335 = vmatpush.msra.mxu0 %v334
    %v336 = vand.u32 %v124, 4294901760
    %337 = vmatpush.msra.mxu0 %v336
    %v338 = vand.u32 %v123, 4294901760
    %339 = vmatpush.msra.mxu0 %v338
    %v340 = vand.u32 %v122, 4294901760
    %341 = vmatpush.msra.mxu0 %v340
    %v342 = vand.u32 %v130, 4294901760
    %343 = vmatmul.f32.gmra.mxu0 %v342
    %v344 = vpop.f32.mrf.mxu0
    %v345 = vadd.f32 %v316, %v344
    %v346 = vand.u32 %v133, 4294901760
    %347 = vmatmul.f32.gmra.mxu0 %v346
    %v348 = vpop.f32.mrf.mxu0
    %v349 = vadd.f32 %v320, %v348
    %350 = vdwg.mxu0
    %v351 = vld [vmem:[#allocation2 + $0x20] sm:$0xff]
    %v352 = vld [vmem:[#allocation2 + $0x28] sm:$0xff]
    %v353 = vld [vmem:[#allocation2 + $0x30] sm:$0xff]
    %v354 = vld [vmem:[#allocation2 + $0x38] sm:$0xff]
    %v356 = vsel %vm128, %v119, 0
    %358 = vmatpush.msra.mxu0 0.0
    %359 = vmatpush.msra.mxu0 0.0
    %360 = vmatpush.msra.mxu0 0.0
    %361 = vmatpush.msra.mxu0 0.0
    %362 = vmatpush.msra.mxu0 0.0
    %363 = vmatpush.msra.mxu0 0.0
    %364 = vmatpush.msra.mxu0 0.0
    %365 = vmatpush.msra.mxu0 0.0
    %366 = vmatpush.msra.mxu0 0.0
    %367 = vmatpush.msra.mxu0 0.0
    %368 = vmatpush.msra.mxu0 0.0
    %369 = vmatpush.msra.mxu0 0.0
    %v370 = vand.u32 %v354, 4294901760
    %371 = vmatpush.msra.mxu0 %v370
    %v372 = vand.u32 %v353, 4294901760
    %373 = vmatpush.msra.mxu0 %v372
    %v374 = vand.u32 %v352, 4294901760
    %375 = vmatpush.msra.mxu0 %v374
    %v376 = vand.u32 %v351, 4294901760
    %377 = vmatpush.msra.mxu0 %v376
    %v378 = vand.u32 %v356, 4294901760
    %v379 = vsub.f32 %v356, %v378
    %v380 = vand.u32 %v379, 4294901760
    %v381 = vsub.f32 %v379, %v380
    %v382 = vand.u32 %v381, 4294901760
    %383 = vmatmul.f32.gmra.mxu0 %v382
    %v384 = vpop.f32.mrf.mxu0
    %v385 = vadd.f32 0.0, %v384
    %386 = vdwg.mxu0
    %387 = vmatpush.msra.mxu0 0.0
    %388 = vmatpush.msra.mxu0 0.0
    %389 = vmatpush.msra.mxu0 0.0
    %390 = vmatpush.msra.mxu0 0.0
    %391 = vmatpush.msra.mxu0 0.0
    %392 = vmatpush.msra.mxu0 0.0
    %393 = vmatpush.msra.mxu0 0.0
    %394 = vmatpush.msra.mxu0 0.0
    %395 = vmatpush.msra.mxu0 0.0
    %396 = vmatpush.msra.mxu0 0.0
    %397 = vmatpush.msra.mxu0 0.0
    %398 = vmatpush.msra.mxu0 0.0
    %v399 = vand.u32 %v354, 4294901760
    %v400 = vsub.f32 %v354, %v399
    %v401 = vand.u32 %v400, 4294901760
    %v402 = vsub.f32 %v400, %v401
    %v403 = vand.u32 %v402, 4294901760
    %404 = vmatpush.msra.mxu0 %v403
    %v405 = vand.u32 %v353, 4294901760
    %v406 = vsub.f32 %v353, %v405
    %v407 = vand.u32 %v406, 4294901760
    %v408 = vsub.f32 %v406, %v407
    %v409 = vand.u32 %v408, 4294901760
    %410 = vmatpush.msra.mxu0 %v409
    %v411 = vand.u32 %v352, 4294901760
    %v412 = vsub.f32 %v352, %v411
    %v413 = vand.u32 %v412, 4294901760
    %v414 = vsub.f32 %v412, %v413
    %v415 = vand.u32 %v414, 4294901760
    %416 = vmatpush.msra.mxu0 %v415
    %v417 = vand.u32 %v351, 4294901760
    %v418 = vsub.f32 %v351, %v417
    %v419 = vand.u32 %v418, 4294901760
    %v420 = vsub.f32 %v418, %v419
    %v421 = vand.u32 %v420, 4294901760
    %422 = vmatpush.msra.mxu0 %v421
    %v423 = vand.u32 %v356, 4294901760
    %424 = vmatmul.f32.gmra.mxu0 %v423
    %v425 = vpop.f32.mrf.mxu0
    %v426 = vadd.f32 %v385, %v425
    %427 = vdwg.mxu0
    %428 = vmatpush.msra.mxu0 0.0
    %429 = vmatpush.msra.mxu0 0.0
    %430 = vmatpush.msra.mxu0 0.0
    %431 = vmatpush.msra.mxu0 0.0
    %432 = vmatpush.msra.mxu0 0.0
    %433 = vmatpush.msra.mxu0 0.0
    %434 = vmatpush.msra.mxu0 0.0
    %435 = vmatpush.msra.mxu0 0.0
    %436 = vmatpush.msra.mxu0 0.0
    %437 = vmatpush.msra.mxu0 0.0
    %438 = vmatpush.msra.mxu0 0.0
    %439 = vmatpush.msra.mxu0 0.0
    %v440 = vand.u32 %v354, 4294901760
    %v441 = vsub.f32 %v354, %v440
    %442 = vmatpush.msra.mxu0 %v441
    %v443 = vand.u32 %v353, 4294901760
    %v444 = vsub.f32 %v353, %v443
    %445 = vmatpush.msra.mxu0 %v444
    %v446 = vand.u32 %v352, 4294901760
    %v447 = vsub.f32 %v352, %v446
    %448 = vmatpush.msra.mxu0 %v447
    %v449 = vand.u32 %v351, 4294901760
    %v450 = vsub.f32 %v351, %v449
    %451 = vmatpush.msra.mxu0 %v450
    %v452 = vand.u32 %v356, 4294901760
    %v453 = vsub.f32 %v356, %v452
    %454 = vmatmul.f32.gmra.mxu0 %v453
    %v455 = vpop.f32.mrf.mxu0
    %v456 = vadd.f32 %v426, %v455
    %457 = vdwg.mxu0
    %458 = vmatpush.msra.mxu0 0.0
    %459 = vmatpush.msra.mxu0 0.0
    %460 = vmatpush.msra.mxu0 0.0
    %461 = vmatpush.msra.mxu0 0.0
    %462 = vmatpush.msra.mxu0 0.0
    %463 = vmatpush.msra.mxu0 0.0
    %464 = vmatpush.msra.mxu0 0.0
    %465 = vmatpush.msra.mxu0 0.0
    %466 = vmatpush.msra.mxu0 0.0
    %467 = vmatpush.msra.mxu0 0.0
    %468 = vmatpush.msra.mxu0 0.0
    %469 = vmatpush.msra.mxu0 0.0
    %v470 = vand.u32 %v354, 4294901760
    %471 = vmatpush.msra.mxu0 %v470
    %v472 = vand.u32 %v353, 4294901760
    %473 = vmatpush.msra.mxu0 %v472
    %v474 = vand.u32 %v352, 4294901760
    %475 = vmatpush.msra.mxu0 %v474
    %v476 = vand.u32 %v351, 4294901760
    %477 = vmatpush.msra.mxu0 %v476
    %v478 = vand.u32 %v356, 4294901760
    %v479 = vsub.f32 %v356, %v478
    %v480 = vand.u32 %v479, 4294901760
    %481 = vmatmul.f32.gmra.mxu0 %v480
    %v482 = vpop.f32.mrf.mxu0
    %v483 = vadd.f32 %v456, %v482
    %484 = vdwg.mxu0
    %485 = vmatpush.msra.mxu0 0.0
    %486 = vmatpush.msra.mxu0 0.0
    %487 = vmatpush.msra.mxu0 0.0
    %488 = vmatpush.msra.mxu0 0.0
    %489 = vmatpush.msra.mxu0 0.0
    %490 = vmatpush.msra.mxu0 0.0
    %491 = vmatpush.msra.mxu0 0.0
    %492 = vmatpush.msra.mxu0 0.0
    %493 = vmatpush.msra.mxu0 0.0
    %494 = vmatpush.msra.mxu0 0.0
    %495 = vmatpush.msra.mxu0 0.0
    %496 = vmatpush.msra.mxu0 0.0
    %v497 = vand.u32 %v354, 4294901760
    %v498 = vsub.f32 %v354, %v497
    %v499 = vand.u32 %v498, 4294901760
    %500 = vmatpush.msra.mxu0 %v499
    %v501 = vand.u32 %v353, 4294901760
    %v502 = vsub.f32 %v353, %v501
    %v503 = vand.u32 %v502, 4294901760
    %504 = vmatpush.msra.mxu0 %v503
    %v505 = vand.u32 %v352, 4294901760
    %v506 = vsub.f32 %v352, %v505
    %v507 = vand.u32 %v506, 4294901760
    %508 = vmatpush.msra.mxu0 %v507
    %v509 = vand.u32 %v351, 4294901760
    %v510 = vsub.f32 %v351, %v509
    %v511 = vand.u32 %v510, 4294901760
    %512 = vmatpush.msra.mxu0 %v511
    %v513 = vand.u32 %v356, 4294901760
    %514 = vmatmul.f32.gmra.mxu0 %v513
    %v515 = vpop.f32.mrf.mxu0
    %v516 = vadd.f32 %v483, %v515
    %517 = vdwg.mxu0
    %518 = vmatpush.msra.mxu0 0.0
    %519 = vmatpush.msra.mxu0 0.0
    %520 = vmatpush.msra.mxu0 0.0
    %521 = vmatpush.msra.mxu0 0.0
    %522 = vmatpush.msra.mxu0 0.0
    %523 = vmatpush.msra.mxu0 0.0
    %524 = vmatpush.msra.mxu0 0.0
    %525 = vmatpush.msra.mxu0 0.0
    %526 = vmatpush.msra.mxu0 0.0
    %527 = vmatpush.msra.mxu0 0.0
    %528 = vmatpush.msra.mxu0 0.0
    %529 = vmatpush.msra.mxu0 0.0
    %v530 = vand.u32 %v354, 4294901760
    %531 = vmatpush.msra.mxu0 %v530
    %v532 = vand.u32 %v353, 4294901760
    %533 = vmatpush.msra.mxu0 %v532
    %v534 = vand.u32 %v352, 4294901760
    %535 = vmatpush.msra.mxu0 %v534
    %v536 = vand.u32 %v351, 4294901760
    %537 = vmatpush.msra.mxu0 %v536
    %v538 = vand.u32 %v356, 4294901760
    %539 = vmatmul.f32.gmra.mxu0 %v538
    %v540 = vpop.f32.mrf.mxu0
    %v541 = vadd.f32 %v516, %v540
    %542 = vdwg.mxu0
    %v544 = vrot.slane %v541, 1
    %v547 = vadd.f32 %v345, %v541
    %v548 = vadd.f32 %v349, %v544
    %v549 = vxor.u32 %v547, 2147483648
    %v550 = vxor.u32 %v548, 2147483648
    %v551 = vmul.f32 %v549, 1.442695
    %v552 = vpow.pop %v551
    %v553 = vmul.f32 %v550, 1.442695
    %v554 = vpow.pop %v553
    %v555 = vadd.f32 %v552, 1.0
    %v556 = vadd.f32 %v554, 1.0
    %v557 = vrcp.pop %v555
    %v558 = vmul.f32 %v555, %v557
    %v559 = vsub.f32 1.0, %v558
    %v560 = vmul.f32 %v557, %v559
    %v561 = vadd.f32 %v557, %v560
    %vm562 = vweird.f32 %v555
    %vm563 = vweird.f32 %v557
    %vm564 = vmor %vm562, %vm563
    %v565 = vsel %vm564, %v557, %v561
    %v566 = vand.u32 2147483647, %v555
    %vm567 = vcmp.eq.f32.partialorder %v566, 8.507059e+37
    %v568 = vand.u32 %v555, 2147483648
    %v569 = vor.u32 1.1754944e-38, %v568
    %v570 = vsel %vm567, %v569, %v565
    %v571 = vmul.f32 1.0, %v570
    %v572 = vrcp.pop %v556
    %v573 = vmul.f32 %v556, %v572
    %v574 = vsub.f32 1.0, %v573
    %v575 = vmul.f32 %v572, %v574
    %v576 = vadd.f32 %v572, %v575
    %vm577 = vweird.f32 %v556
    %vm578 = vweird.f32 %v572
    %vm579 = vmor %vm577, %vm578
    %v580 = vsel %vm579, %v572, %v576
    %v581 = vand.u32 2147483647, %v556
    %vm582 = vcmp.eq.f32.partialorder %v581, 8.507059e+37
    %v583 = vand.u32 %v556, 2147483648
    %v584 = vor.u32 1.1754944e-38, %v583
    %v585 = vsel %vm582, %v584, %v580
    %v586 = vmul.f32 1.0, %v585
    %v587 = vtanh.pop %v547
    %v588 = vtanh.pop %v548
    %590 = vrot.lane.b32.xlu0 %v121, 32
    %v591 = vpop.permute.xlu0 %590
    %v593 = vmul.f32 %v571, %v591
    %v594 = vmul.f32 %v586, %v591
    %597 = vrot.lane.b32.xlu0 %v587, 64
    %v598 = vpop.permute.xlu0 %597
    %599 = vrot.lane.b32.xlu0 %v588, 64
    %v600 = vpop.permute.xlu0 %599
    %v603 = vmul.f32 %v571, %v598
    %v604 = vmul.f32 %v586, %v600
    %607 = vrot.lane.b32.xlu0 %v603, 32
    %v608 = vpop.permute.xlu0 %607
    %609 = vrot.lane.b32.xlu0 %v604, 32
    %v610 = vpop.permute.xlu0 %609
    %v613 = vadd.f32 %v593, %v608
    %v614 = vadd.f32 %v594, %v610
    %v615 = vtanh.pop %v613
    %v616 = vtanh.pop %v614
    %619 = vrot.lane.b32.xlu0 %v615, 64
    %v620 = vpop.permute.xlu0 %619
    %621 = vrot.lane.b32.xlu0 %v616, 64
    %v622 = vpop.permute.xlu0 %621
    %v625 = vmul.f32 %v571, %v620
    %v626 = vmul.f32 %v586, %v622
    %v629 = vrot.slane %v626, 7
    %vm630 = vcmask 1041409
    %v631 = vsel %vm630, %v629, %v625
    %632 = vrot.lane.b32.xlu0 %v631, 32
    %v633 = vpop.permute.xlu0 %632
    %v634 = vsel %vm128, %v633, 0
    %636 = vmatpush.msra.mxu0 0.0
    %637 = vmatpush.msra.mxu0 0.0
    %638 = vmatpush.msra.mxu0 0.0
    %639 = vmatpush.msra.mxu0 0.0
    %640 = vmatpush.msra.mxu0 0.0
    %641 = vmatpush.msra.mxu0 0.0
    %642 = vmatpush.msra.mxu0 0.0
    %643 = vmatpush.msra.mxu0 0.0
    %644 = vmatpush.msra.mxu0 0.0
    %645 = vmatpush.msra.mxu0 0.0
    %646 = vmatpush.msra.mxu0 0.0
    %647 = vmatpush.msra.mxu0 0.0
    %v648 = vand.u32 %v354, 4294901760
    %649 = vmatpush.msra.mxu0 %v648
    %v650 = vand.u32 %v353, 4294901760
    %651 = vmatpush.msra.mxu0 %v650
    %v652 = vand.u32 %v352, 4294901760
    %653 = vmatpush.msra.mxu0 %v652
    %v654 = vand.u32 %v351, 4294901760
    %655 = vmatpush.msra.mxu0 %v654
    %v656 = vand.u32 %v634, 4294901760
    %v657 = vsub.f32 %v634, %v656
    %v658 = vand.u32 %v657, 4294901760
    %v659 = vsub.f32 %v657, %v658
    %v660 = vand.u32 %v659, 4294901760
    %661 = vmatmul.f32.gmra.mxu0 %v660
    %v662 = vpop.f32.mrf.mxu0
    %v663 = vadd.f32 0.0, %v662
    %664 = vdwg.mxu0
    %665 = vmatpush.msra.mxu0 0.0
    %666 = vmatpush.msra.mxu0 0.0
    %667 = vmatpush.msra.mxu0 0.0
    %668 = vmatpush.msra.mxu0 0.0
    %669 = vmatpush.msra.mxu0 0.0
    %670 = vmatpush.msra.mxu0 0.0
    %671 = vmatpush.msra.mxu0 0.0
    %672 = vmatpush.msra.mxu0 0.0
    %673 = vmatpush.msra.mxu0 0.0
    %674 = vmatpush.msra.mxu0 0.0
    %675 = vmatpush.msra.mxu0 0.0
    %676 = vmatpush.msra.mxu0 0.0
    %v677 = vand.u32 %v354, 4294901760
    %v678 = vsub.f32 %v354, %v677
    %v679 = vand.u32 %v678, 4294901760
    %v680 = vsub.f32 %v678, %v679
    %v681 = vand.u32 %v680, 4294901760
    %682 = vmatpush.msra.mxu0 %v681
    %v683 = vand.u32 %v353, 4294901760
    %v684 = vsub.f32 %v353, %v683
    %v685 = vand.u32 %v684, 4294901760
    %v686 = vsub.f32 %v684, %v685
    %v687 = vand.u32 %v686, 4294901760
    %688 = vmatpush.msra.mxu0 %v687
    %v689 = vand.u32 %v352, 4294901760
    %v690 = vsub.f32 %v352, %v689
    %v691 = vand.u32 %v690, 4294901760
    %v692 = vsub.f32 %v690, %v691
    %v693 = vand.u32 %v692, 4294901760
    %694 = vmatpush.msra.mxu0 %v693
    %v695 = vand.u32 %v351, 4294901760
    %v696 = vsub.f32 %v351, %v695
    %v697 = vand.u32 %v696, 4294901760
    %v698 = vsub.f32 %v696, %v697
    %v699 = vand.u32 %v698, 4294901760
    %700 = vmatpush.msra.mxu0 %v699
    %v701 = vand.u32 %v634, 4294901760
    %702 = vmatmul.f32.gmra.mxu0 %v701
    %v703 = vpop.f32.mrf.mxu0
    %v704 = vadd.f32 %v663, %v703
    %705 = vdwg.mxu0
    %706 = vmatpush.msra.mxu0 0.0
    %707 = vmatpush.msra.mxu0 0.0
    %708 = vmatpush.msra.mxu0 0.0
    %709 = vmatpush.msra.mxu0 0.0
    %710 = vmatpush.msra.mxu0 0.0
    %711 = vmatpush.msra.mxu0 0.0
    %712 = vmatpush.msra.mxu0 0.0
    %713 = vmatpush.msra.mxu0 0.0
    %714 = vmatpush.msra.mxu0 0.0
    %715 = vmatpush.msra.mxu0 0.0
    %716 = vmatpush.msra.mxu0 0.0
    %717 = vmatpush.msra.mxu0 0.0
    %v718 = vand.u32 %v354, 4294901760
    %v719 = vsub.f32 %v354, %v718
    %720 = vmatpush.msra.mxu0 %v719
    %v721 = vand.u32 %v353, 4294901760
    %v722 = vsub.f32 %v353, %v721
    %723 = vmatpush.msra.mxu0 %v722
    %v724 = vand.u32 %v352, 4294901760
    %v725 = vsub.f32 %v352, %v724
    %726 = vmatpush.msra.mxu0 %v725
    %v727 = vand.u32 %v351, 4294901760
    %v728 = vsub.f32 %v351, %v727
    %729 = vmatpush.msra.mxu0 %v728
    %v730 = vand.u32 %v634, 4294901760
    %v731 = vsub.f32 %v634, %v730
    %732 = vmatmul.f32.gmra.mxu0 %v731
    %v733 = vpop.f32.mrf.mxu0
    %v734 = vadd.f32 %v704, %v733
    %735 = vdwg.mxu0
    %736 = vmatpush.msra.mxu0 0.0
    %737 = vmatpush.msra.mxu0 0.0
    %738 = vmatpush.msra.mxu0 0.0
    %739 = vmatpush.msra.mxu0 0.0
    %740 = vmatpush.msra.mxu0 0.0
    %741 = vmatpush.msra.mxu0 0.0
    %742 = vmatpush.msra.mxu0 0.0
    %743 = vmatpush.msra.mxu0 0.0
    %744 = vmatpush.msra.mxu0 0.0
    %745 = vmatpush.msra.mxu0 0.0
    %746 = vmatpush.msra.mxu0 0.0
    %747 = vmatpush.msra.mxu0 0.0
    %v748 = vand.u32 %v354, 4294901760
    %749 = vmatpush.msra.mxu0 %v748
    %v750 = vand.u32 %v353, 4294901760
    %751 = vmatpush.msra.mxu0 %v750
    %v752 = vand.u32 %v352, 4294901760
    %753 = vmatpush.msra.mxu0 %v752
    %v754 = vand.u32 %v351, 4294901760
    %755 = vmatpush.msra.mxu0 %v754
    %v756 = vand.u32 %v634, 4294901760
    %v757 = vsub.f32 %v634, %v756
    %v758 = vand.u32 %v757, 4294901760
    %759 = vmatmul.f32.gmra.mxu0 %v758
    %v760 = vpop.f32.mrf.mxu0
    %v761 = vadd.f32 %v734, %v760
    %762 = vdwg.mxu0
    %763 = vmatpush.msra.mxu0 0.0
    %764 = vmatpush.msra.mxu0 0.0
    %765 = vmatpush.msra.mxu0 0.0
    %766 = vmatpush.msra.mxu0 0.0
    %767 = vmatpush.msra.mxu0 0.0
    %768 = vmatpush.msra.mxu0 0.0
    %769 = vmatpush.msra.mxu0 0.0
    %770 = vmatpush.msra.mxu0 0.0
    %771 = vmatpush.msra.mxu0 0.0
    %772 = vmatpush.msra.mxu0 0.0
    %773 = vmatpush.msra.mxu0 0.0
    %774 = vmatpush.msra.mxu0 0.0
    %v775 = vand.u32 %v354, 4294901760
    %v776 = vsub.f32 %v354, %v775
    %v777 = vand.u32 %v776, 4294901760
    %778 = vmatpush.msra.mxu0 %v777
    %v779 = vand.u32 %v353, 4294901760
    %v780 = vsub.f32 %v353, %v779
    %v781 = vand.u32 %v780, 4294901760
    %782 = vmatpush.msra.mxu0 %v781
    %v783 = vand.u32 %v352, 4294901760
    %v784 = vsub.f32 %v352, %v783
    %v785 = vand.u32 %v784, 4294901760
    %786 = vmatpush.msra.mxu0 %v785
    %v787 = vand.u32 %v351, 4294901760
    %v788 = vsub.f32 %v351, %v787
    %v789 = vand.u32 %v788, 4294901760
    %790 = vmatpush.msra.mxu0 %v789
    %v791 = vand.u32 %v634, 4294901760
    %792 = vmatmul.f32.gmra.mxu0 %v791
    %v793 = vpop.f32.mrf.mxu0
    %v794 = vadd.f32 %v761, %v793
    %795 = vdwg.mxu0
    %796 = vmatpush.msra.mxu0 0.0
    %797 = vmatpush.msra.mxu0 0.0
    %798 = vmatpush.msra.mxu0 0.0
    %799 = vmatpush.msra.mxu0 0.0
    %800 = vmatpush.msra.mxu0 0.0
    %801 = vmatpush.msra.mxu0 0.0
    %802 = vmatpush.msra.mxu0 0.0
    %803 = vmatpush.msra.mxu0 0.0
    %804 = vmatpush.msra.mxu0 0.0
    %805 = vmatpush.msra.mxu0 0.0
    %806 = vmatpush.msra.mxu0 0.0
    %807 = vmatpush.msra.mxu0 0.0
    %v808 = vand.u32 %v354, 4294901760
    %809 = vmatpush.msra.mxu0 %v808
    %v810 = vand.u32 %v353, 4294901760
    %811 = vmatpush.msra.mxu0 %v810
    %v812 = vand.u32 %v352, 4294901760
    %813 = vmatpush.msra.mxu0 %v812
    %v814 = vand.u32 %v351, 4294901760
    %815 = vmatpush.msra.mxu0 %v814
    %v816 = vand.u32 %v634, 4294901760
    %817 = vmatmul.f32.gmra.mxu0 %v816
    %v818 = vpop.f32.mrf.mxu0
    %v819 = vadd.f32 %v794, %v818
    %820 = vdwg.mxu0
    %v822 = vrot.slane %v819, 7
    %v825 = vadd.f32 %v345, %v822
    %v826 = vadd.f32 %v349, %v819
    %v827 = vxor.u32 %v825, 2147483648
    %v828 = vxor.u32 %v826, 2147483648
    %v829 = vmul.f32 %v827, 1.442695
    %v830 = vpow.pop %v829
    %v831 = vmul.f32 %v828, 1.442695
    %v832 = vpow.pop %v831
    %v833 = vadd.f32 %v830, 1.0
    %v834 = vadd.f32 %v832, 1.0
    %v835 = vrcp.pop %v833
    %v836 = vmul.f32 %v833, %v835
    %v837 = vsub.f32 1.0, %v836
    %v838 = vmul.f32 %v835, %v837
    %v839 = vadd.f32 %v835, %v838
    %vm840 = vweird.f32 %v833
    %vm841 = vweird.f32 %v835
    %vm842 = vmor %vm840, %vm841
    %v843 = vsel %vm842, %v835, %v839
    %v844 = vand.u32 2147483647, %v833
    %vm845 = vcmp.eq.f32.partialorder %v844, 8.507059e+37
    %v846 = vand.u32 %v833, 2147483648
    %v847 = vor.u32 1.1754944e-38, %v846
    %v848 = vsel %vm845, %v847, %v843
    %v849 = vmul.f32 1.0, %v848
    %v850 = vrcp.pop %v834
    %v851 = vmul.f32 %v834, %v850
    %v852 = vsub.f32 1.0, %v851
    %v853 = vmul.f32 %v850, %v852
    %v854 = vadd.f32 %v850, %v853
    %vm855 = vweird.f32 %v834
    %vm856 = vweird.f32 %v850
    %vm857 = vmor %vm855, %vm856
    %v858 = vsel %vm857, %v850, %v854
    %v859 = vand.u32 2147483647, %v834
    %vm860 = vcmp.eq.f32.partialorder %v859, 8.507059e+37
    %v861 = vand.u32 %v834, 2147483648
    %v862 = vor.u32 1.1754944e-38, %v861
    %v863 = vsel %vm860, %v862, %v858
    %v864 = vmul.f32 1.0, %v863
    %v865 = vtanh.pop %v825
    %v866 = vtanh.pop %v826
    %v869 = vrot.slane %v613, 7
    %v870 = vrot.slane %v614, 7
    %v873 = vmul.f32 %v849, %v869
    %v874 = vmul.f32 %v864, %v870
    %877 = vrot.lane.b32.xlu0 %v865, 64
    %v878 = vpop.permute.xlu0 %877
    %879 = vrot.lane.b32.xlu0 %v866, 64
    %v880 = vpop.permute.xlu0 %879
    %v883 = vmul.f32 %v849, %v878
    %v884 = vmul.f32 %v864, %v880
    %887 = vrot.lane.b32.xlu0 %v883, 32
    %v888 = vpop.permute.xlu0 %887
    %889 = vrot.lane.b32.xlu0 %v884, 32
    %v890 = vpop.permute.xlu0 %889
    %v893 = vadd.f32 %v873, %v888
    %v894 = vadd.f32 %v874, %v890
    %v895 = vtanh.pop %v893
    %v896 = vtanh.pop %v894
    %899 = vrot.lane.b32.xlu0 %v895, 64
    %v900 = vpop.permute.xlu0 %899
    %901 = vrot.lane.b32.xlu0 %v896, 64
    %v902 = vpop.permute.xlu0 %901
    %v905 = vmul.f32 %v849, %v900
    %v906 = vmul.f32 %v864, %v902
    %v909 = vrot.slane %v905, 1
    %v910 = vsel %vm630, %v906, %v909
    %911 = vrot.lane.b32.xlu0 %v910, 32
    %v912 = vpop.permute.xlu0 %911
    %v913 = vsel %vm128, %v912, 0
    %915 = vmatpush.msra.mxu0 0.0
    %916 = vmatpush.msra.mxu0 0.0
    %917 = vmatpush.msra.mxu0 0.0
    %918 = vmatpush.msra.mxu0 0.0
    %919 = vmatpush.msra.mxu0 0.0
    %920 = vmatpush.msra.mxu0 0.0
    %921 = vmatpush.msra.mxu0 0.0
    %922 = vmatpush.msra.mxu0 0.0
    %923 = vmatpush.msra.mxu0 0.0
    %924 = vmatpush.msra.mxu0 0.0
    %925 = vmatpush.msra.mxu0 0.0
    %926 = vmatpush.msra.mxu0 0.0
    %v927 = vand.u32 %v354, 4294901760
    %928 = vmatpush.msra.mxu0 %v927
    %v929 = vand.u32 %v353, 4294901760
    %930 = vmatpush.msra.mxu0 %v929
    %v931 = vand.u32 %v352, 4294901760
    %932 = vmatpush.msra.mxu0 %v931
    %v933 = vand.u32 %v351, 4294901760
    %934 = vmatpush.msra.mxu0 %v933
    %v935 = vand.u32 %v913, 4294901760
    %v936 = vsub.f32 %v913, %v935
    %v937 = vand.u32 %v936, 4294901760
    %v938 = vsub.f32 %v936, %v937
    %v939 = vand.u32 %v938, 4294901760
    %940 = vmatmul.f32.gmra.mxu0 %v939
    %v941 = vpop.f32.mrf.mxu0
    %v942 = vadd.f32 0.0, %v941
    %943 = vdwg.mxu0
    %944 = vmatpush.msra.mxu0 0.0
    %945 = vmatpush.msra.mxu0 0.0
    %946 = vmatpush.msra.mxu0 0.0
    %947 = vmatpush.msra.mxu0 0.0
    %948 = vmatpush.msra.mxu0 0.0
    %949 = vmatpush.msra.mxu0 0.0
    %950 = vmatpush.msra.mxu0 0.0
    %951 = vmatpush.msra.mxu0 0.0
    %952 = vmatpush.msra.mxu0 0.0
    %953 = vmatpush.msra.mxu0 0.0
    %954 = vmatpush.msra.mxu0 0.0
    %955 = vmatpush.msra.mxu0 0.0
    %v956 = vand.u32 %v354, 4294901760
    %v957 = vsub.f32 %v354, %v956
    %v958 = vand.u32 %v957, 4294901760
    %v959 = vsub.f32 %v957, %v958
    %v960 = vand.u32 %v959, 4294901760
    %961 = vmatpush.msra.mxu0 %v960
    %v962 = vand.u32 %v353, 4294901760
    %v963 = vsub.f32 %v353, %v962
    %v964 = vand.u32 %v963, 4294901760
    %v965 = vsub.f32 %v963, %v964
    %v966 = vand.u32 %v965, 4294901760
    %967 = vmatpush.msra.mxu0 %v966
    %v968 = vand.u32 %v352, 4294901760
    %v969 = vsub.f32 %v352, %v968
    %v970 = vand.u32 %v969, 4294901760
    %v971 = vsub.f32 %v969, %v970
    %v972 = vand.u32 %v971, 4294901760
    %973 = vmatpush.msra.mxu0 %v972
    %v974 = vand.u32 %v351, 4294901760
    %v975 = vsub.f32 %v351, %v974
    %v976 = vand.u32 %v975, 4294901760
    %v977 = vsub.f32 %v975, %v976
    %v978 = vand.u32 %v977, 4294901760
    %979 = vmatpush.msra.mxu0 %v978
    %v980 = vand.u32 %v913, 4294901760
    %981 = vmatmul.f32.gmra.mxu0 %v980
    %v982 = vpop.f32.mrf.mxu0
    %v983 = vadd.f32 %v942, %v982
    %984 = vdwg.mxu0
    %985 = vmatpush.msra.mxu0 0.0
    %986 = vmatpush.msra.mxu0 0.0
    %987 = vmatpush.msra.mxu0 0.0
    %988 = vmatpush.msra.mxu0 0.0
    %989 = vmatpush.msra.mxu0 0.0
    %990 = vmatpush.msra.mxu0 0.0
    %991 = vmatpush.msra.mxu0 0.0
    %992 = vmatpush.msra.mxu0 0.0
    %993 = vmatpush.msra.mxu0 0.0
    %994 = vmatpush.msra.mxu0 0.0
    %995 = vmatpush.msra.mxu0 0.0
    %996 = vmatpush.msra.mxu0 0.0
    %v997 = vand.u32 %v354, 4294901760
    %v998 = vsub.f32 %v354, %v997
    %999 = vmatpush.msra.mxu0 %v998
    %v1000 = vand.u32 %v353, 4294901760
    %v1001 = vsub.f32 %v353, %v1000
    %1002 = vmatpush.msra.mxu0 %v1001
    %v1003 = vand.u32 %v352, 4294901760
    %v1004 = vsub.f32 %v352, %v1003
    %1005 = vmatpush.msra.mxu0 %v1004
    %v1006 = vand.u32 %v351, 4294901760
    %v1007 = vsub.f32 %v351, %v1006
    %1008 = vmatpush.msra.mxu0 %v1007
    %v1009 = vand.u32 %v913, 4294901760
    %v1010 = vsub.f32 %v913, %v1009
    %1011 = vmatmul.f32.gmra.mxu0 %v1010
    %v1012 = vpop.f32.mrf.mxu0
    %v1013 = vadd.f32 %v983, %v1012
    %1014 = vdwg.mxu0
    %1015 = vmatpush.msra.mxu0 0.0
    %1016 = vmatpush.msra.mxu0 0.0
    %1017 = vmatpush.msra.mxu0 0.0
    %1018 = vmatpush.msra.mxu0 0.0
    %1019 = vmatpush.msra.mxu0 0.0
    %1020 = vmatpush.msra.mxu0 0.0
    %1021 = vmatpush.msra.mxu0 0.0
    %1022 = vmatpush.msra.mxu0 0.0
    %1023 = vmatpush.msra.mxu0 0.0
    %1024 = vmatpush.msra.mxu0 0.0
    %1025 = vmatpush.msra.mxu0 0.0
    %1026 = vmatpush.msra.mxu0 0.0
    %v1027 = vand.u32 %v354, 4294901760
    %1028 = vmatpush.msra.mxu0 %v1027
    %v1029 = vand.u32 %v353, 4294901760
    %1030 = vmatpush.msra.mxu0 %v1029
    %v1031 = vand.u32 %v352, 4294901760
    %1032 = vmatpush.msra.mxu0 %v1031
    %v1033 = vand.u32 %v351, 4294901760
    %1034 = vmatpush.msra.mxu0 %v1033
    %v1035 = vand.u32 %v913, 4294901760
    %v1036 = vsub.f32 %v913, %v1035
    %v1037 = vand.u32 %v1036, 4294901760
    %1038 = vmatmul.f32.gmra.mxu0 %v1037
    %v1039 = vpop.f32.mrf.mxu0
    %v1040 = vadd.f32 %v1013, %v1039
    %1041 = vdwg.mxu0
    %1042 = vmatpush.msra.mxu0 0.0
    %1043 = vmatpush.msra.mxu0 0.0
    %1044 = vmatpush.msra.mxu0 0.0
    %1045 = vmatpush.msra.mxu0 0.0
    %1046 = vmatpush.msra.mxu0 0.0
    %1047 = vmatpush.msra.mxu0 0.0
    %1048 = vmatpush.msra.mxu0 0.0
    %1049 = vmatpush.msra.mxu0 0.0
    %1050 = vmatpush.msra.mxu0 0.0
    %1051 = vmatpush.msra.mxu0 0.0
    %1052 = vmatpush.msra.mxu0 0.0
    %1053 = vmatpush.msra.mxu0 0.0
    %v1054 = vand.u32 %v354, 4294901760
    %v1055 = vsub.f32 %v354, %v1054
    %v1056 = vand.u32 %v1055, 4294901760
    %1057 = vmatpush.msra.mxu0 %v1056
    %v1058 = vand.u32 %v353, 4294901760
    %v1059 = vsub.f32 %v353, %v1058
    %v1060 = vand.u32 %v1059, 4294901760
    %1061 = vmatpush.msra.mxu0 %v1060
    %v1062 = vand.u32 %v352, 4294901760
    %v1063 = vsub.f32 %v352, %v1062
    %v1064 = vand.u32 %v1063, 4294901760
    %1065 = vmatpush.msra.mxu0 %v1064
    %v1066 = vand.u32 %v351, 4294901760
    %v1067 = vsub.f32 %v351, %v1066
    %v1068 = vand.u32 %v1067, 4294901760
    %1069 = vmatpush.msra.mxu0 %v1068
    %v1070 = vand.u32 %v913, 4294901760
    %1071 = vmatmul.f32.gmra.mxu0 %v1070
    %v1072 = vpop.f32.mrf.mxu0
    %v1073 = vadd.f32 %v1040, %v1072
    %1074 = vdwg.mxu0
    %1075 = vmatpush.msra.mxu0 0.0
    %1076 = vmatpush.msra.mxu0 0.0
    %1077 = vmatpush.msra.mxu0 0.0
    %1078 = vmatpush.msra.mxu0 0.0
    %1079 = vmatpush.msra.mxu0 0.0
    %1080 = vmatpush.msra.mxu0 0.0
    %1081 = vmatpush.msra.mxu0 0.0
    %1082 = vmatpush.msra.mxu0 0.0
    %1083 = vmatpush.msra.mxu0 0.0
    %1084 = vmatpush.msra.mxu0 0.0
    %1085 = vmatpush.msra.mxu0 0.0
    %1086 = vmatpush.msra.mxu0 0.0
    %v1087 = vand.u32 %v354, 4294901760
    %1088 = vmatpush.msra.mxu0 %v1087
    %v1089 = vand.u32 %v353, 4294901760
    %1090 = vmatpush.msra.mxu0 %v1089
    %v1091 = vand.u32 %v352, 4294901760
    %1092 = vmatpush.msra.mxu0 %v1091
    %v1093 = vand.u32 %v351, 4294901760
    %1094 = vmatpush.msra.mxu0 %v1093
    %v1095 = vand.u32 %v913, 4294901760
    %1096 = vmatmul.f32.gmra.mxu0 %v1095
    %v1097 = vpop.f32.mrf.mxu0
    %v1098 = vadd.f32 %v1073, %v1097
    %1099 = vdwg.mxu0
    %v1101 = vrot.slane %v1098, 6
    %v1102 = vrot.slane %v1098, 7
    %v1105 = vadd.f32 %v345, %v1101
    %v1106 = vadd.f32 %v349, %v1102
    %v1107 = vxor.u32 %v1105, 2147483648
    %v1108 = vxor.u32 %v1106, 2147483648
    %v1109 = vmul.f32 %v1107, 1.442695
    %v1110 = vpow.pop %v1109
    %v1111 = vmul.f32 %v1108, 1.442695
    %v1112 = vpow.pop %v1111
    %v1113 = vadd.f32 %v1110, 1.0
    %v1114 = vadd.f32 %v1112, 1.0
    %v1115 = vrcp.pop %v1113
    %v1116 = vmul.f32 %v1113, %v1115
    %v1117 = vsub.f32 1.0, %v1116
    %v1118 = vmul.f32 %v1115, %v1117
    %v1119 = vadd.f32 %v1115, %v1118
    %vm1120 = vweird.f32 %v1113
    %vm1121 = vweird.f32 %v1115
    %vm1122 = vmor %vm1120, %vm1121
    %v1123 = vsel %vm1122, %v1115, %v1119
    %v1124 = vand.u32 2147483647, %v1113
    %vm1125 = vcmp.eq.f32.partialorder %v1124, 8.507059e+37
    %v1126 = vand.u32 %v1113, 2147483648
    %v1127 = vor.u32 1.1754944e-38, %v1126
    %v1128 = vsel %vm1125, %v1127, %v1123
    %v1129 = vmul.f32 1.0, %v1128
    %v1130 = vrcp.pop %v1114
    %v1131 = vmul.f32 %v1114, %v1130
    %v1132 = vsub.f32 1.0, %v1131
    %v1133 = vmul.f32 %v1130, %v1132
    %v1134 = vadd.f32 %v1130, %v1133
    %vm1135 = vweird.f32 %v1114
    %vm1136 = vweird.f32 %v1130
    %vm1137 = vmor %vm1135, %vm1136
    %v1138 = vsel %vm1137, %v1130, %v1134
    %v1139 = vand.u32 2147483647, %v1114
    %vm1140 = vcmp.eq.f32.partialorder %v1139, 8.507059e+37
    %v1141 = vand.u32 %v1114, 2147483648
    %v1142 = vor.u32 1.1754944e-38, %v1141
    %v1143 = vsel %vm1140, %v1142, %v1138
    %v1144 = vmul.f32 1.0, %v1143
    %v1145 = vtanh.pop %v1105
    %v1146 = vtanh.pop %v1106
    %v1149 = vrot.slane %v893, 7
    %v1150 = vrot.slane %v894, 7
    %v1153 = vmul.f32 %v1129, %v1149
    %v1154 = vmul.f32 %v1144, %v1150
    %1157 = vrot.lane.b32.xlu0 %v1145, 64
    %v1158 = vpop.permute.xlu0 %1157
    %1159 = vrot.lane.b32.xlu0 %v1146, 64
    %v1160 = vpop.permute.xlu0 %1159
    %v1163 = vmul.f32 %v1129, %v1158
    %v1164 = vmul.f32 %v1144, %v1160
    %1167 = vrot.lane.b32.xlu0 %v1163, 32
    %v1168 = vpop.permute.xlu0 %1167
    %1169 = vrot.lane.b32.xlu0 %v1164, 32
    %v1170 = vpop.permute.xlu0 %1169
    %v1173 = vadd.f32 %v1153, %v1168
    %v1174 = vadd.f32 %v1154, %v1170
    %v1175 = vtanh.pop %v1173
    %v1176 = vtanh.pop %v1174
    %1179 = vrot.lane.b32.xlu0 %v1175, 64
    %v1180 = vpop.permute.xlu0 %1179
    %1181 = vrot.lane.b32.xlu0 %v1176, 64
    %v1182 = vpop.permute.xlu0 %1181
    %v1185 = vmul.f32 %v1129, %v1180
    %v1186 = vmul.f32 %v1144, %v1182
    %v1189 = vrot.slane %v1185, 2
    %v1190 = vrot.slane %v1186, 1
    %v1191 = vsel %vm630, %v1190, %v1189
    %1192 = vrot.lane.b32.xlu0 %v1191, 32
    %v1193 = vpop.permute.xlu0 %1192
    %v1194 = vsel %vm128, %v1193, 0
    %1196 = vmatpush.msra.mxu0 0.0
    %1197 = vmatpush.msra.mxu0 0.0
    %1198 = vmatpush.msra.mxu0 0.0
    %1199 = vmatpush.msra.mxu0 0.0
    %1200 = vmatpush.msra.mxu0 0.0
    %1201 = vmatpush.msra.mxu0 0.0
    %1202 = vmatpush.msra.mxu0 0.0
    %1203 = vmatpush.msra.mxu0 0.0
    %1204 = vmatpush.msra.mxu0 0.0
    %1205 = vmatpush.msra.mxu0 0.0
    %1206 = vmatpush.msra.mxu0 0.0
    %1207 = vmatpush.msra.mxu0 0.0
    %v1208 = vand.u32 %v354, 4294901760
    %1209 = vmatpush.msra.mxu0 %v1208
    %v1210 = vand.u32 %v353, 4294901760
    %1211 = vmatpush.msra.mxu0 %v1210
    %v1212 = vand.u32 %v352, 4294901760
    %1213 = vmatpush.msra.mxu0 %v1212
    %v1214 = vand.u32 %v351, 4294901760
    %1215 = vmatpush.msra.mxu0 %v1214
    %v1216 = vand.u32 %v1194, 4294901760
    %v1217 = vsub.f32 %v1194, %v1216
    %v1218 = vand.u32 %v1217, 4294901760
    %v1219 = vsub.f32 %v1217, %v1218
    %v1220 = vand.u32 %v1219, 4294901760
    %1221 = vmatmul.f32.gmra.mxu0 %v1220
    %v1222 = vpop.f32.mrf.mxu0
    %v1223 = vadd.f32 0.0, %v1222
    %1224 = vdwg.mxu0
    %1225 = vmatpush.msra.mxu0 0.0
    %1226 = vmatpush.msra.mxu0 0.0
    %1227 = vmatpush.msra.mxu0 0.0
    %1228 = vmatpush.msra.mxu0 0.0
    %1229 = vmatpush.msra.mxu0 0.0
    %1230 = vmatpush.msra.mxu0 0.0
    %1231 = vmatpush.msra.mxu0 0.0
    %1232 = vmatpush.msra.mxu0 0.0
    %1233 = vmatpush.msra.mxu0 0.0
    %1234 = vmatpush.msra.mxu0 0.0
    %1235 = vmatpush.msra.mxu0 0.0
    %1236 = vmatpush.msra.mxu0 0.0
    %v1237 = vand.u32 %v354, 4294901760
    %v1238 = vsub.f32 %v354, %v1237
    %v1239 = vand.u32 %v1238, 4294901760
    %v1240 = vsub.f32 %v1238, %v1239
    %v1241 = vand.u32 %v1240, 4294901760
    %1242 = vmatpush.msra.mxu0 %v1241
    %v1243 = vand.u32 %v353, 4294901760
    %v1244 = vsub.f32 %v353, %v1243
    %v1245 = vand.u32 %v1244, 4294901760
    %v1246 = vsub.f32 %v1244, %v1245
    %v1247 = vand.u32 %v1246, 4294901760
    %1248 = vmatpush.msra.mxu0 %v1247
    %v1249 = vand.u32 %v352, 4294901760
    %v1250 = vsub.f32 %v352, %v1249
    %v1251 = vand.u32 %v1250, 4294901760
    %v1252 = vsub.f32 %v1250, %v1251
    %v1253 = vand.u32 %v1252, 4294901760
    %1254 = vmatpush.msra.mxu0 %v1253
    %v1255 = vand.u32 %v351, 4294901760
    %v1256 = vsub.f32 %v351, %v1255
    %v1257 = vand.u32 %v1256, 4294901760
    %v1258 = vsub.f32 %v1256, %v1257
    %v1259 = vand.u32 %v1258, 4294901760
    %1260 = vmatpush.msra.mxu0 %v1259
    %v1261 = vand.u32 %v1194, 4294901760
    %1262 = vmatmul.f32.gmra.mxu0 %v1261
    %v1263 = vpop.f32.mrf.mxu0
    %v1264 = vadd.f32 %v1223, %v1263
    %1265 = vdwg.mxu0
    %1266 = vmatpush.msra.mxu0 0.0
    %1267 = vmatpush.msra.mxu0 0.0
    %1268 = vmatpush.msra.mxu0 0.0
    %1269 = vmatpush.msra.mxu0 0.0
    %1270 = vmatpush.msra.mxu0 0.0
    %1271 = vmatpush.msra.mxu0 0.0
    %1272 = vmatpush.msra.mxu0 0.0
    %1273 = vmatpush.msra.mxu0 0.0
    %1274 = vmatpush.msra.mxu0 0.0
    %1275 = vmatpush.msra.mxu0 0.0
    %1276 = vmatpush.msra.mxu0 0.0
    %1277 = vmatpush.msra.mxu0 0.0
    %v1278 = vand.u32 %v354, 4294901760
    %v1279 = vsub.f32 %v354, %v1278
    %1280 = vmatpush.msra.mxu0 %v1279
    %v1281 = vand.u32 %v353, 4294901760
    %v1282 = vsub.f32 %v353, %v1281
    %1283 = vmatpush.msra.mxu0 %v1282
    %v1284 = vand.u32 %v352, 4294901760
    %v1285 = vsub.f32 %v352, %v1284
    %1286 = vmatpush.msra.mxu0 %v1285
    %v1287 = vand.u32 %v351, 4294901760
    %v1288 = vsub.f32 %v351, %v1287
    %1289 = vmatpush.msra.mxu0 %v1288
    %v1290 = vand.u32 %v1194, 4294901760
    %v1291 = vsub.f32 %v1194, %v1290
    %1292 = vmatmul.f32.gmra.mxu0 %v1291
    %v1293 = vpop.f32.mrf.mxu0
    %v1294 = vadd.f32 %v1264, %v1293
    %1295 = vdwg.mxu0
    %1296 = vmatpush.msra.mxu0 0.0
    %1297 = vmatpush.msra.mxu0 0.0
    %1298 = vmatpush.msra.mxu0 0.0
    %1299 = vmatpush.msra.mxu0 0.0
    %1300 = vmatpush.msra.mxu0 0.0
    %1301 = vmatpush.msra.mxu0 0.0
    %1302 = vmatpush.msra.mxu0 0.0
    %1303 = vmatpush.msra.mxu0 0.0
    %1304 = vmatpush.msra.mxu0 0.0
    %1305 = vmatpush.msra.mxu0 0.0
    %1306 = vmatpush.msra.mxu0 0.0
    %1307 = vmatpush.msra.mxu0 0.0
    %v1308 = vand.u32 %v354, 4294901760
    %1309 = vmatpush.msra.mxu0 %v1308
    %v1310 = vand.u32 %v353, 4294901760
    %1311 = vmatpush.msra.mxu0 %v1310
    %v1312 = vand.u32 %v352, 4294901760
    %1313 = vmatpush.msra.mxu0 %v1312
    %v1314 = vand.u32 %v351, 4294901760
    %1315 = vmatpush.msra.mxu0 %v1314
    %v1316 = vand.u32 %v1194, 4294901760
    %v1317 = vsub.f32 %v1194, %v1316
    %v1318 = vand.u32 %v1317, 4294901760
    %1319 = vmatmul.f32.gmra.mxu0 %v1318
    %v1320 = vpop.f32.mrf.mxu0
    %v1321 = vadd.f32 %v1294, %v1320
    %1322 = vdwg.mxu0
    %1323 = vmatpush.msra.mxu0 0.0
    %1324 = vmatpush.msra.mxu0 0.0
    %1325 = vmatpush.msra.mxu0 0.0
    %1326 = vmatpush.msra.mxu0 0.0
    %1327 = vmatpush.msra.mxu0 0.0
    %1328 = vmatpush.msra.mxu0 0.0
    %1329 = vmatpush.msra.mxu0 0.0
    %1330 = vmatpush.msra.mxu0 0.0
    %1331 = vmatpush.msra.mxu0 0.0
    %1332 = vmatpush.msra.mxu0 0.0
    %1333 = vmatpush.msra.mxu0 0.0
    %1334 = vmatpush.msra.mxu0 0.0
    %v1335 = vand.u32 %v354, 4294901760
    %v1336 = vsub.f32 %v354, %v1335
    %v1337 = vand.u32 %v1336, 4294901760
    %1338 = vmatpush.msra.mxu0 %v1337
    %v1339 = vand.u32 %v353, 4294901760
    %v1340 = vsub.f32 %v353, %v1339
    %v1341 = vand.u32 %v1340, 4294901760
    %1342 = vmatpush.msra.mxu0 %v1341
    %v1343 = vand.u32 %v352, 4294901760
    %v1344 = vsub.f32 %v352, %v1343
    %v1345 = vand.u32 %v1344, 4294901760
    %1346 = vmatpush.msra.mxu0 %v1345
    %v1347 = vand.u32 %v351, 4294901760
    %v1348 = vsub.f32 %v351, %v1347
    %v1349 = vand.u32 %v1348, 4294901760
    %1350 = vmatpush.msra.mxu0 %v1349
    %v1351 = vand.u32 %v1194, 4294901760
    %1352 = vmatmul.f32.gmra.mxu0 %v1351
    %v1353 = vpop.f32.mrf.mxu0
    %v1354 = vadd.f32 %v1321, %v1353
    %1355 = vdwg.mxu0
    %1356 = vmatpush.msra.mxu0 0.0
    %1357 = vmatpush.msra.mxu0 0.0
    %1358 = vmatpush.msra.mxu0 0.0
    %1359 = vmatpush.msra.mxu0 0.0
    %1360 = vmatpush.msra.mxu0 0.0
    %1361 = vmatpush.msra.mxu0 0.0
    %1362 = vmatpush.msra.mxu0 0.0
    %1363 = vmatpush.msra.mxu0 0.0
    %1364 = vmatpush.msra.mxu0 0.0
    %1365 = vmatpush.msra.mxu0 0.0
    %1366 = vmatpush.msra.mxu0 0.0
    %1367 = vmatpush.msra.mxu0 0.0
    %v1368 = vand.u32 %v354, 4294901760
    %1369 = vmatpush.msra.mxu0 %v1368
    %v1370 = vand.u32 %v353, 4294901760
    %1371 = vmatpush.msra.mxu0 %v1370
    %v1372 = vand.u32 %v352, 4294901760
    %1373 = vmatpush.msra.mxu0 %v1372
    %v1374 = vand.u32 %v351, 4294901760
    %1375 = vmatpush.msra.mxu0 %v1374
    %v1376 = vand.u32 %v1194, 4294901760
    %1377 = vmatmul.f32.gmra.mxu0 %v1376
    %v1378 = vpop.f32.mrf.mxu0
    %v1379 = vadd.f32 %v1354, %v1378
    %1380 = vdwg.mxu0
    %v1382 = vrot.slane %v1379, 5
    %v1383 = vrot.slane %v1379, 6
    %v1386 = vadd.f32 %v345, %v1382
    %v1387 = vadd.f32 %v349, %v1383
    %v1388 = vxor.u32 %v1386, 2147483648
    %v1389 = vxor.u32 %v1387, 2147483648
    %v1390 = vmul.f32 %v1388, 1.442695
    %v1391 = vpow.pop %v1390
    %v1392 = vmul.f32 %v1389, 1.442695
    %v1393 = vpow.pop %v1392
    %v1394 = vadd.f32 %v1391, 1.0
    %v1395 = vadd.f32 %v1393, 1.0
    %v1396 = vrcp.pop %v1394
    %v1397 = vmul.f32 %v1394, %v1396
    %v1398 = vsub.f32 1.0, %v1397
    %v1399 = vmul.f32 %v1396, %v1398
    %v1400 = vadd.f32 %v1396, %v1399
    %vm1401 = vweird.f32 %v1394
    %vm1402 = vweird.f32 %v1396
    %vm1403 = vmor %vm1401, %vm1402
    %v1404 = vsel %vm1403, %v1396, %v1400
    %v1405 = vand.u32 2147483647, %v1394
    %vm1406 = vcmp.eq.f32.partialorder %v1405, 8.507059e+37
    %v1407 = vand.u32 %v1394, 2147483648
    %v1408 = vor.u32 1.1754944e-38, %v1407
    %v1409 = vsel %vm1406, %v1408, %v1404
    %v1410 = vmul.f32 1.0, %v1409
    %v1411 = vrcp.pop %v1395
    %v1412 = vmul.f32 %v1395, %v1411
    %v1413 = vsub.f32 1.0, %v1412
    %v1414 = vmul.f32 %v1411, %v1413
    %v1415 = vadd.f32 %v1411, %v1414
    %vm1416 = vweird.f32 %v1395
    %vm1417 = vweird.f32 %v1411
    %vm1418 = vmor %vm1416, %vm1417
    %v1419 = vsel %vm1418, %v1411, %v1415
    %v1420 = vand.u32 2147483647, %v1395
    %vm1421 = vcmp.eq.f32.partialorder %v1420, 8.507059e+37
    %v1422 = vand.u32 %v1395, 2147483648
    %v1423 = vor.u32 1.1754944e-38, %v1422
    %v1424 = vsel %vm1421, %v1423, %v1419
    %v1425 = vmul.f32 1.0, %v1424
    %v1426 = vtanh.pop %v1386
    %v1427 = vtanh.pop %v1387
    %v1430 = vrot.slane %v1173, 7
    %v1431 = vrot.slane %v1174, 7
    %v1434 = vmul.f32 %v1410, %v1430
    %v1435 = vmul.f32 %v1425, %v1431
    %1438 = vrot.lane.b32.xlu0 %v1426, 64
    %v1439 = vpop.permute.xlu0 %1438
    %1440 = vrot.lane.b32.xlu0 %v1427, 64
    %v1441 = vpop.permute.xlu0 %1440
    %v1444 = vmul.f32 %v1410, %v1439
    %v1445 = vmul.f32 %v1425, %v1441
    %1448 = vrot.lane.b32.xlu0 %v1444, 32
    %v1449 = vpop.permute.xlu0 %1448
    %1450 = vrot.lane.b32.xlu0 %v1445, 32
    %v1451 = vpop.permute.xlu0 %1450
    %v1454 = vadd.f32 %v1434, %v1449
    %v1455 = vadd.f32 %v1435, %v1451
    %v1456 = vtanh.pop %v1454
    %v1457 = vtanh.pop %v1455
    %1460 = vrot.lane.b32.xlu0 %v1456, 64
    %v1461 = vpop.permute.xlu0 %1460
    %1462 = vrot.lane.b32.xlu0 %v1457, 64
    %v1463 = vpop.permute.xlu0 %1462
    %v1466 = vmul.f32 %v1410, %v1461
    %v1467 = vmul.f32 %v1425, %v1463
    %v1470 = vrot.slane %v1466, 3
    %v1471 = vrot.slane %v1467, 2
    %v1472 = vsel %vm630, %v1471, %v1470
    %1473 = vrot.lane.b32.xlu0 %v1472, 32
    %v1474 = vpop.permute.xlu0 %1473
    %v1475 = vsel %vm128, %v1474, 0
    %1477 = vmatpush.msra.mxu0 0.0
    %1478 = vmatpush.msra.mxu0 0.0
    %1479 = vmatpush.msra.mxu0 0.0
    %1480 = vmatpush.msra.mxu0 0.0
    %1481 = vmatpush.msra.mxu0 0.0
    %1482 = vmatpush.msra.mxu0 0.0
    %1483 = vmatpush.msra.mxu0 0.0
    %1484 = vmatpush.msra.mxu0 0.0
    %1485 = vmatpush.msra.mxu0 0.0
    %1486 = vmatpush.msra.mxu0 0.0
    %1487 = vmatpush.msra.mxu0 0.0
    %1488 = vmatpush.msra.mxu0 0.0
    %v1489 = vand.u32 %v354, 4294901760
    %1490 = vmatpush.msra.mxu0 %v1489
    %v1491 = vand.u32 %v353, 4294901760
    %1492 = vmatpush.msra.mxu0 %v1491
    %v1493 = vand.u32 %v352, 4294901760
    %1494 = vmatpush.msra.mxu0 %v1493
    %v1495 = vand.u32 %v351, 4294901760
    %1496 = vmatpush.msra.mxu0 %v1495
    %v1497 = vand.u32 %v1475, 4294901760
    %v1498 = vsub.f32 %v1475, %v1497
    %v1499 = vand.u32 %v1498, 4294901760
    %v1500 = vsub.f32 %v1498, %v1499
    %v1501 = vand.u32 %v1500, 4294901760
    %1502 = vmatmul.f32.gmra.mxu0 %v1501
    %v1503 = vpop.f32.mrf.mxu0
    %v1504 = vadd.f32 0.0, %v1503
    %1505 = vdwg.mxu0
    %1506 = vmatpush.msra.mxu0 0.0
    %1507 = vmatpush.msra.mxu0 0.0
    %1508 = vmatpush.msra.mxu0 0.0
    %1509 = vmatpush.msra.mxu0 0.0
    %1510 = vmatpush.msra.mxu0 0.0
    %1511 = vmatpush.msra.mxu0 0.0
    %1512 = vmatpush.msra.mxu0 0.0
    %1513 = vmatpush.msra.mxu0 0.0
    %1514 = vmatpush.msra.mxu0 0.0
    %1515 = vmatpush.msra.mxu0 0.0
    %1516 = vmatpush.msra.mxu0 0.0
    %1517 = vmatpush.msra.mxu0 0.0
    %v1518 = vand.u32 %v354, 4294901760
    %v1519 = vsub.f32 %v354, %v1518
    %v1520 = vand.u32 %v1519, 4294901760
    %v1521 = vsub.f32 %v1519, %v1520
    %v1522 = vand.u32 %v1521, 4294901760
    %1523 = vmatpush.msra.mxu0 %v1522
    %v1524 = vand.u32 %v353, 4294901760
    %v1525 = vsub.f32 %v353, %v1524
    %v1526 = vand.u32 %v1525, 4294901760
    %v1527 = vsub.f32 %v1525, %v1526
    %v1528 = vand.u32 %v1527, 4294901760
    %1529 = vmatpush.msra.mxu0 %v1528
    %v1530 = vand.u32 %v352, 4294901760
    %v1531 = vsub.f32 %v352, %v1530
    %v1532 = vand.u32 %v1531, 4294901760
    %v1533 = vsub.f32 %v1531, %v1532
    %v1534 = vand.u32 %v1533, 4294901760
    %1535 = vmatpush.msra.mxu0 %v1534
    %v1536 = vand.u32 %v351, 4294901760
    %v1537 = vsub.f32 %v351, %v1536
    %v1538 = vand.u32 %v1537, 4294901760
    %v1539 = vsub.f32 %v1537, %v1538
    %v1540 = vand.u32 %v1539, 4294901760
    %1541 = vmatpush.msra.mxu0 %v1540
    %v1542 = vand.u32 %v1475, 4294901760
    %1543 = vmatmul.f32.gmra.mxu0 %v1542
    %v1544 = vpop.f32.mrf.mxu0
    %v1545 = vadd.f32 %v1504, %v1544
    %1546 = vdwg.mxu0
    %1547 = vmatpush.msra.mxu0 0.0
    %1548 = vmatpush.msra.mxu0 0.0
    %1549 = vmatpush.msra.mxu0 0.0
    %1550 = vmatpush.msra.mxu0 0.0
    %1551 = vmatpush.msra.mxu0 0.0
    %1552 = vmatpush.msra.mxu0 0.0
    %1553 = vmatpush.msra.mxu0 0.0
    %1554 = vmatpush.msra.mxu0 0.0
    %1555 = vmatpush.msra.mxu0 0.0
    %1556 = vmatpush.msra.mxu0 0.0
    %1557 = vmatpush.msra.mxu0 0.0
    %1558 = vmatpush.msra.mxu0 0.0
    %v1559 = vand.u32 %v354, 4294901760
    %v1560 = vsub.f32 %v354, %v1559
    %1561 = vmatpush.msra.mxu0 %v1560
    %v1562 = vand.u32 %v353, 4294901760
    %v1563 = vsub.f32 %v353, %v1562
    %1564 = vmatpush.msra.mxu0 %v1563
    %v1565 = vand.u32 %v352, 4294901760
    %v1566 = vsub.f32 %v352, %v1565
    %1567 = vmatpush.msra.mxu0 %v1566
    %v1568 = vand.u32 %v351, 4294901760
    %v1569 = vsub.f32 %v351, %v1568
    %1570 = vmatpush.msra.mxu0 %v1569
    %v1571 = vand.u32 %v1475, 4294901760
    %v1572 = vsub.f32 %v1475, %v1571
    %1573 = vmatmul.f32.gmra.mxu0 %v1572
    %v1574 = vpop.f32.mrf.mxu0
    %v1575 = vadd.f32 %v1545, %v1574
    %1576 = vdwg.mxu0
    %1577 = vmatpush.msra.mxu0 0.0
    %1578 = vmatpush.msra.mxu0 0.0
    %1579 = vmatpush.msra.mxu0 0.0
    %1580 = vmatpush.msra.mxu0 0.0
    %1581 = vmatpush.msra.mxu0 0.0
    %1582 = vmatpush.msra.mxu0 0.0
    %1583 = vmatpush.msra.mxu0 0.0
    %1584 = vmatpush.msra.mxu0 0.0
    %1585 = vmatpush.msra.mxu0 0.0
    %1586 = vmatpush.msra.mxu0 0.0
    %1587 = vmatpush.msra.mxu0 0.0
    %1588 = vmatpush.msra.mxu0 0.0
    %v1589 = vand.u32 %v354, 4294901760
    %1590 = vmatpush.msra.mxu0 %v1589
    %v1591 = vand.u32 %v353, 4294901760
    %1592 = vmatpush.msra.mxu0 %v1591
    %v1593 = vand.u32 %v352, 4294901760
    %1594 = vmatpush.msra.mxu0 %v1593
    %v1595 = vand.u32 %v351, 4294901760
    %1596 = vmatpush.msra.mxu0 %v1595
    %v1597 = vand.u32 %v1475, 4294901760
    %v1598 = vsub.f32 %v1475, %v1597
    %v1599 = vand.u32 %v1598, 4294901760
    %1600 = vmatmul.f32.gmra.mxu0 %v1599
    %v1601 = vpop.f32.mrf.mxu0
    %v1602 = vadd.f32 %v1575, %v1601
    %1603 = vdwg.mxu0
    %1604 = vmatpush.msra.mxu0 0.0
    %1605 = vmatpush.msra.mxu0 0.0
    %1606 = vmatpush.msra.mxu0 0.0
    %1607 = vmatpush.msra.mxu0 0.0
    %1608 = vmatpush.msra.mxu0 0.0
    %1609 = vmatpush.msra.mxu0 0.0
    %1610 = vmatpush.msra.mxu0 0.0
    %1611 = vmatpush.msra.mxu0 0.0
    %1612 = vmatpush.msra.mxu0 0.0
    %1613 = vmatpush.msra.mxu0 0.0
    %1614 = vmatpush.msra.mxu0 0.0
    %1615 = vmatpush.msra.mxu0 0.0
    %v1616 = vand.u32 %v354, 4294901760
    %v1617 = vsub.f32 %v354, %v1616
    %v1618 = vand.u32 %v1617, 4294901760
    %1619 = vmatpush.msra.mxu0 %v1618
    %v1620 = vand.u32 %v353, 4294901760
    %v1621 = vsub.f32 %v353, %v1620
    %v1622 = vand.u32 %v1621, 4294901760
    %1623 = vmatpush.msra.mxu0 %v1622
    %v1624 = vand.u32 %v352, 4294901760
    %v1625 = vsub.f32 %v352, %v1624
    %v1626 = vand.u32 %v1625, 4294901760
    %1627 = vmatpush.msra.mxu0 %v1626
    %v1628 = vand.u32 %v351, 4294901760
    %v1629 = vsub.f32 %v351, %v1628
    %v1630 = vand.u32 %v1629, 4294901760
    %1631 = vmatpush.msra.mxu0 %v1630
    %v1632 = vand.u32 %v1475, 4294901760
    %1633 = vmatmul.f32.gmra.mxu0 %v1632
    %v1634 = vpop.f32.mrf.mxu0
    %v1635 = vadd.f32 %v1602, %v1634
    %1636 = vdwg.mxu0
    %1637 = vmatpush.msra.mxu0 0.0
    %1638 = vmatpush.msra.mxu0 0.0
    %1639 = vmatpush.msra.mxu0 0.0
    %1640 = vmatpush.msra.mxu0 0.0
    %1641 = vmatpush.msra.mxu0 0.0
    %1642 = vmatpush.msra.mxu0 0.0
    %1643 = vmatpush.msra.mxu0 0.0
    %1644 = vmatpush.msra.mxu0 0.0
    %1645 = vmatpush.msra.mxu0 0.0
    %1646 = vmatpush.msra.mxu0 0.0
    %1647 = vmatpush.msra.mxu0 0.0
    %1648 = vmatpush.msra.mxu0 0.0
    %v1649 = vand.u32 %v354, 4294901760
    %1650 = vmatpush.msra.mxu0 %v1649
    %v1651 = vand.u32 %v353, 4294901760
    %1652 = vmatpush.msra.mxu0 %v1651
    %v1653 = vand.u32 %v352, 4294901760
    %1654 = vmatpush.msra.mxu0 %v1653
    %v1655 = vand.u32 %v351, 4294901760
    %1656 = vmatpush.msra.mxu0 %v1655
    %v1657 = vand.u32 %v1475, 4294901760
    %1658 = vmatmul.f32.gmra.mxu0 %v1657
    %v1659 = vpop.f32.mrf.mxu0
    %v1660 = vadd.f32 %v1635, %v1659
    %1661 = vdwg.mxu0
    %v1663 = vrot.slane %v1660, 4
    %v1664 = vrot.slane %v1660, 5
    %v1667 = vadd.f32 %v345, %v1663
    %v1668 = vadd.f32 %v349, %v1664
    %v1669 = vxor.u32 %v1667, 2147483648
    %v1670 = vxor.u32 %v1668, 2147483648
    %v1671 = vmul.f32 %v1669, 1.442695
    %v1672 = vpow.pop %v1671
    %v1673 = vmul.f32 %v1670, 1.442695
    %v1674 = vpow.pop %v1673
    %v1675 = vadd.f32 %v1672, 1.0
    %v1676 = vadd.f32 %v1674, 1.0
    %v1677 = vrcp.pop %v1675
    %v1678 = vmul.f32 %v1675, %v1677
    %v1679 = vsub.f32 1.0, %v1678
    %v1680 = vmul.f32 %v1677, %v1679
    %v1681 = vadd.f32 %v1677, %v1680
    %vm1682 = vweird.f32 %v1675
    %vm1683 = vweird.f32 %v1677
    %vm1684 = vmor %vm1682, %vm1683
    %v1685 = vsel %vm1684, %v1677, %v1681
    %v1686 = vand.u32 2147483647, %v1675
    %vm1687 = vcmp.eq.f32.partialorder %v1686, 8.507059e+37
    %v1688 = vand.u32 %v1675, 2147483648
    %v1689 = vor.u32 1.1754944e-38, %v1688
    %v1690 = vsel %vm1687, %v1689, %v1685
    %v1691 = vmul.f32 1.0, %v1690
    %v1692 = vrcp.pop %v1676
    %v1693 = vmul.f32 %v1676, %v1692
    %v1694 = vsub.f32 1.0, %v1693
    %v1695 = vmul.f32 %v1692, %v1694
    %v1696 = vadd.f32 %v1692, %v1695
    %vm1697 = vweird.f32 %v1676
    %vm1698 = vweird.f32 %v1692
    %vm1699 = vmor %vm1697, %vm1698
    %v1700 = vsel %vm1699, %v1692, %v1696
    %v1701 = vand.u32 2147483647, %v1676
    %vm1702 = vcmp.eq.f32.partialorder %v1701, 8.507059e+37
    %v1703 = vand.u32 %v1676, 2147483648
    %v1704 = vor.u32 1.1754944e-38, %v1703
    %v1705 = vsel %vm1702, %v1704, %v1700
    %v1706 = vmul.f32 1.0, %v1705
    %v1707 = vtanh.pop %v1667
    %v1708 = vtanh.pop %v1668
    %v1711 = vrot.slane %v1454, 7
    %v1712 = vrot.slane %v1455, 7
    %v1715 = vmul.f32 %v1691, %v1711
    %v1716 = vmul.f32 %v1706, %v1712
    %1719 = vrot.lane.b32.xlu0 %v1707, 64
    %v1720 = vpop.permute.xlu0 %1719
    %1721 = vrot.lane.b32.xlu0 %v1708, 64
    %v1722 = vpop.permute.xlu0 %1721
    %v1725 = vmul.f32 %v1691, %v1720
    %v1726 = vmul.f32 %v1706, %v1722
    %1729 = vrot.lane.b32.xlu0 %v1725, 32
    %v1730 = vpop.permute.xlu0 %1729
    %1731 = vrot.lane.b32.xlu0 %v1726, 32
    %v1732 = vpop.permute.xlu0 %1731
    %v1735 = vadd.f32 %v1715, %v1730
    %v1736 = vadd.f32 %v1716, %v1732
    %v1737 = vtanh.pop %v1735
    %v1738 = vtanh.pop %v1736
    %1741 = vrot.lane.b32.xlu0 %v1737, 64
    %v1742 = vpop.permute.xlu0 %1741
    %1743 = vrot.lane.b32.xlu0 %v1738, 64
    %v1744 = vpop.permute.xlu0 %1743
    %v1747 = vmul.f32 %v1691, %v1742
    %v1748 = vmul.f32 %v1706, %v1744
    %v1751 = vrot.slane %v1747, 4
    %v1752 = vrot.slane %v1748, 3
    %v1753 = vsel %vm630, %v1752, %v1751
    %1754 = vrot.lane.b32.xlu0 %v1753, 32
    %v1755 = vpop.permute.xlu0 %1754
    %v1756 = vsel %vm128, %v1755, 0
    %1758 = vmatpush.msra.mxu0 0.0
    %1759 = vmatpush.msra.mxu0 0.0
    %1760 = vmatpush.msra.mxu0 0.0
    %1761 = vmatpush.msra.mxu0 0.0
    %1762 = vmatpush.msra.mxu0 0.0
    %1763 = vmatpush.msra.mxu0 0.0
    %1764 = vmatpush.msra.mxu0 0.0
    %1765 = vmatpush.msra.mxu0 0.0
    %1766 = vmatpush.msra.mxu0 0.0
    %1767 = vmatpush.msra.mxu0 0.0
    %1768 = vmatpush.msra.mxu0 0.0
    %1769 = vmatpush.msra.mxu0 0.0
    %v1770 = vand.u32 %v354, 4294901760
    %1771 = vmatpush.msra.mxu0 %v1770
    %v1772 = vand.u32 %v353, 4294901760
    %1773 = vmatpush.msra.mxu0 %v1772
    %v1774 = vand.u32 %v352, 4294901760
    %1775 = vmatpush.msra.mxu0 %v1774
    %v1776 = vand.u32 %v351, 4294901760
    %1777 = vmatpush.msra.mxu0 %v1776
    %v1778 = vand.u32 %v1756, 4294901760
    %v1779 = vsub.f32 %v1756, %v1778
    %v1780 = vand.u32 %v1779, 4294901760
    %v1781 = vsub.f32 %v1779, %v1780
    %v1782 = vand.u32 %v1781, 4294901760
    %1783 = vmatmul.f32.gmra.mxu0 %v1782
    %v1784 = vpop.f32.mrf.mxu0
    %v1785 = vadd.f32 0.0, %v1784
    %1786 = vdwg.mxu0
    %1787 = vmatpush.msra.mxu0 0.0
    %1788 = vmatpush.msra.mxu0 0.0
    %1789 = vmatpush.msra.mxu0 0.0
    %1790 = vmatpush.msra.mxu0 0.0
    %1791 = vmatpush.msra.mxu0 0.0
    %1792 = vmatpush.msra.mxu0 0.0
    %1793 = vmatpush.msra.mxu0 0.0
    %1794 = vmatpush.msra.mxu0 0.0
    %1795 = vmatpush.msra.mxu0 0.0
    %1796 = vmatpush.msra.mxu0 0.0
    %1797 = vmatpush.msra.mxu0 0.0
    %1798 = vmatpush.msra.mxu0 0.0
    %v1799 = vand.u32 %v354, 4294901760
    %v1800 = vsub.f32 %v354, %v1799
    %v1801 = vand.u32 %v1800, 4294901760
    %v1802 = vsub.f32 %v1800, %v1801
    %v1803 = vand.u32 %v1802, 4294901760
    %1804 = vmatpush.msra.mxu0 %v1803
    %v1805 = vand.u32 %v353, 4294901760
    %v1806 = vsub.f32 %v353, %v1805
    %v1807 = vand.u32 %v1806, 4294901760
    %v1808 = vsub.f32 %v1806, %v1807
    %v1809 = vand.u32 %v1808, 4294901760
    %1810 = vmatpush.msra.mxu0 %v1809
    %v1811 = vand.u32 %v352, 4294901760
    %v1812 = vsub.f32 %v352, %v1811
    %v1813 = vand.u32 %v1812, 4294901760
    %v1814 = vsub.f32 %v1812, %v1813
    %v1815 = vand.u32 %v1814, 4294901760
    %1816 = vmatpush.msra.mxu0 %v1815
    %v1817 = vand.u32 %v351, 4294901760
    %v1818 = vsub.f32 %v351, %v1817
    %v1819 = vand.u32 %v1818, 4294901760
    %v1820 = vsub.f32 %v1818, %v1819
    %v1821 = vand.u32 %v1820, 4294901760
    %1822 = vmatpush.msra.mxu0 %v1821
    %v1823 = vand.u32 %v1756, 4294901760
    %1824 = vmatmul.f32.gmra.mxu0 %v1823
    %v1825 = vpop.f32.mrf.mxu0
    %v1826 = vadd.f32 %v1785, %v1825
    %1827 = vdwg.mxu0
    %1828 = vmatpush.msra.mxu0 0.0
    %1829 = vmatpush.msra.mxu0 0.0
    %1830 = vmatpush.msra.mxu0 0.0
    %1831 = vmatpush.msra.mxu0 0.0
    %1832 = vmatpush.msra.mxu0 0.0
    %1833 = vmatpush.msra.mxu0 0.0
    %1834 = vmatpush.msra.mxu0 0.0
    %1835 = vmatpush.msra.mxu0 0.0
    %1836 = vmatpush.msra.mxu0 0.0
    %1837 = vmatpush.msra.mxu0 0.0
    %1838 = vmatpush.msra.mxu0 0.0
    %1839 = vmatpush.msra.mxu0 0.0
    %v1840 = vand.u32 %v354, 4294901760
    %v1841 = vsub.f32 %v354, %v1840
    %1842 = vmatpush.msra.mxu0 %v1841
    %v1843 = vand.u32 %v353, 4294901760
    %v1844 = vsub.f32 %v353, %v1843
    %1845 = vmatpush.msra.mxu0 %v1844
    %v1846 = vand.u32 %v352, 4294901760
    %v1847 = vsub.f32 %v352, %v1846
    %1848 = vmatpush.msra.mxu0 %v1847
    %v1849 = vand.u32 %v351, 4294901760
    %v1850 = vsub.f32 %v351, %v1849
    %1851 = vmatpush.msra.mxu0 %v1850
    %v1852 = vand.u32 %v1756, 4294901760
    %v1853 = vsub.f32 %v1756, %v1852
    %1854 = vmatmul.f32.gmra.mxu0 %v1853
    %v1855 = vpop.f32.mrf.mxu0
    %v1856 = vadd.f32 %v1826, %v1855
    %1857 = vdwg.mxu0
    %1858 = vmatpush.msra.mxu0 0.0
    %1859 = vmatpush.msra.mxu0 0.0
    %1860 = vmatpush.msra.mxu0 0.0
    %1861 = vmatpush.msra.mxu0 0.0
    %1862 = vmatpush.msra.mxu0 0.0
    %1863 = vmatpush.msra.mxu0 0.0
    %1864 = vmatpush.msra.mxu0 0.0
    %1865 = vmatpush.msra.mxu0 0.0
    %1866 = vmatpush.msra.mxu0 0.0
    %1867 = vmatpush.msra.mxu0 0.0
    %1868 = vmatpush.msra.mxu0 0.0
    %1869 = vmatpush.msra.mxu0 0.0
    %v1870 = vand.u32 %v354, 4294901760
    %1871 = vmatpush.msra.mxu0 %v1870
    %v1872 = vand.u32 %v353, 4294901760
    %1873 = vmatpush.msra.mxu0 %v1872
    %v1874 = vand.u32 %v352, 4294901760
    %1875 = vmatpush.msra.mxu0 %v1874
    %v1876 = vand.u32 %v351, 4294901760
    %1877 = vmatpush.msra.mxu0 %v1876
    %v1878 = vand.u32 %v1756, 4294901760
    %v1879 = vsub.f32 %v1756, %v1878
    %v1880 = vand.u32 %v1879, 4294901760
    %1881 = vmatmul.f32.gmra.mxu0 %v1880
    %v1882 = vpop.f32.mrf.mxu0
    %v1883 = vadd.f32 %v1856, %v1882
    %1884 = vdwg.mxu0
    %1885 = vmatpush.msra.mxu0 0.0
    %1886 = vmatpush.msra.mxu0 0.0
    %1887 = vmatpush.msra.mxu0 0.0
    %1888 = vmatpush.msra.mxu0 0.0
    %1889 = vmatpush.msra.mxu0 0.0
    %1890 = vmatpush.msra.mxu0 0.0
    %1891 = vmatpush.msra.mxu0 0.0
    %1892 = vmatpush.msra.mxu0 0.0
    %1893 = vmatpush.msra.mxu0 0.0
    %1894 = vmatpush.msra.mxu0 0.0
    %1895 = vmatpush.msra.mxu0 0.0
    %1896 = vmatpush.msra.mxu0 0.0
    %v1897 = vand.u32 %v354, 4294901760
    %v1898 = vsub.f32 %v354, %v1897
    %v1899 = vand.u32 %v1898, 4294901760
    %1900 = vmatpush.msra.mxu0 %v1899
    %v1901 = vand.u32 %v353, 4294901760
    %v1902 = vsub.f32 %v353, %v1901
    %v1903 = vand.u32 %v1902, 4294901760
    %1904 = vmatpush.msra.mxu0 %v1903
    %v1905 = vand.u32 %v352, 4294901760
    %v1906 = vsub.f32 %v352, %v1905
    %v1907 = vand.u32 %v1906, 4294901760
    %1908 = vmatpush.msra.mxu0 %v1907
    %v1909 = vand.u32 %v351, 4294901760
    %v1910 = vsub.f32 %v351, %v1909
    %v1911 = vand.u32 %v1910, 4294901760
    %1912 = vmatpush.msra.mxu0 %v1911
    %v1913 = vand.u32 %v1756, 4294901760
    %1914 = vmatmul.f32.gmra.mxu0 %v1913
    %v1915 = vpop.f32.mrf.mxu0
    %v1916 = vadd.f32 %v1883, %v1915
    %1917 = vdwg.mxu0
    %1918 = vmatpush.msra.mxu0 0.0
    %1919 = vmatpush.msra.mxu0 0.0
    %1920 = vmatpush.msra.mxu0 0.0
    %1921 = vmatpush.msra.mxu0 0.0
    %1922 = vmatpush.msra.mxu0 0.0
    %1923 = vmatpush.msra.mxu0 0.0
    %1924 = vmatpush.msra.mxu0 0.0
    %1925 = vmatpush.msra.mxu0 0.0
    %1926 = vmatpush.msra.mxu0 0.0
    %1927 = vmatpush.msra.mxu0 0.0
    %1928 = vmatpush.msra.mxu0 0.0
    %1929 = vmatpush.msra.mxu0 0.0
    %v1930 = vand.u32 %v354, 4294901760
    %1931 = vmatpush.msra.mxu0 %v1930
    %v1932 = vand.u32 %v353, 4294901760
    %1933 = vmatpush.msra.mxu0 %v1932
    %v1934 = vand.u32 %v352, 4294901760
    %1935 = vmatpush.msra.mxu0 %v1934
    %v1936 = vand.u32 %v351, 4294901760
    %1937 = vmatpush.msra.mxu0 %v1936
    %v1938 = vand.u32 %v1756, 4294901760
    %1939 = vmatmul.f32.gmra.mxu0 %v1938
    %v1940 = vpop.f32.mrf.mxu0
    %v1941 = vadd.f32 %v1916, %v1940
    %1942 = vdwg.mxu0
    %v1944 = vrot.slane %v1941, 3
    %v1945 = vrot.slane %v1941, 4
    %v1948 = vadd.f32 %v345, %v1944
    %v1949 = vadd.f32 %v349, %v1945
    %v1950 = vxor.u32 %v1948, 2147483648
    %v1951 = vxor.u32 %v1949, 2147483648
    %v1952 = vmul.f32 %v1950, 1.442695
    %v1953 = vpow.pop %v1952
    %v1954 = vmul.f32 %v1951, 1.442695
    %v1955 = vpow.pop %v1954
    %v1956 = vadd.f32 %v1953, 1.0
    %v1957 = vadd.f32 %v1955, 1.0
    %v1958 = vrcp.pop %v1956
    %v1959 = vmul.f32 %v1956, %v1958
    %v1960 = vsub.f32 1.0, %v1959
    %v1961 = vmul.f32 %v1958, %v1960
    %v1962 = vadd.f32 %v1958, %v1961
    %vm1963 = vweird.f32 %v1956
    %vm1964 = vweird.f32 %v1958
    %vm1965 = vmor %vm1963, %vm1964
    %v1966 = vsel %vm1965, %v1958, %v1962
    %v1967 = vand.u32 2147483647, %v1956
    %vm1968 = vcmp.eq.f32.partialorder %v1967, 8.507059e+37
    %v1969 = vand.u32 %v1956, 2147483648
    %v1970 = vor.u32 1.1754944e-38, %v1969
    %v1971 = vsel %vm1968, %v1970, %v1966
    %v1972 = vmul.f32 1.0, %v1971
    %v1973 = vrcp.pop %v1957
    %v1974 = vmul.f32 %v1957, %v1973
    %v1975 = vsub.f32 1.0, %v1974
    %v1976 = vmul.f32 %v1973, %v1975
    %v1977 = vadd.f32 %v1973, %v1976
    %vm1978 = vweird.f32 %v1957
    %vm1979 = vweird.f32 %v1973
    %vm1980 = vmor %vm1978, %vm1979
    %v1981 = vsel %vm1980, %v1973, %v1977
    %v1982 = vand.u32 2147483647, %v1957
    %vm1983 = vcmp.eq.f32.partialorder %v1982, 8.507059e+37
    %v1984 = vand.u32 %v1957, 2147483648
    %v1985 = vor.u32 1.1754944e-38, %v1984
    %v1986 = vsel %vm1983, %v1985, %v1981
    %v1987 = vmul.f32 1.0, %v1986
    %v1988 = vtanh.pop %v1948
    %v1989 = vtanh.pop %v1949
    %v1992 = vrot.slane %v1735, 7
    %v1993 = vrot.slane %v1736, 7
    %v1996 = vmul.f32 %v1972, %v1992
    %v1997 = vmul.f32 %v1987, %v1993
    %2000 = vrot.lane.b32.xlu0 %v1988, 64
    %v2001 = vpop.permute.xlu0 %2000
    %2002 = vrot.lane.b32.xlu0 %v1989, 64
    %v2003 = vpop.permute.xlu0 %2002
    %v2006 = vmul.f32 %v1972, %v2001
    %v2007 = vmul.f32 %v1987, %v2003
    %2010 = vrot.lane.b32.xlu0 %v2006, 32
    %v2011 = vpop.permute.xlu0 %2010
    %2012 = vrot.lane.b32.xlu0 %v2007, 32
    %v2013 = vpop.permute.xlu0 %2012
    %v2016 = vadd.f32 %v1996, %v2011
    %v2017 = vadd.f32 %v1997, %v2013
    %v2018 = vtanh.pop %v2016
    %v2019 = vtanh.pop %v2017
    %2022 = vrot.lane.b32.xlu0 %v2018, 64
    %v2023 = vpop.permute.xlu0 %2022
    %2024 = vrot.lane.b32.xlu0 %v2019, 64
    %v2025 = vpop.permute.xlu0 %2024
    %v2028 = vmul.f32 %v1972, %v2023
    %v2029 = vmul.f32 %v1987, %v2025
    %v2032 = vrot.slane %v2028, 5
    %v2033 = vrot.slane %v2029, 4
    %v2034 = vsel %vm630, %v2033, %v2032
    %2035 = vrot.lane.b32.xlu0 %v2034, 32
    %v2036 = vpop.permute.xlu0 %2035
    %v2037 = vsel %vm128, %v2036, 0
    %2039 = vmatpush.msra.mxu0 0.0
    %2040 = vmatpush.msra.mxu0 0.0
    %2041 = vmatpush.msra.mxu0 0.0
    %2042 = vmatpush.msra.mxu0 0.0
    %2043 = vmatpush.msra.mxu0 0.0
    %2044 = vmatpush.msra.mxu0 0.0
    %2045 = vmatpush.msra.mxu0 0.0
    %2046 = vmatpush.msra.mxu0 0.0
    %2047 = vmatpush.msra.mxu0 0.0
    %2048 = vmatpush.msra.mxu0 0.0
    %2049 = vmatpush.msra.mxu0 0.0
    %2050 = vmatpush.msra.mxu0 0.0
    %v2051 = vand.u32 %v354, 4294901760
    %2052 = vmatpush.msra.mxu0 %v2051
    %v2053 = vand.u32 %v353, 4294901760
    %2054 = vmatpush.msra.mxu0 %v2053
    %v2055 = vand.u32 %v352, 4294901760
    %2056 = vmatpush.msra.mxu0 %v2055
    %v2057 = vand.u32 %v351, 4294901760
    %2058 = vmatpush.msra.mxu0 %v2057
    %v2059 = vand.u32 %v2037, 4294901760
    %v2060 = vsub.f32 %v2037, %v2059
    %v2061 = vand.u32 %v2060, 4294901760
    %v2062 = vsub.f32 %v2060, %v2061
    %v2063 = vand.u32 %v2062, 4294901760
    %2064 = vmatmul.f32.gmra.mxu0 %v2063
    %v2065 = vpop.f32.mrf.mxu0
    %v2066 = vadd.f32 0.0, %v2065
    %2067 = vdwg.mxu0
    %2068 = vmatpush.msra.mxu0 0.0
    %2069 = vmatpush.msra.mxu0 0.0
    %2070 = vmatpush.msra.mxu0 0.0
    %2071 = vmatpush.msra.mxu0 0.0
    %2072 = vmatpush.msra.mxu0 0.0
    %2073 = vmatpush.msra.mxu0 0.0
    %2074 = vmatpush.msra.mxu0 0.0
    %2075 = vmatpush.msra.mxu0 0.0
    %2076 = vmatpush.msra.mxu0 0.0
    %2077 = vmatpush.msra.mxu0 0.0
    %2078 = vmatpush.msra.mxu0 0.0
    %2079 = vmatpush.msra.mxu0 0.0
    %v2080 = vand.u32 %v354, 4294901760
    %v2081 = vsub.f32 %v354, %v2080
    %v2082 = vand.u32 %v2081, 4294901760
    %v2083 = vsub.f32 %v2081, %v2082
    %v2084 = vand.u32 %v2083, 4294901760
    %2085 = vmatpush.msra.mxu0 %v2084
    %v2086 = vand.u32 %v353, 4294901760
    %v2087 = vsub.f32 %v353, %v2086
    %v2088 = vand.u32 %v2087, 4294901760
    %v2089 = vsub.f32 %v2087, %v2088
    %v2090 = vand.u32 %v2089, 4294901760
    %2091 = vmatpush.msra.mxu0 %v2090
    %v2092 = vand.u32 %v352, 4294901760
    %v2093 = vsub.f32 %v352, %v2092
    %v2094 = vand.u32 %v2093, 4294901760
    %v2095 = vsub.f32 %v2093, %v2094
    %v2096 = vand.u32 %v2095, 4294901760
    %2097 = vmatpush.msra.mxu0 %v2096
    %v2098 = vand.u32 %v351, 4294901760
    %v2099 = vsub.f32 %v351, %v2098
    %v2100 = vand.u32 %v2099, 4294901760
    %v2101 = vsub.f32 %v2099, %v2100
    %v2102 = vand.u32 %v2101, 4294901760
    %2103 = vmatpush.msra.mxu0 %v2102
    %v2104 = vand.u32 %v2037, 4294901760
    %2105 = vmatmul.f32.gmra.mxu0 %v2104
    %v2106 = vpop.f32.mrf.mxu0
    %v2107 = vadd.f32 %v2066, %v2106
    %2108 = vdwg.mxu0
    %2109 = vmatpush.msra.mxu0 0.0
    %2110 = vmatpush.msra.mxu0 0.0
    %2111 = vmatpush.msra.mxu0 0.0
    %2112 = vmatpush.msra.mxu0 0.0
    %2113 = vmatpush.msra.mxu0 0.0
    %2114 = vmatpush.msra.mxu0 0.0
    %2115 = vmatpush.msra.mxu0 0.0
    %2116 = vmatpush.msra.mxu0 0.0
    %2117 = vmatpush.msra.mxu0 0.0
    %2118 = vmatpush.msra.mxu0 0.0
    %2119 = vmatpush.msra.mxu0 0.0
    %2120 = vmatpush.msra.mxu0 0.0
    %v2121 = vand.u32 %v354, 4294901760
    %v2122 = vsub.f32 %v354, %v2121
    %2123 = vmatpush.msra.mxu0 %v2122
    %v2124 = vand.u32 %v353, 4294901760
    %v2125 = vsub.f32 %v353, %v2124
    %2126 = vmatpush.msra.mxu0 %v2125
    %v2127 = vand.u32 %v352, 4294901760
    %v2128 = vsub.f32 %v352, %v2127
    %2129 = vmatpush.msra.mxu0 %v2128
    %v2130 = vand.u32 %v351, 4294901760
    %v2131 = vsub.f32 %v351, %v2130
    %2132 = vmatpush.msra.mxu0 %v2131
    %v2133 = vand.u32 %v2037, 4294901760
    %v2134 = vsub.f32 %v2037, %v2133
    %2135 = vmatmul.f32.gmra.mxu0 %v2134
    %v2136 = vpop.f32.mrf.mxu0
    %v2137 = vadd.f32 %v2107, %v2136
    %2138 = vdwg.mxu0
    %2139 = vmatpush.msra.mxu0 0.0
    %2140 = vmatpush.msra.mxu0 0.0
    %2141 = vmatpush.msra.mxu0 0.0
    %2142 = vmatpush.msra.mxu0 0.0
    %2143 = vmatpush.msra.mxu0 0.0
    %2144 = vmatpush.msra.mxu0 0.0
    %2145 = vmatpush.msra.mxu0 0.0
    %2146 = vmatpush.msra.mxu0 0.0
    %2147 = vmatpush.msra.mxu0 0.0
    %2148 = vmatpush.msra.mxu0 0.0
    %2149 = vmatpush.msra.mxu0 0.0
    %2150 = vmatpush.msra.mxu0 0.0
    %v2151 = vand.u32 %v354, 4294901760
    %2152 = vmatpush.msra.mxu0 %v2151
    %v2153 = vand.u32 %v353, 4294901760
    %2154 = vmatpush.msra.mxu0 %v2153
    %v2155 = vand.u32 %v352, 4294901760
    %2156 = vmatpush.msra.mxu0 %v2155
    %v2157 = vand.u32 %v351, 4294901760
    %2158 = vmatpush.msra.mxu0 %v2157
    %v2159 = vand.u32 %v2037, 4294901760
    %v2160 = vsub.f32 %v2037, %v2159
    %v2161 = vand.u32 %v2160, 4294901760
    %2162 = vmatmul.f32.gmra.mxu0 %v2161
    %v2163 = vpop.f32.mrf.mxu0
    %v2164 = vadd.f32 %v2137, %v2163
    %2165 = vdwg.mxu0
    %2166 = vmatpush.msra.mxu0 0.0
    %2167 = vmatpush.msra.mxu0 0.0
    %2168 = vmatpush.msra.mxu0 0.0
    %2169 = vmatpush.msra.mxu0 0.0
    %2170 = vmatpush.msra.mxu0 0.0
    %2171 = vmatpush.msra.mxu0 0.0
    %2172 = vmatpush.msra.mxu0 0.0
    %2173 = vmatpush.msra.mxu0 0.0
    %2174 = vmatpush.msra.mxu0 0.0
    %2175 = vmatpush.msra.mxu0 0.0
    %2176 = vmatpush.msra.mxu0 0.0
    %2177 = vmatpush.msra.mxu0 0.0
    %v2178 = vand.u32 %v354, 4294901760
    %v2179 = vsub.f32 %v354, %v2178
    %v2180 = vand.u32 %v2179, 4294901760
    %2181 = vmatpush.msra.mxu0 %v2180
    %v2182 = vand.u32 %v353, 4294901760
    %v2183 = vsub.f32 %v353, %v2182
    %v2184 = vand.u32 %v2183, 4294901760
    %2185 = vmatpush.msra.mxu0 %v2184
    %v2186 = vand.u32 %v352, 4294901760
    %v2187 = vsub.f32 %v352, %v2186
    %v2188 = vand.u32 %v2187, 4294901760
    %2189 = vmatpush.msra.mxu0 %v2188
    %v2190 = vand.u32 %v351, 4294901760
    %v2191 = vsub.f32 %v351, %v2190
    %v2192 = vand.u32 %v2191, 4294901760
    %2193 = vmatpush.msra.mxu0 %v2192
    %v2194 = vand.u32 %v2037, 4294901760
    %2195 = vmatmul.f32.gmra.mxu0 %v2194
    %v2196 = vpop.f32.mrf.mxu0
    %v2197 = vadd.f32 %v2164, %v2196
    %2198 = vdwg.mxu0
    %2199 = vmatpush.msra.mxu0 0.0
    %2200 = vmatpush.msra.mxu0 0.0
    %2201 = vmatpush.msra.mxu0 0.0
    %2202 = vmatpush.msra.mxu0 0.0
    %2203 = vmatpush.msra.mxu0 0.0
    %2204 = vmatpush.msra.mxu0 0.0
    %2205 = vmatpush.msra.mxu0 0.0
    %2206 = vmatpush.msra.mxu0 0.0
    %2207 = vmatpush.msra.mxu0 0.0
    %2208 = vmatpush.msra.mxu0 0.0
    %2209 = vmatpush.msra.mxu0 0.0
    %2210 = vmatpush.msra.mxu0 0.0
    %v2211 = vand.u32 %v354, 4294901760
    %2212 = vmatpush.msra.mxu0 %v2211
    %v2213 = vand.u32 %v353, 4294901760
    %2214 = vmatpush.msra.mxu0 %v2213
    %v2215 = vand.u32 %v352, 4294901760
    %2216 = vmatpush.msra.mxu0 %v2215
    %v2217 = vand.u32 %v351, 4294901760
    %2218 = vmatpush.msra.mxu0 %v2217
    %v2219 = vand.u32 %v2037, 4294901760
    %2220 = vmatmul.f32.gmra.mxu0 %v2219
    %v2221 = vpop.f32.mrf.mxu0
    %v2222 = vadd.f32 %v2197, %v2221
    %2223 = vdwg.mxu0
    %v2225 = vrot.slane %v2222, 2
    %v2226 = vrot.slane %v2222, 3
    %v2229 = vadd.f32 %v345, %v2225
    %v2230 = vadd.f32 %v349, %v2226
    %v2231 = vxor.u32 %v2229, 2147483648
    %v2232 = vxor.u32 %v2230, 2147483648
    %v2233 = vmul.f32 %v2231, 1.442695
    %v2234 = vpow.pop %v2233
    %v2235 = vmul.f32 %v2232, 1.442695
    %v2236 = vpow.pop %v2235
    %v2237 = vadd.f32 %v2234, 1.0
    %v2238 = vadd.f32 %v2236, 1.0
    %v2239 = vrcp.pop %v2237
    %v2240 = vmul.f32 %v2237, %v2239
    %v2241 = vsub.f32 1.0, %v2240
    %v2242 = vmul.f32 %v2239, %v2241
    %v2243 = vadd.f32 %v2239, %v2242
    %vm2244 = vweird.f32 %v2237
    %vm2245 = vweird.f32 %v2239
    %vm2246 = vmor %vm2244, %vm2245
    %v2247 = vsel %vm2246, %v2239, %v2243
    %v2248 = vand.u32 2147483647, %v2237
    %vm2249 = vcmp.eq.f32.partialorder %v2248, 8.507059e+37
    %v2250 = vand.u32 %v2237, 2147483648
    %v2251 = vor.u32 1.1754944e-38, %v2250
    %v2252 = vsel %vm2249, %v2251, %v2247
    %v2253 = vmul.f32 1.0, %v2252
    %v2254 = vrcp.pop %v2238
    %v2255 = vmul.f32 %v2238, %v2254
    %v2256 = vsub.f32 1.0, %v2255
    %v2257 = vmul.f32 %v2254, %v2256
    %v2258 = vadd.f32 %v2254, %v2257
    %vm2259 = vweird.f32 %v2238
    %vm2260 = vweird.f32 %v2254
    %vm2261 = vmor %vm2259, %vm2260
    %v2262 = vsel %vm2261, %v2254, %v2258
    %v2263 = vand.u32 2147483647, %v2238
    %vm2264 = vcmp.eq.f32.partialorder %v2263, 8.507059e+37
    %v2265 = vand.u32 %v2238, 2147483648
    %v2266 = vor.u32 1.1754944e-38, %v2265
    %v2267 = vsel %vm2264, %v2266, %v2262
    %v2268 = vmul.f32 1.0, %v2267
    %v2269 = vtanh.pop %v2229
    %v2270 = vtanh.pop %v2230
    %v2273 = vrot.slane %v2016, 7
    %v2274 = vrot.slane %v2017, 7
    %v2277 = vmul.f32 %v2253, %v2273
    %v2278 = vmul.f32 %v2268, %v2274
    %2281 = vrot.lane.b32.xlu0 %v2269, 64
    %v2282 = vpop.permute.xlu0 %2281
    %2283 = vrot.lane.b32.xlu0 %v2270, 64
    %v2284 = vpop.permute.xlu0 %2283
    %v2287 = vmul.f32 %v2253, %v2282
    %v2288 = vmul.f32 %v2268, %v2284
    %2291 = vrot.lane.b32.xlu0 %v2287, 32
    %v2292 = vpop.permute.xlu0 %2291
    %2293 = vrot.lane.b32.xlu0 %v2288, 32
    %v2294 = vpop.permute.xlu0 %2293
    %v2297 = vadd.f32 %v2277, %v2292
    %v2298 = vadd.f32 %v2278, %v2294
    %v2299 = vtanh.pop %v2297
    %v2300 = vtanh.pop %v2298
    %2303 = vrot.lane.b32.xlu0 %v2299, 64
    %v2304 = vpop.permute.xlu0 %2303
    %2305 = vrot.lane.b32.xlu0 %v2300, 64
    %v2306 = vpop.permute.xlu0 %2305
    %v2309 = vmul.f32 %v2253, %v2304
    %v2310 = vmul.f32 %v2268, %v2306
    %v2313 = vrot.slane %v2309, 6
    %v2314 = vrot.slane %v2310, 5
    %v2315 = vsel %vm630, %v2314, %v2313
    %2316 = vrot.lane.b32.xlu0 %v2315, 32
    %v2317 = vpop.permute.xlu0 %2316
    %v2318 = vsel %vm128, %v2317, 0
    %2320 = vmatpush.msra.mxu0 0.0
    %2321 = vmatpush.msra.mxu0 0.0
    %2322 = vmatpush.msra.mxu0 0.0
    %2323 = vmatpush.msra.mxu0 0.0
    %2324 = vmatpush.msra.mxu0 0.0
    %2325 = vmatpush.msra.mxu0 0.0
    %2326 = vmatpush.msra.mxu0 0.0
    %2327 = vmatpush.msra.mxu0 0.0
    %2328 = vmatpush.msra.mxu0 0.0
    %2329 = vmatpush.msra.mxu0 0.0
    %2330 = vmatpush.msra.mxu0 0.0
    %2331 = vmatpush.msra.mxu0 0.0
    %v2332 = vand.u32 %v354, 4294901760
    %2333 = vmatpush.msra.mxu0 %v2332
    %v2334 = vand.u32 %v353, 4294901760
    %2335 = vmatpush.msra.mxu0 %v2334
    %v2336 = vand.u32 %v352, 4294901760
    %2337 = vmatpush.msra.mxu0 %v2336
    %v2338 = vand.u32 %v351, 4294901760
    %2339 = vmatpush.msra.mxu0 %v2338
    %v2340 = vand.u32 %v2318, 4294901760
    %v2341 = vsub.f32 %v2318, %v2340
    %v2342 = vand.u32 %v2341, 4294901760
    %v2343 = vsub.f32 %v2341, %v2342
    %v2344 = vand.u32 %v2343, 4294901760
    %2345 = vmatmul.f32.gmra.mxu0 %v2344
    %v2346 = vpop.f32.mrf.mxu0
    %v2347 = vadd.f32 0.0, %v2346
    %2348 = vdwg.mxu0
    %2349 = vmatpush.msra.mxu0 0.0
    %2350 = vmatpush.msra.mxu0 0.0
    %2351 = vmatpush.msra.mxu0 0.0
    %2352 = vmatpush.msra.mxu0 0.0
    %2353 = vmatpush.msra.mxu0 0.0
    %2354 = vmatpush.msra.mxu0 0.0
    %2355 = vmatpush.msra.mxu0 0.0
    %2356 = vmatpush.msra.mxu0 0.0
    %2357 = vmatpush.msra.mxu0 0.0
    %2358 = vmatpush.msra.mxu0 0.0
    %2359 = vmatpush.msra.mxu0 0.0
    %2360 = vmatpush.msra.mxu0 0.0
    %v2361 = vand.u32 %v354, 4294901760
    %v2362 = vsub.f32 %v354, %v2361
    %v2363 = vand.u32 %v2362, 4294901760
    %v2364 = vsub.f32 %v2362, %v2363
    %v2365 = vand.u32 %v2364, 4294901760
    %2366 = vmatpush.msra.mxu0 %v2365
    %v2367 = vand.u32 %v353, 4294901760
    %v2368 = vsub.f32 %v353, %v2367
    %v2369 = vand.u32 %v2368, 4294901760
    %v2370 = vsub.f32 %v2368, %v2369
    %v2371 = vand.u32 %v2370, 4294901760
    %2372 = vmatpush.msra.mxu0 %v2371
    %v2373 = vand.u32 %v352, 4294901760
    %v2374 = vsub.f32 %v352, %v2373
    %v2375 = vand.u32 %v2374, 4294901760
    %v2376 = vsub.f32 %v2374, %v2375
    %v2377 = vand.u32 %v2376, 4294901760
    %2378 = vmatpush.msra.mxu0 %v2377
    %v2379 = vand.u32 %v351, 4294901760
    %v2380 = vsub.f32 %v351, %v2379
    %v2381 = vand.u32 %v2380, 4294901760
    %v2382 = vsub.f32 %v2380, %v2381
    %v2383 = vand.u32 %v2382, 4294901760
    %2384 = vmatpush.msra.mxu0 %v2383
    %v2385 = vand.u32 %v2318, 4294901760
    %2386 = vmatmul.f32.gmra.mxu0 %v2385
    %v2387 = vpop.f32.mrf.mxu0
    %v2388 = vadd.f32 %v2347, %v2387
    %2389 = vdwg.mxu0
    %2390 = vmatpush.msra.mxu0 0.0
    %2391 = vmatpush.msra.mxu0 0.0
    %2392 = vmatpush.msra.mxu0 0.0
    %2393 = vmatpush.msra.mxu0 0.0
    %2394 = vmatpush.msra.mxu0 0.0
    %2395 = vmatpush.msra.mxu0 0.0
    %2396 = vmatpush.msra.mxu0 0.0
    %2397 = vmatpush.msra.mxu0 0.0
    %2398 = vmatpush.msra.mxu0 0.0
    %2399 = vmatpush.msra.mxu0 0.0
    %2400 = vmatpush.msra.mxu0 0.0
    %2401 = vmatpush.msra.mxu0 0.0
    %v2402 = vand.u32 %v354, 4294901760
    %v2403 = vsub.f32 %v354, %v2402
    %2404 = vmatpush.msra.mxu0 %v2403
    %v2405 = vand.u32 %v353, 4294901760
    %v2406 = vsub.f32 %v353, %v2405
    %2407 = vmatpush.msra.mxu0 %v2406
    %v2408 = vand.u32 %v352, 4294901760
    %v2409 = vsub.f32 %v352, %v2408
    %2410 = vmatpush.msra.mxu0 %v2409
    %v2411 = vand.u32 %v351, 4294901760
    %v2412 = vsub.f32 %v351, %v2411
    %2413 = vmatpush.msra.mxu0 %v2412
    %v2414 = vand.u32 %v2318, 4294901760
    %v2415 = vsub.f32 %v2318, %v2414
    %2416 = vmatmul.f32.gmra.mxu0 %v2415
    %v2417 = vpop.f32.mrf.mxu0
    %v2418 = vadd.f32 %v2388, %v2417
    %2419 = vdwg.mxu0
    %2420 = vmatpush.msra.mxu0 0.0
    %2421 = vmatpush.msra.mxu0 0.0
    %2422 = vmatpush.msra.mxu0 0.0
    %2423 = vmatpush.msra.mxu0 0.0
    %2424 = vmatpush.msra.mxu0 0.0
    %2425 = vmatpush.msra.mxu0 0.0
    %2426 = vmatpush.msra.mxu0 0.0
    %2427 = vmatpush.msra.mxu0 0.0
    %2428 = vmatpush.msra.mxu0 0.0
    %2429 = vmatpush.msra.mxu0 0.0
    %2430 = vmatpush.msra.mxu0 0.0
    %2431 = vmatpush.msra.mxu0 0.0
    %v2432 = vand.u32 %v354, 4294901760
    %2433 = vmatpush.msra.mxu0 %v2432
    %v2434 = vand.u32 %v353, 4294901760
    %2435 = vmatpush.msra.mxu0 %v2434
    %v2436 = vand.u32 %v352, 4294901760
    %2437 = vmatpush.msra.mxu0 %v2436
    %v2438 = vand.u32 %v351, 4294901760
    %2439 = vmatpush.msra.mxu0 %v2438
    %v2440 = vand.u32 %v2318, 4294901760
    %v2441 = vsub.f32 %v2318, %v2440
    %v2442 = vand.u32 %v2441, 4294901760
    %2443 = vmatmul.f32.gmra.mxu0 %v2442
    %v2444 = vpop.f32.mrf.mxu0
    %v2445 = vadd.f32 %v2418, %v2444
    %2446 = vdwg.mxu0
    %2447 = vmatpush.msra.mxu0 0.0
    %2448 = vmatpush.msra.mxu0 0.0
    %2449 = vmatpush.msra.mxu0 0.0
    %2450 = vmatpush.msra.mxu0 0.0
    %2451 = vmatpush.msra.mxu0 0.0
    %2452 = vmatpush.msra.mxu0 0.0
    %2453 = vmatpush.msra.mxu0 0.0
    %2454 = vmatpush.msra.mxu0 0.0
    %2455 = vmatpush.msra.mxu0 0.0
    %2456 = vmatpush.msra.mxu0 0.0
    %2457 = vmatpush.msra.mxu0 0.0
    %2458 = vmatpush.msra.mxu0 0.0
    %v2459 = vand.u32 %v354, 4294901760
    %v2460 = vsub.f32 %v354, %v2459
    %v2461 = vand.u32 %v2460, 4294901760
    %2462 = vmatpush.msra.mxu0 %v2461
    %v2463 = vand.u32 %v353, 4294901760
    %v2464 = vsub.f32 %v353, %v2463
    %v2465 = vand.u32 %v2464, 4294901760
    %2466 = vmatpush.msra.mxu0 %v2465
    %v2467 = vand.u32 %v352, 4294901760
    %v2468 = vsub.f32 %v352, %v2467
    %v2469 = vand.u32 %v2468, 4294901760
    %2470 = vmatpush.msra.mxu0 %v2469
    %v2471 = vand.u32 %v351, 4294901760
    %v2472 = vsub.f32 %v351, %v2471
    %v2473 = vand.u32 %v2472, 4294901760
    %2474 = vmatpush.msra.mxu0 %v2473
    %v2475 = vand.u32 %v2318, 4294901760
    %2476 = vmatmul.f32.gmra.mxu0 %v2475
    %v2477 = vpop.f32.mrf.mxu0
    %v2478 = vadd.f32 %v2445, %v2477
    %2479 = vdwg.mxu0
    %2480 = vmatpush.msra.mxu0 0.0
    %2481 = vmatpush.msra.mxu0 0.0
    %2482 = vmatpush.msra.mxu0 0.0
    %2483 = vmatpush.msra.mxu0 0.0
    %2484 = vmatpush.msra.mxu0 0.0
    %2485 = vmatpush.msra.mxu0 0.0
    %2486 = vmatpush.msra.mxu0 0.0
    %2487 = vmatpush.msra.mxu0 0.0
    %2488 = vmatpush.msra.mxu0 0.0
    %2489 = vmatpush.msra.mxu0 0.0
    %2490 = vmatpush.msra.mxu0 0.0
    %2491 = vmatpush.msra.mxu0 0.0
    %v2492 = vand.u32 %v354, 4294901760
    %2493 = vmatpush.msra.mxu0 %v2492
    %v2494 = vand.u32 %v353, 4294901760
    %2495 = vmatpush.msra.mxu0 %v2494
    %v2496 = vand.u32 %v352, 4294901760
    %2497 = vmatpush.msra.mxu0 %v2496
    %v2498 = vand.u32 %v351, 4294901760
    %2499 = vmatpush.msra.mxu0 %v2498
    %v2500 = vand.u32 %v2318, 4294901760
    %2501 = vmatmul.f32.gmra.mxu0 %v2500
    %v2502 = vpop.f32.mrf.mxu0
    %v2503 = vadd.f32 %v2478, %v2502
    %2504 = vdwg.mxu0
    %v2506 = vrot.slane %v2503, 1
    %v2507 = vrot.slane %v2503, 2
    %v2510 = vadd.f32 %v345, %v2506
    %v2511 = vadd.f32 %v349, %v2507
    %v2512 = vxor.u32 %v2510, 2147483648
    %v2513 = vxor.u32 %v2511, 2147483648
    %v2514 = vmul.f32 %v2512, 1.442695
    %v2515 = vpow.pop %v2514
    %v2516 = vmul.f32 %v2513, 1.442695
    %v2517 = vpow.pop %v2516
    %v2518 = vadd.f32 %v2515, 1.0
    %v2519 = vadd.f32 %v2517, 1.0
    %v2520 = vrcp.pop %v2518
    %v2521 = vmul.f32 %v2518, %v2520
    %v2522 = vsub.f32 1.0, %v2521
    %v2523 = vmul.f32 %v2520, %v2522
    %v2524 = vadd.f32 %v2520, %v2523
    %vm2525 = vweird.f32 %v2518
    %vm2526 = vweird.f32 %v2520
    %vm2527 = vmor %vm2525, %vm2526
    %v2528 = vsel %vm2527, %v2520, %v2524
    %v2529 = vand.u32 2147483647, %v2518
    %vm2530 = vcmp.eq.f32.partialorder %v2529, 8.507059e+37
    %v2531 = vand.u32 %v2518, 2147483648
    %v2532 = vor.u32 1.1754944e-38, %v2531
    %v2533 = vsel %vm2530, %v2532, %v2528
    %v2534 = vmul.f32 1.0, %v2533
    %v2535 = vrcp.pop %v2519
    %v2536 = vmul.f32 %v2519, %v2535
    %v2537 = vsub.f32 1.0, %v2536
    %v2538 = vmul.f32 %v2535, %v2537
    %v2539 = vadd.f32 %v2535, %v2538
    %vm2540 = vweird.f32 %v2519
    %vm2541 = vweird.f32 %v2535
    %vm2542 = vmor %vm2540, %vm2541
    %v2543 = vsel %vm2542, %v2535, %v2539
    %v2544 = vand.u32 2147483647, %v2519
    %vm2545 = vcmp.eq.f32.partialorder %v2544, 8.507059e+37
    %v2546 = vand.u32 %v2519, 2147483648
    %v2547 = vor.u32 1.1754944e-38, %v2546
    %v2548 = vsel %vm2545, %v2547, %v2543
    %v2549 = vmul.f32 1.0, %v2548
    %v2550 = vtanh.pop %v2510
    %v2551 = vtanh.pop %v2511
    %v2554 = vrot.slane %v2297, 7
    %v2555 = vrot.slane %v2298, 7
    %v2558 = vmul.f32 %v2534, %v2554
    %v2559 = vmul.f32 %v2549, %v2555
    %2562 = vrot.lane.b32.xlu0 %v2550, 64
    %v2563 = vpop.permute.xlu0 %2562
    %2564 = vrot.lane.b32.xlu0 %v2551, 64
    %v2565 = vpop.permute.xlu0 %2564
    %v2568 = vmul.f32 %v2534, %v2563
    %v2569 = vmul.f32 %v2549, %v2565
    %2572 = vrot.lane.b32.xlu0 %v2568, 32
    %v2573 = vpop.permute.xlu0 %2572
    %2574 = vrot.lane.b32.xlu0 %v2569, 32
    %v2575 = vpop.permute.xlu0 %2574
    %v2578 = vadd.f32 %v2558, %v2573
    %v2579 = vadd.f32 %v2559, %v2575
    %v2580 = vtanh.pop %v2578
    %v2581 = vtanh.pop %v2579
    %2584 = vrot.lane.b32.xlu0 %v2580, 64
    %v2585 = vpop.permute.xlu0 %2584
    %2586 = vrot.lane.b32.xlu0 %v2581, 64
    %v2587 = vpop.permute.xlu0 %2586
    %v2590 = vmul.f32 %v2534, %v2585
    %v2591 = vmul.f32 %v2549, %v2587
    %v2592 = vld [vmem:[#allocation2 + $0x138] sm:$0x7]
    %s2593 = sld [smem:[#allocation6]]
    %v2594 = vld [vmem:[#allocation2 + $0xd8] sm:$0xff]
    %v2595 = vld [vmem:[#allocation2 + $0xe0] sm:$0xff]
    %v2596 = vld [vmem:[#allocation2 + $0xe8] sm:$0xff]
    %v2597 = vld [vmem:[#allocation2 + $0xf0] sm:$0xff]
    %v2598 = vperm.slane %v2592, 0
    %2599 = vmatpush.msra.mxu0 0.0
    %2600 = vmatpush.msra.mxu0 0.0
    %2601 = vmatpush.msra.mxu0 0.0
    %2602 = vmatpush.msra.mxu0 0.0
    %2603 = vmatpush.msra.mxu0 0.0
    %2604 = vmatpush.msra.mxu0 0.0
    %2605 = vmatpush.msra.mxu0 0.0
    %2606 = vmatpush.msra.mxu0 0.0
    %2607 = vmatpush.msra.mxu0 0.0
    %2608 = vmatpush.msra.mxu0 0.0
    %2609 = vmatpush.msra.mxu0 0.0
    %2610 = vmatpush.msra.mxu0 0.0
    %v2611 = vand.u32 %v2597, 4294901760
    %2612 = vmatpush.msra.mxu0 %v2611
    %v2613 = vand.u32 %v2596, 4294901760
    %2614 = vmatpush.msra.mxu0 %v2613
    %v2615 = vand.u32 %v2595, 4294901760
    %2616 = vmatpush.msra.mxu0 %v2615
    %v2617 = vand.u32 %v2594, 4294901760
    %2618 = vmatpush.msra.mxu0 %v2617
    %v2619 = vand.u32 %v130, 4294901760
    %v2620 = vsub.f32 %v130, %v2619
    %v2621 = vand.u32 %v2620, 4294901760
    %v2622 = vsub.f32 %v2620, %v2621
    %v2623 = vand.u32 %v2622, 4294901760
    %2624 = vmatmul.f32.gmra.mxu0 %v2623
    %v2625 = vpop.f32.mrf.mxu0
    %v2626 = vadd.f32 %v2598, %v2625
    %v2627 = vand.u32 %v133, 4294901760
    %v2628 = vsub.f32 %v133, %v2627
    %v2629 = vand.u32 %v2628, 4294901760
    %v2630 = vsub.f32 %v2628, %v2629
    %v2631 = vand.u32 %v2630, 4294901760
    %2632 = vmatmul.f32.gmra.mxu0 %v2631
    %v2633 = vpop.f32.mrf.mxu0
    %v2634 = vadd.f32 %v2598, %v2633
    %2635 = vdwg.mxu0
    %2636 = vmatpush.msra.mxu0 0.0
    %2637 = vmatpush.msra.mxu0 0.0
    %2638 = vmatpush.msra.mxu0 0.0
    %2639 = vmatpush.msra.mxu0 0.0
    %2640 = vmatpush.msra.mxu0 0.0
    %2641 = vmatpush.msra.mxu0 0.0
    %2642 = vmatpush.msra.mxu0 0.0
    %2643 = vmatpush.msra.mxu0 0.0
    %2644 = vmatpush.msra.mxu0 0.0
    %2645 = vmatpush.msra.mxu0 0.0
    %2646 = vmatpush.msra.mxu0 0.0
    %2647 = vmatpush.msra.mxu0 0.0
    %v2648 = vand.u32 %v2597, 4294901760
    %v2649 = vsub.f32 %v2597, %v2648
    %v2650 = vand.u32 %v2649, 4294901760
    %v2651 = vsub.f32 %v2649, %v2650
    %v2652 = vand.u32 %v2651, 4294901760
    %2653 = vmatpush.msra.mxu0 %v2652
    %v2654 = vand.u32 %v2596, 4294901760
    %v2655 = vsub.f32 %v2596, %v2654
    %v2656 = vand.u32 %v2655, 4294901760
    %v2657 = vsub.f32 %v2655, %v2656
    %v2658 = vand.u32 %v2657, 4294901760
    %2659 = vmatpush.msra.mxu0 %v2658
    %v2660 = vand.u32 %v2595, 4294901760
    %v2661 = vsub.f32 %v2595, %v2660
    %v2662 = vand.u32 %v2661, 4294901760
    %v2663 = vsub.f32 %v2661, %v2662
    %v2664 = vand.u32 %v2663, 4294901760
    %2665 = vmatpush.msra.mxu0 %v2664
    %v2666 = vand.u32 %v2594, 4294901760
    %v2667 = vsub.f32 %v2594, %v2666
    %v2668 = vand.u32 %v2667, 4294901760
    %v2669 = vsub.f32 %v2667, %v2668
    %v2670 = vand.u32 %v2669, 4294901760
    %2671 = vmatpush.msra.mxu0 %v2670
    %v2672 = vand.u32 %v130, 4294901760
    %2673 = vmatmul.f32.gmra.mxu0 %v2672
    %v2674 = vpop.f32.mrf.mxu0
    %v2675 = vadd.f32 %v2626, %v2674
    %v2676 = vand.u32 %v133, 4294901760
    %2677 = vmatmul.f32.gmra.mxu0 %v2676
    %v2678 = vpop.f32.mrf.mxu0
    %v2679 = vadd.f32 %v2634, %v2678
    %2680 = vdwg.mxu0
    %2681 = vmatpush.msra.mxu0 0.0
    %2682 = vmatpush.msra.mxu0 0.0
    %2683 = vmatpush.msra.mxu0 0.0
    %2684 = vmatpush.msra.mxu0 0.0
    %2685 = vmatpush.msra.mxu0 0.0
    %2686 = vmatpush.msra.mxu0 0.0
    %2687 = vmatpush.msra.mxu0 0.0
    %2688 = vmatpush.msra.mxu0 0.0
    %2689 = vmatpush.msra.mxu0 0.0
    %2690 = vmatpush.msra.mxu0 0.0
    %2691 = vmatpush.msra.mxu0 0.0
    %2692 = vmatpush.msra.mxu0 0.0
    %v2693 = vand.u32 %v2597, 4294901760
    %v2694 = vsub.f32 %v2597, %v2693
    %2695 = vmatpush.msra.mxu0 %v2694
    %v2696 = vand.u32 %v2596, 4294901760
    %v2697 = vsub.f32 %v2596, %v2696
    %2698 = vmatpush.msra.mxu0 %v2697
    %v2699 = vand.u32 %v2595, 4294901760
    %v2700 = vsub.f32 %v2595, %v2699
    %2701 = vmatpush.msra.mxu0 %v2700
    %v2702 = vand.u32 %v2594, 4294901760
    %v2703 = vsub.f32 %v2594, %v2702
    %2704 = vmatpush.msra.mxu0 %v2703
    %v2705 = vand.u32 %v130, 4294901760
    %v2706 = vsub.f32 %v130, %v2705
    %2707 = vmatmul.f32.gmra.mxu0 %v2706
    %v2708 = vpop.f32.mrf.mxu0
    %v2709 = vadd.f32 %v2675, %v2708
    %v2710 = vand.u32 %v133, 4294901760
    %v2711 = vsub.f32 %v133, %v2710
    %2712 = vmatmul.f32.gmra.mxu0 %v2711
    %v2713 = vpop.f32.mrf.mxu0
    %v2714 = vadd.f32 %v2679, %v2713
    %2715 = vdwg.mxu0
    %2716 = vmatpush.msra.mxu0 0.0
    %2717 = vmatpush.msra.mxu0 0.0
    %2718 = vmatpush.msra.mxu0 0.0
    %2719 = vmatpush.msra.mxu0 0.0
    %2720 = vmatpush.msra.mxu0 0.0
    %2721 = vmatpush.msra.mxu0 0.0
    %2722 = vmatpush.msra.mxu0 0.0
    %2723 = vmatpush.msra.mxu0 0.0
    %2724 = vmatpush.msra.mxu0 0.0
    %2725 = vmatpush.msra.mxu0 0.0
    %2726 = vmatpush.msra.mxu0 0.0
    %2727 = vmatpush.msra.mxu0 0.0
    %v2728 = vand.u32 %v2597, 4294901760
    %2729 = vmatpush.msra.mxu0 %v2728
    %v2730 = vand.u32 %v2596, 4294901760
    %2731 = vmatpush.msra.mxu0 %v2730
    %v2732 = vand.u32 %v2595, 4294901760
    %2733 = vmatpush.msra.mxu0 %v2732
    %v2734 = vand.u32 %v2594, 4294901760
    %2735 = vmatpush.msra.mxu0 %v2734
    %v2736 = vand.u32 %v130, 4294901760
    %v2737 = vsub.f32 %v130, %v2736
    %v2738 = vand.u32 %v2737, 4294901760
    %2739 = vmatmul.f32.gmra.mxu0 %v2738
    %v2740 = vpop.f32.mrf.mxu0
    %v2741 = vadd.f32 %v2709, %v2740
    %v2742 = vand.u32 %v133, 4294901760
    %v2743 = vsub.f32 %v133, %v2742
    %v2744 = vand.u32 %v2743, 4294901760
    %2745 = vmatmul.f32.gmra.mxu0 %v2744
    %v2746 = vpop.f32.mrf.mxu0
    %v2747 = vadd.f32 %v2714, %v2746
    %2748 = vdwg.mxu0
    %2749 = vmatpush.msra.mxu0 0.0
    %2750 = vmatpush.msra.mxu0 0.0
    %2751 = vmatpush.msra.mxu0 0.0
    %2752 = vmatpush.msra.mxu0 0.0
    %2753 = vmatpush.msra.mxu0 0.0
    %2754 = vmatpush.msra.mxu0 0.0
    %2755 = vmatpush.msra.mxu0 0.0
    %2756 = vmatpush.msra.mxu0 0.0
    %2757 = vmatpush.msra.mxu0 0.0
    %2758 = vmatpush.msra.mxu0 0.0
    %2759 = vmatpush.msra.mxu0 0.0
    %2760 = vmatpush.msra.mxu0 0.0
    %v2761 = vand.u32 %v2597, 4294901760
    %v2762 = vsub.f32 %v2597, %v2761
    %v2763 = vand.u32 %v2762, 4294901760
    %2764 = vmatpush.msra.mxu0 %v2763
    %v2765 = vand.u32 %v2596, 4294901760
    %v2766 = vsub.f32 %v2596, %v2765
    %v2767 = vand.u32 %v2766, 4294901760
    %2768 = vmatpush.msra.mxu0 %v2767
    %v2769 = vand.u32 %v2595, 4294901760
    %v2770 = vsub.f32 %v2595, %v2769
    %v2771 = vand.u32 %v2770, 4294901760
    %2772 = vmatpush.msra.mxu0 %v2771
    %v2773 = vand.u32 %v2594, 4294901760
    %v2774 = vsub.f32 %v2594, %v2773
    %v2775 = vand.u32 %v2774, 4294901760
    %2776 = vmatpush.msra.mxu0 %v2775
    %v2777 = vand.u32 %v130, 4294901760
    %2778 = vmatmul.f32.gmra.mxu0 %v2777
    %v2779 = vpop.f32.mrf.mxu0
    %v2780 = vadd.f32 %v2741, %v2779
    %v2781 = vand.u32 %v133, 4294901760
    %2782 = vmatmul.f32.gmra.mxu0 %v2781
    %v2783 = vpop.f32.mrf.mxu0
    %v2784 = vadd.f32 %v2747, %v2783
    %2785 = vdwg.mxu0
    %2786 = vmatpush.msra.mxu0 0.0
    %2787 = vmatpush.msra.mxu0 0.0
    %2788 = vmatpush.msra.mxu0 0.0
    %2789 = vmatpush.msra.mxu0 0.0
    %2790 = vmatpush.msra.mxu0 0.0
    %2791 = vmatpush.msra.mxu0 0.0
    %2792 = vmatpush.msra.mxu0 0.0
    %2793 = vmatpush.msra.mxu0 0.0
    %2794 = vmatpush.msra.mxu0 0.0
    %2795 = vmatpush.msra.mxu0 0.0
    %2796 = vmatpush.msra.mxu0 0.0
    %2797 = vmatpush.msra.mxu0 0.0
    %v2798 = vand.u32 %v2597, 4294901760
    %2799 = vmatpush.msra.mxu0 %v2798
    %v2800 = vand.u32 %v2596, 4294901760
    %2801 = vmatpush.msra.mxu0 %v2800
    %v2802 = vand.u32 %v2595, 4294901760
    %2803 = vmatpush.msra.mxu0 %v2802
    %v2804 = vand.u32 %v2594, 4294901760
    %2805 = vmatpush.msra.mxu0 %v2804
    %v2806 = vand.u32 %v130, 4294901760
    %2807 = vmatmul.f32.gmra.mxu0 %v2806
    %v2808 = vpop.f32.mrf.mxu0
    %v2809 = vadd.f32 %v2780, %v2808
    %v2810 = vand.u32 %v133, 4294901760
    %2811 = vmatmul.f32.gmra.mxu0 %v2810
    %v2812 = vpop.f32.mrf.mxu0
    %v2813 = vadd.f32 %v2784, %v2812
    %2814 = vdwg.mxu0
    %v2815 = vstv %s2593
    %v2816 = vmul.f32 %v2815, %v2809
    %v2817 = vmul.f32 %v2815, %v2813
    %s2818 = ssub.f32 1.0, %s2593
    %v2819 = vmax.f32 %v2809, 0.0
    %v2820 = vmax.f32 %v2813, 0.0
    %v2821 = vstv %s2818
    %v2822 = vmul.f32 %v2821, %v2819
    %v2823 = vmul.f32 %v2821, %v2820
    %2826 = vrot.lane.b32.xlu0 %v2822, 96
    %v2827 = vpop.permute.xlu0 %2826
    %2828 = vrot.lane.b32.xlu0 %v2823, 96
    %v2829 = vpop.permute.xlu0 %2828
    %v2832 = vadd.f32 %v2816, %v2827
    %v2833 = vadd.f32 %v2817, %v2829
    %s2834 = sld [smem:[#allocation6 + $0x1]]
    %v2835 = vld [vmem:[#allocation2 + $0xf8] sm:$0xff]
    %v2836 = vld [vmem:[#allocation2 + $0x100] sm:$0xff]
    %v2837 = vld [vmem:[#allocation2 + $0x108] sm:$0xff]
    %v2838 = vld [vmem:[#allocation2 + $0x110] sm:$0xff]
    %v2839 = vperm.slane %v2592, 1
    %v2841 = vsel %vm128, %v2832, 0
    %v2844 = vsel %vm128, %v2833, 0
    %2846 = vmatpush.msra.mxu0 0.0
    %2847 = vmatpush.msra.mxu0 0.0
    %2848 = vmatpush.msra.mxu0 0.0
    %2849 = vmatpush.msra.mxu0 0.0
    %2850 = vmatpush.msra.mxu0 0.0
    %2851 = vmatpush.msra.mxu0 0.0
    %2852 = vmatpush.msra.mxu0 0.0
    %2853 = vmatpush.msra.mxu0 0.0
    %2854 = vmatpush.msra.mxu0 0.0
    %2855 = vmatpush.msra.mxu0 0.0
    %2856 = vmatpush.msra.mxu0 0.0
    %2857 = vmatpush.msra.mxu0 0.0
    %v2858 = vand.u32 %v2838, 4294901760
    %2859 = vmatpush.msra.mxu0 %v2858
    %v2860 = vand.u32 %v2837, 4294901760
    %2861 = vmatpush.msra.mxu0 %v2860
    %v2862 = vand.u32 %v2836, 4294901760
    %2863 = vmatpush.msra.mxu0 %v2862
    %v2864 = vand.u32 %v2835, 4294901760
    %2865 = vmatpush.msra.mxu0 %v2864
    %v2866 = vand.u32 %v2841, 4294901760
    %v2867 = vsub.f32 %v2841, %v2866
    %v2868 = vand.u32 %v2867, 4294901760
    %v2869 = vsub.f32 %v2867, %v2868
    %v2870 = vand.u32 %v2869, 4294901760
    %2871 = vmatmul.f32.gmra.mxu0 %v2870
    %v2872 = vpop.f32.mrf.mxu0
    %v2873 = vadd.f32 %v2839, %v2872
    %v2874 = vand.u32 %v2844, 4294901760
    %v2875 = vsub.f32 %v2844, %v2874
    %v2876 = vand.u32 %v2875, 4294901760
    %v2877 = vsub.f32 %v2875, %v2876
    %v2878 = vand.u32 %v2877, 4294901760
    %2879 = vmatmul.f32.gmra.mxu0 %v2878
    %v2880 = vpop.f32.mrf.mxu0
    %v2881 = vadd.f32 %v2839, %v2880
    %2882 = vdwg.mxu0
    %2883 = vmatpush.msra.mxu0 0.0
    %2884 = vmatpush.msra.mxu0 0.0
    %2885 = vmatpush.msra.mxu0 0.0
    %2886 = vmatpush.msra.mxu0 0.0
    %2887 = vmatpush.msra.mxu0 0.0
    %2888 = vmatpush.msra.mxu0 0.0
    %2889 = vmatpush.msra.mxu0 0.0
    %2890 = vmatpush.msra.mxu0 0.0
    %2891 = vmatpush.msra.mxu0 0.0
    %2892 = vmatpush.msra.mxu0 0.0
    %2893 = vmatpush.msra.mxu0 0.0
    %2894 = vmatpush.msra.mxu0 0.0
    %v2895 = vand.u32 %v2838, 4294901760
    %v2896 = vsub.f32 %v2838, %v2895
    %v2897 = vand.u32 %v2896, 4294901760
    %v2898 = vsub.f32 %v2896, %v2897
    %v2899 = vand.u32 %v2898, 4294901760
    %2900 = vmatpush.msra.mxu0 %v2899
    %v2901 = vand.u32 %v2837, 4294901760
    %v2902 = vsub.f32 %v2837, %v2901
    %v2903 = vand.u32 %v2902, 4294901760
    %v2904 = vsub.f32 %v2902, %v2903
    %v2905 = vand.u32 %v2904, 4294901760
    %2906 = vmatpush.msra.mxu0 %v2905
    %v2907 = vand.u32 %v2836, 4294901760
    %v2908 = vsub.f32 %v2836, %v2907
    %v2909 = vand.u32 %v2908, 4294901760
    %v2910 = vsub.f32 %v2908, %v2909
    %v2911 = vand.u32 %v2910, 4294901760
    %2912 = vmatpush.msra.mxu0 %v2911
    %v2913 = vand.u32 %v2835, 4294901760
    %v2914 = vsub.f32 %v2835, %v2913
    %v2915 = vand.u32 %v2914, 4294901760
    %v2916 = vsub.f32 %v2914, %v2915
    %v2917 = vand.u32 %v2916, 4294901760
    %2918 = vmatpush.msra.mxu0 %v2917
    %v2919 = vand.u32 %v2841, 4294901760
    %2920 = vmatmul.f32.gmra.mxu0 %v2919
    %v2921 = vpop.f32.mrf.mxu0
    %v2922 = vadd.f32 %v2873, %v2921
    %v2923 = vand.u32 %v2844, 4294901760
    %2924 = vmatmul.f32.gmra.mxu0 %v2923
    %v2925 = vpop.f32.mrf.mxu0
    %v2926 = vadd.f32 %v2881, %v2925
    %2927 = vdwg.mxu0
    %2928 = vmatpush.msra.mxu0 0.0
    %2929 = vmatpush.msra.mxu0 0.0
    %2930 = vmatpush.msra.mxu0 0.0
    %2931 = vmatpush.msra.mxu0 0.0
    %2932 = vmatpush.msra.mxu0 0.0
    %2933 = vmatpush.msra.mxu0 0.0
    %2934 = vmatpush.msra.mxu0 0.0
    %2935 = vmatpush.msra.mxu0 0.0
    %2936 = vmatpush.msra.mxu0 0.0
    %2937 = vmatpush.msra.mxu0 0.0
    %2938 = vmatpush.msra.mxu0 0.0
    %2939 = vmatpush.msra.mxu0 0.0
    %v2940 = vand.u32 %v2838, 4294901760
    %v2941 = vsub.f32 %v2838, %v2940
    %2942 = vmatpush.msra.mxu0 %v2941
    %v2943 = vand.u32 %v2837, 4294901760
    %v2944 = vsub.f32 %v2837, %v2943
    %2945 = vmatpush.msra.mxu0 %v2944
    %v2946 = vand.u32 %v2836, 4294901760
    %v2947 = vsub.f32 %v2836, %v2946
    %2948 = vmatpush.msra.mxu0 %v2947
    %v2949 = vand.u32 %v2835, 4294901760
    %v2950 = vsub.f32 %v2835, %v2949
    %2951 = vmatpush.msra.mxu0 %v2950
    %v2952 = vand.u32 %v2841, 4294901760
    %v2953 = vsub.f32 %v2841, %v2952
    %2954 = vmatmul.f32.gmra.mxu0 %v2953
    %v2955 = vpop.f32.mrf.mxu0
    %v2956 = vadd.f32 %v2922, %v2955
    %v2957 = vand.u32 %v2844, 4294901760
    %v2958 = vsub.f32 %v2844, %v2957
    %2959 = vmatmul.f32.gmra.mxu0 %v2958
    %v2960 = vpop.f32.mrf.mxu0
    %v2961 = vadd.f32 %v2926, %v2960
    %2962 = vdwg.mxu0
    %2963 = vmatpush.msra.mxu0 0.0
    %2964 = vmatpush.msra.mxu0 0.0
    %2965 = vmatpush.msra.mxu0 0.0
    %2966 = vmatpush.msra.mxu0 0.0
    %2967 = vmatpush.msra.mxu0 0.0
    %2968 = vmatpush.msra.mxu0 0.0
    %2969 = vmatpush.msra.mxu0 0.0
    %2970 = vmatpush.msra.mxu0 0.0
    %2971 = vmatpush.msra.mxu0 0.0
    %2972 = vmatpush.msra.mxu0 0.0
    %2973 = vmatpush.msra.mxu0 0.0
    %2974 = vmatpush.msra.mxu0 0.0
    %v2975 = vand.u32 %v2838, 4294901760
    %2976 = vmatpush.msra.mxu0 %v2975
    %v2977 = vand.u32 %v2837, 4294901760
    %2978 = vmatpush.msra.mxu0 %v2977
    %v2979 = vand.u32 %v2836, 4294901760
    %2980 = vmatpush.msra.mxu0 %v2979
    %v2981 = vand.u32 %v2835, 4294901760
    %2982 = vmatpush.msra.mxu0 %v2981
    %v2983 = vand.u32 %v2841, 4294901760
    %v2984 = vsub.f32 %v2841, %v2983
    %v2985 = vand.u32 %v2984, 4294901760
    %2986 = vmatmul.f32.gmra.mxu0 %v2985
    %v2987 = vpop.f32.mrf.mxu0
    %v2988 = vadd.f32 %v2956, %v2987
    %v2989 = vand.u32 %v2844, 4294901760
    %v2990 = vsub.f32 %v2844, %v2989
    %v2991 = vand.u32 %v2990, 4294901760
    %2992 = vmatmul.f32.gmra.mxu0 %v2991
    %v2993 = vpop.f32.mrf.mxu0
    %v2994 = vadd.f32 %v2961, %v2993
    %2995 = vdwg.mxu0
    %2996 = vmatpush.msra.mxu0 0.0
    %2997 = vmatpush.msra.mxu0 0.0
    %2998 = vmatpush.msra.mxu0 0.0
    %2999 = vmatpush.msra.mxu0 0.0
    %3000 = vmatpush.msra.mxu0 0.0
    %3001 = vmatpush.msra.mxu0 0.0
    %3002 = vmatpush.msra.mxu0 0.0
    %3003 = vmatpush.msra.mxu0 0.0
    %3004 = vmatpush.msra.mxu0 0.0
    %3005 = vmatpush.msra.mxu0 0.0
    %3006 = vmatpush.msra.mxu0 0.0
    %3007 = vmatpush.msra.mxu0 0.0
    %v3008 = vand.u32 %v2838, 4294901760
    %v3009 = vsub.f32 %v2838, %v3008
    %v3010 = vand.u32 %v3009, 4294901760
    %3011 = vmatpush.msra.mxu0 %v3010
    %v3012 = vand.u32 %v2837, 4294901760
    %v3013 = vsub.f32 %v2837, %v3012
    %v3014 = vand.u32 %v3013, 4294901760
    %3015 = vmatpush.msra.mxu0 %v3014
    %v3016 = vand.u32 %v2836, 4294901760
    %v3017 = vsub.f32 %v2836, %v3016
    %v3018 = vand.u32 %v3017, 4294901760
    %3019 = vmatpush.msra.mxu0 %v3018
    %v3020 = vand.u32 %v2835, 4294901760
    %v3021 = vsub.f32 %v2835, %v3020
    %v3022 = vand.u32 %v3021, 4294901760
    %3023 = vmatpush.msra.mxu0 %v3022
    %v3024 = vand.u32 %v2841, 4294901760
    %3025 = vmatmul.f32.gmra.mxu0 %v3024
    %v3026 = vpop.f32.mrf.mxu0
    %v3027 = vadd.f32 %v2988, %v3026
    %v3028 = vand.u32 %v2844, 4294901760
    %3029 = vmatmul.f32.gmra.mxu0 %v3028
    %v3030 = vpop.f32.mrf.mxu0
    %v3031 = vadd.f32 %v2994, %v3030
    %3032 = vdwg.mxu0
    %3033 = vmatpush.msra.mxu0 0.0
    %3034 = vmatpush.msra.mxu0 0.0
    %3035 = vmatpush.msra.mxu0 0.0
    %3036 = vmatpush.msra.mxu0 0.0
    %3037 = vmatpush.msra.mxu0 0.0
    %3038 = vmatpush.msra.mxu0 0.0
    %3039 = vmatpush.msra.mxu0 0.0
    %3040 = vmatpush.msra.mxu0 0.0
    %3041 = vmatpush.msra.mxu0 0.0
    %3042 = vmatpush.msra.mxu0 0.0
    %3043 = vmatpush.msra.mxu0 0.0
    %3044 = vmatpush.msra.mxu0 0.0
    %v3045 = vand.u32 %v2838, 4294901760
    %3046 = vmatpush.msra.mxu0 %v3045
    %v3047 = vand.u32 %v2837, 4294901760
    %3048 = vmatpush.msra.mxu0 %v3047
    %v3049 = vand.u32 %v2836, 4294901760
    %3050 = vmatpush.msra.mxu0 %v3049
    %v3051 = vand.u32 %v2835, 4294901760
    %3052 = vmatpush.msra.mxu0 %v3051
    %v3053 = vand.u32 %v2841, 4294901760
    %3054 = vmatmul.f32.gmra.mxu0 %v3053
    %v3055 = vpop.f32.mrf.mxu0
    %v3056 = vadd.f32 %v3027, %v3055
    %v3057 = vand.u32 %v2844, 4294901760
    %3058 = vmatmul.f32.gmra.mxu0 %v3057
    %v3059 = vpop.f32.mrf.mxu0
    %v3060 = vadd.f32 %v3031, %v3059
    %3061 = vdwg.mxu0
    %v3062 = vstv %s2834
    %v3063 = vmul.f32 %v3062, %v3056
    %v3064 = vmul.f32 %v3062, %v3060
    %s3065 = ssub.f32 1.0, %s2834
    %v3066 = vmax.f32 %v3056, 0.0
    %v3067 = vmax.f32 %v3060, 0.0
    %v3068 = vstv %s3065
    %v3069 = vmul.f32 %v3068, %v3066
    %v3070 = vmul.f32 %v3068, %v3067
    %3073 = vrot.lane.b32.xlu0 %v3069, 96
    %v3074 = vpop.permute.xlu0 %3073
    %3075 = vrot.lane.b32.xlu0 %v3070, 96
    %v3076 = vpop.permute.xlu0 %3075
    %v3079 = vadd.f32 %v3063, %v3074
    %v3080 = vadd.f32 %v3064, %v3076
    %s3081 = sld [smem:[#allocation6 + $0x2]]
    %v3082 = vld [vmem:[#allocation2 + $0x118] sm:$0xff]
    %v3083 = vld [vmem:[#allocation2 + $0x120] sm:$0xff]
    %v3084 = vld [vmem:[#allocation2 + $0x128] sm:$0xff]
    %v3085 = vld [vmem:[#allocation2 + $0x130] sm:$0xff]
    %v3086 = vperm.slane %v2592, 2
    %v3088 = vsel %vm128, %v3079, 0
    %v3091 = vsel %vm128, %v3080, 0
    %3093 = vmatpush.msra.mxu0 0.0
    %3094 = vmatpush.msra.mxu0 0.0
    %3095 = vmatpush.msra.mxu0 0.0
    %3096 = vmatpush.msra.mxu0 0.0
    %3097 = vmatpush.msra.mxu0 0.0
    %3098 = vmatpush.msra.mxu0 0.0
    %3099 = vmatpush.msra.mxu0 0.0
    %3100 = vmatpush.msra.mxu0 0.0
    %3101 = vmatpush.msra.mxu0 0.0
    %3102 = vmatpush.msra.mxu0 0.0
    %3103 = vmatpush.msra.mxu0 0.0
    %3104 = vmatpush.msra.mxu0 0.0
    %v3105 = vand.u32 %v3085, 4294901760
    %3106 = vmatpush.msra.mxu0 %v3105
    %v3107 = vand.u32 %v3084, 4294901760
    %3108 = vmatpush.msra.mxu0 %v3107
    %v3109 = vand.u32 %v3083, 4294901760
    %3110 = vmatpush.msra.mxu0 %v3109
    %v3111 = vand.u32 %v3082, 4294901760
    %3112 = vmatpush.msra.mxu0 %v3111
    %v3113 = vand.u32 %v3088, 4294901760
    %v3114 = vsub.f32 %v3088, %v3113
    %v3115 = vand.u32 %v3114, 4294901760
    %v3116 = vsub.f32 %v3114, %v3115
    %v3117 = vand.u32 %v3116, 4294901760
    %3118 = vmatmul.f32.gmra.mxu0 %v3117
    %v3119 = vpop.f32.mrf.mxu0
    %v3120 = vadd.f32 %v3086, %v3119
    %v3121 = vand.u32 %v3091, 4294901760
    %v3122 = vsub.f32 %v3091, %v3121
    %v3123 = vand.u32 %v3122, 4294901760
    %v3124 = vsub.f32 %v3122, %v3123
    %v3125 = vand.u32 %v3124, 4294901760
    %3126 = vmatmul.f32.gmra.mxu0 %v3125
    %v3127 = vpop.f32.mrf.mxu0
    %v3128 = vadd.f32 %v3086, %v3127
    %3129 = vdwg.mxu0
    %3130 = vmatpush.msra.mxu0 0.0
    %3131 = vmatpush.msra.mxu0 0.0
    %3132 = vmatpush.msra.mxu0 0.0
    %3133 = vmatpush.msra.mxu0 0.0
    %3134 = vmatpush.msra.mxu0 0.0
    %3135 = vmatpush.msra.mxu0 0.0
    %3136 = vmatpush.msra.mxu0 0.0
    %3137 = vmatpush.msra.mxu0 0.0
    %3138 = vmatpush.msra.mxu0 0.0
    %3139 = vmatpush.msra.mxu0 0.0
    %3140 = vmatpush.msra.mxu0 0.0
    %3141 = vmatpush.msra.mxu0 0.0
    %v3142 = vand.u32 %v3085, 4294901760
    %v3143 = vsub.f32 %v3085, %v3142
    %v3144 = vand.u32 %v3143, 4294901760
    %v3145 = vsub.f32 %v3143, %v3144
    %v3146 = vand.u32 %v3145, 4294901760
    %3147 = vmatpush.msra.mxu0 %v3146
    %v3148 = vand.u32 %v3084, 4294901760
    %v3149 = vsub.f32 %v3084, %v3148
    %v3150 = vand.u32 %v3149, 4294901760
    %v3151 = vsub.f32 %v3149, %v3150
    %v3152 = vand.u32 %v3151, 4294901760
    %3153 = vmatpush.msra.mxu0 %v3152
    %v3154 = vand.u32 %v3083, 4294901760
    %v3155 = vsub.f32 %v3083, %v3154
    %v3156 = vand.u32 %v3155, 4294901760
    %v3157 = vsub.f32 %v3155, %v3156
    %v3158 = vand.u32 %v3157, 4294901760
    %3159 = vmatpush.msra.mxu0 %v3158
    %v3160 = vand.u32 %v3082, 4294901760
    %v3161 = vsub.f32 %v3082, %v3160
    %v3162 = vand.u32 %v3161, 4294901760
    %v3163 = vsub.f32 %v3161, %v3162
    %v3164 = vand.u32 %v3163, 4294901760
    %3165 = vmatpush.msra.mxu0 %v3164
    %v3166 = vand.u32 %v3088, 4294901760
    %3167 = vmatmul.f32.gmra.mxu0 %v3166
    %v3168 = vpop.f32.mrf.mxu0
    %v3169 = vadd.f32 %v3120, %v3168
    %v3170 = vand.u32 %v3091, 4294901760
    %3171 = vmatmul.f32.gmra.mxu0 %v3170
    %v3172 = vpop.f32.mrf.mxu0
    %v3173 = vadd.f32 %v3128, %v3172
    %3174 = vdwg.mxu0
    %3175 = vmatpush.msra.mxu0 0.0
    %3176 = vmatpush.msra.mxu0 0.0
    %3177 = vmatpush.msra.mxu0 0.0
    %3178 = vmatpush.msra.mxu0 0.0
    %3179 = vmatpush.msra.mxu0 0.0
    %3180 = vmatpush.msra.mxu0 0.0
    %3181 = vmatpush.msra.mxu0 0.0
    %3182 = vmatpush.msra.mxu0 0.0
    %3183 = vmatpush.msra.mxu0 0.0
    %3184 = vmatpush.msra.mxu0 0.0
    %3185 = vmatpush.msra.mxu0 0.0
    %3186 = vmatpush.msra.mxu0 0.0
    %v3187 = vand.u32 %v3085, 4294901760
    %v3188 = vsub.f32 %v3085, %v3187
    %3189 = vmatpush.msra.mxu0 %v3188
    %v3190 = vand.u32 %v3084, 4294901760
    %v3191 = vsub.f32 %v3084, %v3190
    %3192 = vmatpush.msra.mxu0 %v3191
    %v3193 = vand.u32 %v3083, 4294901760
    %v3194 = vsub.f32 %v3083, %v3193
    %3195 = vmatpush.msra.mxu0 %v3194
    %v3196 = vand.u32 %v3082, 4294901760
    %v3197 = vsub.f32 %v3082, %v3196
    %3198 = vmatpush.msra.mxu0 %v3197
    %v3199 = vand.u32 %v3088, 4294901760
    %v3200 = vsub.f32 %v3088, %v3199
    %3201 = vmatmul.f32.gmra.mxu0 %v3200
    %v3202 = vpop.f32.mrf.mxu0
    %v3203 = vadd.f32 %v3169, %v3202
    %v3204 = vand.u32 %v3091, 4294901760
    %v3205 = vsub.f32 %v3091, %v3204
    %3206 = vmatmul.f32.gmra.mxu0 %v3205
    %v3207 = vpop.f32.mrf.mxu0
    %v3208 = vadd.f32 %v3173, %v3207
    %3209 = vdwg.mxu0
    %3210 = vmatpush.msra.mxu0 0.0
    %3211 = vmatpush.msra.mxu0 0.0
    %3212 = vmatpush.msra.mxu0 0.0
    %3213 = vmatpush.msra.mxu0 0.0
    %3214 = vmatpush.msra.mxu0 0.0
    %3215 = vmatpush.msra.mxu0 0.0
    %3216 = vmatpush.msra.mxu0 0.0
    %3217 = vmatpush.msra.mxu0 0.0
    %3218 = vmatpush.msra.mxu0 0.0
    %3219 = vmatpush.msra.mxu0 0.0
    %3220 = vmatpush.msra.mxu0 0.0
    %3221 = vmatpush.msra.mxu0 0.0
    %v3222 = vand.u32 %v3085, 4294901760
    %3223 = vmatpush.msra.mxu0 %v3222
    %v3224 = vand.u32 %v3084, 4294901760
    %3225 = vmatpush.msra.mxu0 %v3224
    %v3226 = vand.u32 %v3083, 4294901760
    %3227 = vmatpush.msra.mxu0 %v3226
    %v3228 = vand.u32 %v3082, 4294901760
    %3229 = vmatpush.msra.mxu0 %v3228
    %v3230 = vand.u32 %v3088, 4294901760
    %v3231 = vsub.f32 %v3088, %v3230
    %v3232 = vand.u32 %v3231, 4294901760
    %3233 = vmatmul.f32.gmra.mxu0 %v3232
    %v3234 = vpop.f32.mrf.mxu0
    %v3235 = vadd.f32 %v3203, %v3234
    %v3236 = vand.u32 %v3091, 4294901760
    %v3237 = vsub.f32 %v3091, %v3236
    %v3238 = vand.u32 %v3237, 4294901760
    %3239 = vmatmul.f32.gmra.mxu0 %v3238
    %v3240 = vpop.f32.mrf.mxu0
    %v3241 = vadd.f32 %v3208, %v3240
    %3242 = vdwg.mxu0
    %3243 = vmatpush.msra.mxu0 0.0
    %3244 = vmatpush.msra.mxu0 0.0
    %3245 = vmatpush.msra.mxu0 0.0
    %3246 = vmatpush.msra.mxu0 0.0
    %3247 = vmatpush.msra.mxu0 0.0
    %3248 = vmatpush.msra.mxu0 0.0
    %3249 = vmatpush.msra.mxu0 0.0
    %3250 = vmatpush.msra.mxu0 0.0
    %3251 = vmatpush.msra.mxu0 0.0
    %3252 = vmatpush.msra.mxu0 0.0
    %3253 = vmatpush.msra.mxu0 0.0
    %3254 = vmatpush.msra.mxu0 0.0
    %v3255 = vand.u32 %v3085, 4294901760
    %v3256 = vsub.f32 %v3085, %v3255
    %v3257 = vand.u32 %v3256, 4294901760
    %3258 = vmatpush.msra.mxu0 %v3257
    %v3259 = vand.u32 %v3084, 4294901760
    %v3260 = vsub.f32 %v3084, %v3259
    %v3261 = vand.u32 %v3260, 4294901760
    %3262 = vmatpush.msra.mxu0 %v3261
    %v3263 = vand.u32 %v3083, 4294901760
    %v3264 = vsub.f32 %v3083, %v3263
    %v3265 = vand.u32 %v3264, 4294901760
    %3266 = vmatpush.msra.mxu0 %v3265
    %v3267 = vand.u32 %v3082, 4294901760
    %v3268 = vsub.f32 %v3082, %v3267
    %v3269 = vand.u32 %v3268, 4294901760
    %3270 = vmatpush.msra.mxu0 %v3269
    %v3271 = vand.u32 %v3088, 4294901760
    %3272 = vmatmul.f32.gmra.mxu0 %v3271
    %v3273 = vpop.f32.mrf.mxu0
    %v3274 = vadd.f32 %v3235, %v3273
    %v3275 = vand.u32 %v3091, 4294901760
    %3276 = vmatmul.f32.gmra.mxu0 %v3275
    %v3277 = vpop.f32.mrf.mxu0
    %v3278 = vadd.f32 %v3241, %v3277
    %3279 = vdwg.mxu0
    %3280 = vmatpush.msra.mxu0 0.0
    %3281 = vmatpush.msra.mxu0 0.0
    %3282 = vmatpush.msra.mxu0 0.0
    %3283 = vmatpush.msra.mxu0 0.0
    %3284 = vmatpush.msra.mxu0 0.0
    %3285 = vmatpush.msra.mxu0 0.0
    %3286 = vmatpush.msra.mxu0 0.0
    %3287 = vmatpush.msra.mxu0 0.0
    %3288 = vmatpush.msra.mxu0 0.0
    %3289 = vmatpush.msra.mxu0 0.0
    %3290 = vmatpush.msra.mxu0 0.0
    %3291 = vmatpush.msra.mxu0 0.0
    %v3292 = vand.u32 %v3085, 4294901760
    %3293 = vmatpush.msra.mxu0 %v3292
    %v3294 = vand.u32 %v3084, 4294901760
    %3295 = vmatpush.msra.mxu0 %v3294
    %v3296 = vand.u32 %v3083, 4294901760
    %3297 = vmatpush.msra.mxu0 %v3296
    %v3298 = vand.u32 %v3082, 4294901760
    %3299 = vmatpush.msra.mxu0 %v3298
    %v3300 = vand.u32 %v3088, 4294901760
    %3301 = vmatmul.f32.gmra.mxu0 %v3300
    %v3302 = vpop.f32.mrf.mxu0
    %v3303 = vadd.f32 %v3274, %v3302
    %v3304 = vand.u32 %v3091, 4294901760
    %3305 = vmatmul.f32.gmra.mxu0 %v3304
    %v3306 = vpop.f32.mrf.mxu0
    %v3307 = vadd.f32 %v3278, %v3306
    %3308 = vdwg.mxu0
    %v3309 = vstv %s3081
    %v3310 = vmul.f32 %v3309, %v3303
    %v3311 = vmul.f32 %v3309, %v3307
    %s3312 = ssub.f32 1.0, %s3081
    %v3313 = vmax.f32 %v3303, 0.0
    %v3314 = vmax.f32 %v3307, 0.0
    %v3315 = vstv %s3312
    %v3316 = vmul.f32 %v3315, %v3313
    %v3317 = vmul.f32 %v3315, %v3314
    %3320 = vrot.lane.b32.xlu0 %v3316, 96
    %v3321 = vpop.permute.xlu0 %3320
    %3322 = vrot.lane.b32.xlu0 %v3317, 96
    %v3323 = vpop.permute.xlu0 %3322
    %v3326 = vadd.f32 %v3310, %v3321
    %v3327 = vadd.f32 %v3311, %v3323
    %v3330 = vrot.slane %v2590, 7
    %v3331 = vrot.slane %v2591, 6
    %v3332 = vsel %vm630, %v3331, %v3330
    %3333 = vrot.lane.b32.xlu0 %v3332, 64
    %v3334 = vpop.permute.xlu0 %3333
    %v3338 = vrot.slane %v2578, 7
    %v3339 = vrot.slane %v2579, 6
    %v3340 = vsel %vm630, %v3339, %v3338
    %3341 = vrot.lane.b32.xlu0 %v3340, 32
    %v3342 = vpop.permute.xlu0 %3341
    %v3344 = vsel %vm128, %v104, %v3334
    %vm3345 = vcmask 523264
    %v3346 = vsel %vm3345, %v3344, %v3342
    %v3347 = vld [vmem:[#allocation2 + $0x48] sm:$0xff]
    %v3348 = vld [vmem:[#allocation2 + $0x50] sm:$0xff]
    %v3349 = vld [vmem:[#allocation2 + $0x58] sm:$0xff]
    %v3350 = vld [vmem:[#allocation2 + $0x60] sm:$0xff]
    %v3351 = vld [vmem:[#allocation2 + $0x68] sm:$0xff]
    %v3352 = vld [vmem:[#allocation2 + $0x70] sm:$0xff]
    %v3353 = vld [vmem:[#allocation2 + $0x78] sm:$0xff]
    %v3354 = vld [vmem:[#allocation2 + $0x80] sm:$0xff]
    %v3355 = vld [vmem:[#allocation2 + $0x88] sm:$0xff]
    %v3356 = vld [vmem:[#allocation2 + $0x90] sm:$0xff]
    %v3357 = vld [vmem:[#allocation2 + $0x98] sm:$0xff]
    %v3358 = vld [vmem:[#allocation2 + $0xa0] sm:$0xff]
    %v3359 = vld [vmem:[#allocation2 + $0xa8] sm:$0x1]
    %v3360 = vperm.slane %v3359, 0
    %vm3361 = vcmask 785408
    %v3363 = vsel %vm3361, %v3346, 0
    %3365 = vmatpush.msra.mxu0 0.0
    %3366 = vmatpush.msra.mxu0 0.0
    %3367 = vmatpush.msra.mxu0 0.0
    %3368 = vmatpush.msra.mxu0 0.0
    %v3369 = vand.u32 %v3358, 4294901760
    %3370 = vmatpush.msra.mxu0 %v3369
    %v3371 = vand.u32 %v3357, 4294901760
    %3372 = vmatpush.msra.mxu0 %v3371
    %v3373 = vand.u32 %v3356, 4294901760
    %3374 = vmatpush.msra.mxu0 %v3373
    %v3375 = vand.u32 %v3355, 4294901760
    %3376 = vmatpush.msra.mxu0 %v3375
    %v3377 = vand.u32 %v3354, 4294901760
    %3378 = vmatpush.msra.mxu0 %v3377
    %v3379 = vand.u32 %v3353, 4294901760
    %3380 = vmatpush.msra.mxu0 %v3379
    %v3381 = vand.u32 %v3352, 4294901760
    %3382 = vmatpush.msra.mxu0 %v3381
    %v3383 = vand.u32 %v3351, 4294901760
    %3384 = vmatpush.msra.mxu0 %v3383
    %v3385 = vand.u32 %v3350, 4294901760
    %3386 = vmatpush.msra.mxu0 %v3385
    %v3387 = vand.u32 %v3349, 4294901760
    %3388 = vmatpush.msra.mxu0 %v3387
    %v3389 = vand.u32 %v3348, 4294901760
    %3390 = vmatpush.msra.mxu0 %v3389
    %v3391 = vand.u32 %v3347, 4294901760
    %3392 = vmatpush.msra.mxu0 %v3391
    %v3393 = vand.u32 %v3363, 4294901760
    %v3394 = vsub.f32 %v3363, %v3393
    %v3395 = vand.u32 %v3394, 4294901760
    %v3396 = vsub.f32 %v3394, %v3395
    %v3397 = vand.u32 %v3396, 4294901760
    %3398 = vmatmul.f32.gmra.mxu0 %v3397
    %v3399 = vpop.f32.mrf.mxu0
    %v3400 = vadd.f32 %v3360, %v3399
    %3401 = vdwg.mxu0
    %3402 = vmatpush.msra.mxu0 0.0
    %3403 = vmatpush.msra.mxu0 0.0
    %3404 = vmatpush.msra.mxu0 0.0
    %3405 = vmatpush.msra.mxu0 0.0
    %v3406 = vand.u32 %v3358, 4294901760
    %v3407 = vsub.f32 %v3358, %v3406
    %v3408 = vand.u32 %v3407, 4294901760
    %v3409 = vsub.f32 %v3407, %v3408
    %v3410 = vand.u32 %v3409, 4294901760
    %3411 = vmatpush.msra.mxu0 %v3410
    %v3412 = vand.u32 %v3357, 4294901760
    %v3413 = vsub.f32 %v3357, %v3412
    %v3414 = vand.u32 %v3413, 4294901760
    %v3415 = vsub.f32 %v3413, %v3414
    %v3416 = vand.u32 %v3415, 4294901760
    %3417 = vmatpush.msra.mxu0 %v3416
    %v3418 = vand.u32 %v3356, 4294901760
    %v3419 = vsub.f32 %v3356, %v3418
    %v3420 = vand.u32 %v3419, 4294901760
    %v3421 = vsub.f32 %v3419, %v3420
    %v3422 = vand.u32 %v3421, 4294901760
    %3423 = vmatpush.msra.mxu0 %v3422
    %v3424 = vand.u32 %v3355, 4294901760
    %v3425 = vsub.f32 %v3355, %v3424
    %v3426 = vand.u32 %v3425, 4294901760
    %v3427 = vsub.f32 %v3425, %v3426
    %v3428 = vand.u32 %v3427, 4294901760
    %3429 = vmatpush.msra.mxu0 %v3428
    %v3430 = vand.u32 %v3354, 4294901760
    %v3431 = vsub.f32 %v3354, %v3430
    %v3432 = vand.u32 %v3431, 4294901760
    %v3433 = vsub.f32 %v3431, %v3432
    %v3434 = vand.u32 %v3433, 4294901760
    %3435 = vmatpush.msra.mxu0 %v3434
    %v3436 = vand.u32 %v3353, 4294901760
    %v3437 = vsub.f32 %v3353, %v3436
    %v3438 = vand.u32 %v3437, 4294901760
    %v3439 = vsub.f32 %v3437, %v3438
    %v3440 = vand.u32 %v3439, 4294901760
    %3441 = vmatpush.msra.mxu0 %v3440
    %v3442 = vand.u32 %v3352, 4294901760
    %v3443 = vsub.f32 %v3352, %v3442
    %v3444 = vand.u32 %v3443, 4294901760
    %v3445 = vsub.f32 %v3443, %v3444
    %v3446 = vand.u32 %v3445, 4294901760
    %3447 = vmatpush.msra.mxu0 %v3446
    %v3448 = vand.u32 %v3351, 4294901760
    %v3449 = vsub.f32 %v3351, %v3448
    %v3450 = vand.u32 %v3449, 4294901760
    %v3451 = vsub.f32 %v3449, %v3450
    %v3452 = vand.u32 %v3451, 4294901760
    %3453 = vmatpush.msra.mxu0 %v3452
    %v3454 = vand.u32 %v3350, 4294901760
    %v3455 = vsub.f32 %v3350, %v3454
    %v3456 = vand.u32 %v3455, 4294901760
    %v3457 = vsub.f32 %v3455, %v3456
    %v3458 = vand.u32 %v3457, 4294901760
    %3459 = vmatpush.msra.mxu0 %v3458
    %v3460 = vand.u32 %v3349, 4294901760
    %v3461 = vsub.f32 %v3349, %v3460
    %v3462 = vand.u32 %v3461, 4294901760
    %v3463 = vsub.f32 %v3461, %v3462
    %v3464 = vand.u32 %v3463, 4294901760
    %3465 = vmatpush.msra.mxu0 %v3464
    %v3466 = vand.u32 %v3348, 4294901760
    %v3467 = vsub.f32 %v3348, %v3466
    %v3468 = vand.u32 %v3467, 4294901760
    %v3469 = vsub.f32 %v3467, %v3468
    %v3470 = vand.u32 %v3469, 4294901760
    %3471 = vmatpush.msra.mxu0 %v3470
    %v3472 = vand.u32 %v3347, 4294901760
    %v3473 = vsub.f32 %v3347, %v3472
    %v3474 = vand.u32 %v3473, 4294901760
    %v3475 = vsub.f32 %v3473, %v3474
    %v3476 = vand.u32 %v3475, 4294901760
    %3477 = vmatpush.msra.mxu0 %v3476
    %v3478 = vand.u32 %v3363, 4294901760
    %3479 = vmatmul.f32.gmra.mxu0 %v3478
    %v3480 = vpop.f32.mrf.mxu0
    %v3481 = vadd.f32 %v3400, %v3480
    %3482 = vdwg.mxu0
    %3483 = vmatpush.msra.mxu0 0.0
    %3484 = vmatpush.msra.mxu0 0.0
    %3485 = vmatpush.msra.mxu0 0.0
    %3486 = vmatpush.msra.mxu0 0.0
    %v3487 = vand.u32 %v3358, 4294901760
    %v3488 = vsub.f32 %v3358, %v3487
    %3489 = vmatpush.msra.mxu0 %v3488
    %v3490 = vand.u32 %v3357, 4294901760
    %v3491 = vsub.f32 %v3357, %v3490
    %3492 = vmatpush.msra.mxu0 %v3491
    %v3493 = vand.u32 %v3356, 4294901760
    %v3494 = vsub.f32 %v3356, %v3493
    %3495 = vmatpush.msra.mxu0 %v3494
    %v3496 = vand.u32 %v3355, 4294901760
    %v3497 = vsub.f32 %v3355, %v3496
    %3498 = vmatpush.msra.mxu0 %v3497
    %v3499 = vand.u32 %v3354, 4294901760
    %v3500 = vsub.f32 %v3354, %v3499
    %3501 = vmatpush.msra.mxu0 %v3500
    %v3502 = vand.u32 %v3353, 4294901760
    %v3503 = vsub.f32 %v3353, %v3502
    %3504 = vmatpush.msra.mxu0 %v3503
    %v3505 = vand.u32 %v3352, 4294901760
    %v3506 = vsub.f32 %v3352, %v3505
    %3507 = vmatpush.msra.mxu0 %v3506
    %v3508 = vand.u32 %v3351, 4294901760
    %v3509 = vsub.f32 %v3351, %v3508
    %3510 = vmatpush.msra.mxu0 %v3509
    %v3511 = vand.u32 %v3350, 4294901760
    %v3512 = vsub.f32 %v3350, %v3511
    %3513 = vmatpush.msra.mxu0 %v3512
    %v3514 = vand.u32 %v3349, 4294901760
    %v3515 = vsub.f32 %v3349, %v3514
    %3516 = vmatpush.msra.mxu0 %v3515
    %v3517 = vand.u32 %v3348, 4294901760
    %v3518 = vsub.f32 %v3348, %v3517
    %3519 = vmatpush.msra.mxu0 %v3518
    %v3520 = vand.u32 %v3347, 4294901760
    %v3521 = vsub.f32 %v3347, %v3520
    %3522 = vmatpush.msra.mxu0 %v3521
    %v3523 = vand.u32 %v3363, 4294901760
    %v3524 = vsub.f32 %v3363, %v3523
    %3525 = vmatmul.f32.gmra.mxu0 %v3524
    %v3526 = vpop.f32.mrf.mxu0
    %v3527 = vadd.f32 %v3481, %v3526
    %3528 = vdwg.mxu0
    %3529 = vmatpush.msra.mxu0 0.0
    %3530 = vmatpush.msra.mxu0 0.0
    %3531 = vmatpush.msra.mxu0 0.0
    %3532 = vmatpush.msra.mxu0 0.0
    %v3533 = vand.u32 %v3358, 4294901760
    %3534 = vmatpush.msra.mxu0 %v3533
    %v3535 = vand.u32 %v3357, 4294901760
    %3536 = vmatpush.msra.mxu0 %v3535
    %v3537 = vand.u32 %v3356, 4294901760
    %3538 = vmatpush.msra.mxu0 %v3537
    %v3539 = vand.u32 %v3355, 4294901760
    %3540 = vmatpush.msra.mxu0 %v3539
    %v3541 = vand.u32 %v3354, 4294901760
    %3542 = vmatpush.msra.mxu0 %v3541
    %v3543 = vand.u32 %v3353, 4294901760
    %3544 = vmatpush.msra.mxu0 %v3543
    %v3545 = vand.u32 %v3352, 4294901760
    %3546 = vmatpush.msra.mxu0 %v3545
    %v3547 = vand.u32 %v3351, 4294901760
    %3548 = vmatpush.msra.mxu0 %v3547
    %v3549 = vand.u32 %v3350, 4294901760
    %3550 = vmatpush.msra.mxu0 %v3549
    %v3551 = vand.u32 %v3349, 4294901760
    %3552 = vmatpush.msra.mxu0 %v3551
    %v3553 = vand.u32 %v3348, 4294901760
    %3554 = vmatpush.msra.mxu0 %v3553
    %v3555 = vand.u32 %v3347, 4294901760
    %3556 = vmatpush.msra.mxu0 %v3555
    %v3557 = vand.u32 %v3363, 4294901760
    %v3558 = vsub.f32 %v3363, %v3557
    %v3559 = vand.u32 %v3558, 4294901760
    %3560 = vmatmul.f32.gmra.mxu0 %v3559
    %v3561 = vpop.f32.mrf.mxu0
    %v3562 = vadd.f32 %v3527, %v3561
    %3563 = vdwg.mxu0
    %3564 = vmatpush.msra.mxu0 0.0
    %3565 = vmatpush.msra.mxu0 0.0
    %3566 = vmatpush.msra.mxu0 0.0
    %3567 = vmatpush.msra.mxu0 0.0
    %v3568 = vand.u32 %v3358, 4294901760
    %v3569 = vsub.f32 %v3358, %v3568
    %v3570 = vand.u32 %v3569, 4294901760
    %3571 = vmatpush.msra.mxu0 %v3570
    %v3572 = vand.u32 %v3357, 4294901760
    %v3573 = vsub.f32 %v3357, %v3572
    %v3574 = vand.u32 %v3573, 4294901760
    %3575 = vmatpush.msra.mxu0 %v3574
    %v3576 = vand.u32 %v3356, 4294901760
    %v3577 = vsub.f32 %v3356, %v3576
    %v3578 = vand.u32 %v3577, 4294901760
    %3579 = vmatpush.msra.mxu0 %v3578
    %v3580 = vand.u32 %v3355, 4294901760
    %v3581 = vsub.f32 %v3355, %v3580
    %v3582 = vand.u32 %v3581, 4294901760
    %3583 = vmatpush.msra.mxu0 %v3582
    %v3584 = vand.u32 %v3354, 4294901760
    %v3585 = vsub.f32 %v3354, %v3584
    %v3586 = vand.u32 %v3585, 4294901760
    %3587 = vmatpush.msra.mxu0 %v3586
    %v3588 = vand.u32 %v3353, 4294901760
    %v3589 = vsub.f32 %v3353, %v3588
    %v3590 = vand.u32 %v3589, 4294901760
    %3591 = vmatpush.msra.mxu0 %v3590
    %v3592 = vand.u32 %v3352, 4294901760
    %v3593 = vsub.f32 %v3352, %v3592
    %v3594 = vand.u32 %v3593, 4294901760
    %3595 = vmatpush.msra.mxu0 %v3594
    %v3596 = vand.u32 %v3351, 4294901760
    %v3597 = vsub.f32 %v3351, %v3596
    %v3598 = vand.u32 %v3597, 4294901760
    %3599 = vmatpush.msra.mxu0 %v3598
    %v3600 = vand.u32 %v3350, 4294901760
    %v3601 = vsub.f32 %v3350, %v3600
    %v3602 = vand.u32 %v3601, 4294901760
    %3603 = vmatpush.msra.mxu0 %v3602
    %v3604 = vand.u32 %v3349, 4294901760
    %v3605 = vsub.f32 %v3349, %v3604
    %v3606 = vand.u32 %v3605, 4294901760
    %3607 = vmatpush.msra.mxu0 %v3606
    %v3608 = vand.u32 %v3348, 4294901760
    %v3609 = vsub.f32 %v3348, %v3608
    %v3610 = vand.u32 %v3609, 4294901760
    %3611 = vmatpush.msra.mxu0 %v3610
    %v3612 = vand.u32 %v3347, 4294901760
    %v3613 = vsub.f32 %v3347, %v3612
    %v3614 = vand.u32 %v3613, 4294901760
    %3615 = vmatpush.msra.mxu0 %v3614
    %v3616 = vand.u32 %v3363, 4294901760
    %3617 = vmatmul.f32.gmra.mxu0 %v3616
    %v3618 = vpop.f32.mrf.mxu0
    %v3619 = vadd.f32 %v3562, %v3618
    %3620 = vdwg.mxu0
    %3621 = vmatpush.msra.mxu0 0.0
    %3622 = vmatpush.msra.mxu0 0.0
    %3623 = vmatpush.msra.mxu0 0.0
    %3624 = vmatpush.msra.mxu0 0.0
    %v3625 = vand.u32 %v3358, 4294901760
    %3626 = vmatpush.msra.mxu0 %v3625
    %v3627 = vand.u32 %v3357, 4294901760
    %3628 = vmatpush.msra.mxu0 %v3627
    %v3629 = vand.u32 %v3356, 4294901760
    %3630 = vmatpush.msra.mxu0 %v3629
    %v3631 = vand.u32 %v3355, 4294901760
    %3632 = vmatpush.msra.mxu0 %v3631
    %v3633 = vand.u32 %v3354, 4294901760
    %3634 = vmatpush.msra.mxu0 %v3633
    %v3635 = vand.u32 %v3353, 4294901760
    %3636 = vmatpush.msra.mxu0 %v3635
    %v3637 = vand.u32 %v3352, 4294901760
    %3638 = vmatpush.msra.mxu0 %v3637
    %v3639 = vand.u32 %v3351, 4294901760
    %3640 = vmatpush.msra.mxu0 %v3639
    %v3641 = vand.u32 %v3350, 4294901760
    %3642 = vmatpush.msra.mxu0 %v3641
    %v3643 = vand.u32 %v3349, 4294901760
    %3644 = vmatpush.msra.mxu0 %v3643
    %v3645 = vand.u32 %v3348, 4294901760
    %3646 = vmatpush.msra.mxu0 %v3645
    %v3647 = vand.u32 %v3347, 4294901760
    %3648 = vmatpush.msra.mxu0 %v3647
    %v3649 = vand.u32 %v3363, 4294901760
    %3650 = vmatmul.f32.gmra.mxu0 %v3649
    %v3651 = vpop.f32.mrf.mxu0
    %v3652 = vadd.f32 %v3619, %v3651
    %3653 = vdwg.mxu0
    %v3654 = vxor.u32 %v3652, 2147483648
    %v3655 = vmul.f32 %v3654, 1.442695
    %v3656 = vpow.pop %v3655
    %v3657 = vadd.f32 %v3656, 1.0
    %v3658 = vrcp.pop %v3657
    %v3659 = vmul.f32 %v3657, %v3658
    %v3660 = vsub.f32 1.0, %v3659
    %v3661 = vmul.f32 %v3658, %v3660
    %v3662 = vadd.f32 %v3658, %v3661
    %vm3663 = vweird.f32 %v3657
    %vm3664 = vweird.f32 %v3658
    %vm3665 = vmor %vm3663, %vm3664
    %v3666 = vsel %vm3665, %v3658, %v3662
    %v3667 = vand.u32 2147483647, %v3657
    %vm3668 = vcmp.eq.f32.partialorder %v3667, 8.507059e+37
    %v3669 = vand.u32 %v3657, 2147483648
    %v3670 = vor.u32 1.1754944e-38, %v3669
    %v3671 = vsel %vm3668, %v3670, %v3666
    %v3672 = vmul.f32 1.0, %v3671
    %v3674 = vmul.f32 %v3672, %v3340
    %v3675 = vtanh.pop %v3652
    %3677 = vrot.lane.b32.xlu0 %v3675, 64
    %v3678 = vpop.permute.xlu0 %3677
    %v3680 = vmul.f32 %v3672, %v3678
    %3682 = vrot.lane.b32.xlu0 %v3680, 32
    %v3683 = vpop.permute.xlu0 %3682
    %v3685 = vadd.f32 %v3674, %v3683
    %v3686 = vld [vmem:[#allocation2 + $0xb0] sm:$0xff]
    %v3687 = vld [vmem:[#allocation2 + $0xb8] sm:$0xff]
    %v3688 = vld [vmem:[#allocation2 + $0xc0] sm:$0xff]
    %v3689 = vld [vmem:[#allocation2 + $0xc8] sm:$0xff]
    %3691 = vrot.lane.b32.xlu0 %v3685, 96
    %v3692 = vpop.permute.xlu0 %3691
    %v3693 = vsel %vm128, %v3692, 0
    %3695 = vmatpush.msra.mxu0 0.0
    %3696 = vmatpush.msra.mxu0 0.0
    %3697 = vmatpush.msra.mxu0 0.0
    %3698 = vmatpush.msra.mxu0 0.0
    %3699 = vmatpush.msra.mxu0 0.0
    %3700 = vmatpush.msra.mxu0 0.0
    %3701 = vmatpush.msra.mxu0 0.0
    %3702 = vmatpush.msra.mxu0 0.0
    %3703 = vmatpush.msra.mxu0 0.0
    %3704 = vmatpush.msra.mxu0 0.0
    %3705 = vmatpush.msra.mxu0 0.0
    %3706 = vmatpush.msra.mxu0 0.0
    %v3707 = vand.u32 %v3689, 4294901760
    %3708 = vmatpush.msra.mxu0 %v3707
    %v3709 = vand.u32 %v3688, 4294901760
    %3710 = vmatpush.msra.mxu0 %v3709
    %v3711 = vand.u32 %v3687, 4294901760
    %3712 = vmatpush.msra.mxu0 %v3711
    %v3713 = vand.u32 %v3686, 4294901760
    %3714 = vmatpush.msra.mxu0 %v3713
    %v3715 = vand.u32 %v3693, 4294901760
    %v3716 = vsub.f32 %v3693, %v3715
    %v3717 = vand.u32 %v3716, 4294901760
    %v3718 = vsub.f32 %v3716, %v3717
    %v3719 = vand.u32 %v3718, 4294901760
    %3720 = vmatmul.f32.gmra.mxu0 %v3719
    %v3721 = vpop.f32.mrf.mxu0
    %v3722 = vadd.f32 0.0, %v3721
    %3723 = vdwg.mxu0
    %3724 = vmatpush.msra.mxu0 0.0
    %3725 = vmatpush.msra.mxu0 0.0
    %3726 = vmatpush.msra.mxu0 0.0
    %3727 = vmatpush.msra.mxu0 0.0
    %3728 = vmatpush.msra.mxu0 0.0
    %3729 = vmatpush.msra.mxu0 0.0
    %3730 = vmatpush.msra.mxu0 0.0
    %3731 = vmatpush.msra.mxu0 0.0
    %3732 = vmatpush.msra.mxu0 0.0
    %3733 = vmatpush.msra.mxu0 0.0
    %3734 = vmatpush.msra.mxu0 0.0
    %3735 = vmatpush.msra.mxu0 0.0
    %v3736 = vand.u32 %v3689, 4294901760
    %v3737 = vsub.f32 %v3689, %v3736
    %v3738 = vand.u32 %v3737, 4294901760
    %v3739 = vsub.f32 %v3737, %v3738
    %v3740 = vand.u32 %v3739, 4294901760
    %3741 = vmatpush.msra.mxu0 %v3740
    %v3742 = vand.u32 %v3688, 4294901760
    %v3743 = vsub.f32 %v3688, %v3742
    %v3744 = vand.u32 %v3743, 4294901760
    %v3745 = vsub.f32 %v3743, %v3744
    %v3746 = vand.u32 %v3745, 4294901760
    %3747 = vmatpush.msra.mxu0 %v3746
    %v3748 = vand.u32 %v3687, 4294901760
    %v3749 = vsub.f32 %v3687, %v3748
    %v3750 = vand.u32 %v3749, 4294901760
    %v3751 = vsub.f32 %v3749, %v3750
    %v3752 = vand.u32 %v3751, 4294901760
    %3753 = vmatpush.msra.mxu0 %v3752
    %v3754 = vand.u32 %v3686, 4294901760
    %v3755 = vsub.f32 %v3686, %v3754
    %v3756 = vand.u32 %v3755, 4294901760
    %v3757 = vsub.f32 %v3755, %v3756
    %v3758 = vand.u32 %v3757, 4294901760
    %3759 = vmatpush.msra.mxu0 %v3758
    %v3760 = vand.u32 %v3693, 4294901760
    %3761 = vmatmul.f32.gmra.mxu0 %v3760
    %v3762 = vpop.f32.mrf.mxu0
    %v3763 = vadd.f32 %v3722, %v3762
    %3764 = vdwg.mxu0
    %3765 = vmatpush.msra.mxu0 0.0
    %3766 = vmatpush.msra.mxu0 0.0
    %3767 = vmatpush.msra.mxu0 0.0
    %3768 = vmatpush.msra.mxu0 0.0
    %3769 = vmatpush.msra.mxu0 0.0
    %3770 = vmatpush.msra.mxu0 0.0
    %3771 = vmatpush.msra.mxu0 0.0
    %3772 = vmatpush.msra.mxu0 0.0
    %3773 = vmatpush.msra.mxu0 0.0
    %3774 = vmatpush.msra.mxu0 0.0
    %3775 = vmatpush.msra.mxu0 0.0
    %3776 = vmatpush.msra.mxu0 0.0
    %v3777 = vand.u32 %v3689, 4294901760
    %v3778 = vsub.f32 %v3689, %v3777
    %3779 = vmatpush.msra.mxu0 %v3778
    %v3780 = vand.u32 %v3688, 4294901760
    %v3781 = vsub.f32 %v3688, %v3780
    %3782 = vmatpush.msra.mxu0 %v3781
    %v3783 = vand.u32 %v3687, 4294901760
    %v3784 = vsub.f32 %v3687, %v3783
    %3785 = vmatpush.msra.mxu0 %v3784
    %v3786 = vand.u32 %v3686, 4294901760
    %v3787 = vsub.f32 %v3686, %v3786
    %3788 = vmatpush.msra.mxu0 %v3787
    %v3789 = vand.u32 %v3693, 4294901760
    %v3790 = vsub.f32 %v3693, %v3789
    %3791 = vmatmul.f32.gmra.mxu0 %v3790
    %v3792 = vpop.f32.mrf.mxu0
    %v3793 = vadd.f32 %v3763, %v3792
    %3794 = vdwg.mxu0
    %3795 = vmatpush.msra.mxu0 0.0
    %3796 = vmatpush.msra.mxu0 0.0
    %3797 = vmatpush.msra.mxu0 0.0
    %3798 = vmatpush.msra.mxu0 0.0
    %3799 = vmatpush.msra.mxu0 0.0
    %3800 = vmatpush.msra.mxu0 0.0
    %3801 = vmatpush.msra.mxu0 0.0
    %3802 = vmatpush.msra.mxu0 0.0
    %3803 = vmatpush.msra.mxu0 0.0
    %3804 = vmatpush.msra.mxu0 0.0
    %3805 = vmatpush.msra.mxu0 0.0
    %3806 = vmatpush.msra.mxu0 0.0
    %v3807 = vand.u32 %v3689, 4294901760
    %3808 = vmatpush.msra.mxu0 %v3807
    %v3809 = vand.u32 %v3688, 4294901760
    %3810 = vmatpush.msra.mxu0 %v3809
    %v3811 = vand.u32 %v3687, 4294901760
    %3812 = vmatpush.msra.mxu0 %v3811
    %v3813 = vand.u32 %v3686, 4294901760
    %3814 = vmatpush.msra.mxu0 %v3813
    %v3815 = vand.u32 %v3693, 4294901760
    %v3816 = vsub.f32 %v3693, %v3815
    %v3817 = vand.u32 %v3816, 4294901760
    %3818 = vmatmul.f32.gmra.mxu0 %v3817
    %v3819 = vpop.f32.mrf.mxu0
    %v3820 = vadd.f32 %v3793, %v3819
    %3821 = vdwg.mxu0
    %3822 = vmatpush.msra.mxu0 0.0
    %3823 = vmatpush.msra.mxu0 0.0
    %3824 = vmatpush.msra.mxu0 0.0
    %3825 = vmatpush.msra.mxu0 0.0
    %3826 = vmatpush.msra.mxu0 0.0
    %3827 = vmatpush.msra.mxu0 0.0
    %3828 = vmatpush.msra.mxu0 0.0
    %3829 = vmatpush.msra.mxu0 0.0
    %3830 = vmatpush.msra.mxu0 0.0
    %3831 = vmatpush.msra.mxu0 0.0
    %3832 = vmatpush.msra.mxu0 0.0
    %3833 = vmatpush.msra.mxu0 0.0
    %v3834 = vand.u32 %v3689, 4294901760
    %v3835 = vsub.f32 %v3689, %v3834
    %v3836 = vand.u32 %v3835, 4294901760
    %3837 = vmatpush.msra.mxu0 %v3836
    %v3838 = vand.u32 %v3688, 4294901760
    %v3839 = vsub.f32 %v3688, %v3838
    %v3840 = vand.u32 %v3839, 4294901760
    %3841 = vmatpush.msra.mxu0 %v3840
    %v3842 = vand.u32 %v3687, 4294901760
    %v3843 = vsub.f32 %v3687, %v3842
    %v3844 = vand.u32 %v3843, 4294901760
    %3845 = vmatpush.msra.mxu0 %v3844
    %v3846 = vand.u32 %v3686, 4294901760
    %v3847 = vsub.f32 %v3686, %v3846
    %v3848 = vand.u32 %v3847, 4294901760
    %3849 = vmatpush.msra.mxu0 %v3848
    %v3850 = vand.u32 %v3693, 4294901760
    %3851 = vmatmul.f32.gmra.mxu0 %v3850
    %v3852 = vpop.f32.mrf.mxu0
    %v3853 = vadd.f32 %v3820, %v3852
    %3854 = vdwg.mxu0
    %3855 = vmatpush.msra.mxu0 0.0
    %3856 = vmatpush.msra.mxu0 0.0
    %3857 = vmatpush.msra.mxu0 0.0
    %3858 = vmatpush.msra.mxu0 0.0
    %3859 = vmatpush.msra.mxu0 0.0
    %3860 = vmatpush.msra.mxu0 0.0
    %3861 = vmatpush.msra.mxu0 0.0
    %3862 = vmatpush.msra.mxu0 0.0
    %3863 = vmatpush.msra.mxu0 0.0
    %3864 = vmatpush.msra.mxu0 0.0
    %3865 = vmatpush.msra.mxu0 0.0
    %3866 = vmatpush.msra.mxu0 0.0
    %v3867 = vand.u32 %v3689, 4294901760
    %3868 = vmatpush.msra.mxu0 %v3867
    %v3869 = vand.u32 %v3688, 4294901760
    %3870 = vmatpush.msra.mxu0 %v3869
    %v3871 = vand.u32 %v3687, 4294901760
    %3872 = vmatpush.msra.mxu0 %v3871
    %v3873 = vand.u32 %v3686, 4294901760
    %3874 = vmatpush.msra.mxu0 %v3873
    %v3875 = vand.u32 %v3693, 4294901760
    %3876 = vmatmul.f32.gmra.mxu0 %v3875
    %v3877 = vpop.f32.mrf.mxu0
    %v3878 = vadd.f32 %v3853, %v3877
    %3879 = vdwg.mxu0
    %3881 = vrot.lane.b32.xlu0 %v3878, 96
    %v3882 = vpop.permute.xlu0 %3881
    %v3884 = vadd.f32 %v3652, %v3882
    %v3885 = vld [vmem:[#allocation2 + $0xd0] sm:$0x1]
    %v3886 = vperm.slane %v3885, 0
    %3888 = vrot.lane.b32.xlu0 %v3886, 96
    %v3889 = vpop.permute.xlu0 %3888
    %v3891 = vadd.f32 %v3884, %v3889
    %v3892 = vxor.u32 %v3891, 2147483648
    %v3893 = vmul.f32 %v3892, 1.442695
    %v3894 = vpow.pop %v3893
    %v3895 = vadd.f32 %v3894, 1.0
    %v3896 = vrcp.pop %v3895
    %v3897 = vmul.f32 %v3895, %v3896
    %v3898 = vsub.f32 1.0, %v3897
    %v3899 = vmul.f32 %v3896, %v3898
    %v3900 = vadd.f32 %v3896, %v3899
    %vm3901 = vweird.f32 %v3895
    %vm3902 = vweird.f32 %v3896
    %vm3903 = vmor %vm3901, %vm3902
    %v3904 = vsel %vm3903, %v3896, %v3900
    %v3905 = vand.u32 2147483647, %v3895
    %vm3906 = vcmp.eq.f32.partialorder %v3905, 8.507059e+37
    %v3907 = vand.u32 %v3895, 2147483648
    %v3908 = vor.u32 1.1754944e-38, %v3907
    %v3909 = vsel %vm3906, %v3908, %v3904
    %v3910 = vmul.f32 1.0, %v3909
    %v3911 = vtanh.pop %v3685
    %3913 = vrot.lane.b32.xlu0 %v3911, 64
    %v3914 = vpop.permute.xlu0 %3913
    %v3916 = vmul.f32 %v3910, %v3914
    %v3917 = vld [vmem:[#allocation2 + $0x140] sm:$0xff]
    %v3918 = vld [vmem:[#allocation2 + $0x148] sm:$0xff]
    %v3919 = vld [vmem:[#allocation2 + $0x150] sm:$0xff]
    %v3920 = vld [vmem:[#allocation2 + $0x158] sm:$0xff]
    %v3921 = vld [vmem:[#allocation2 + $0x160] sm:$0x1]
    %v3922 = vperm.slane %v3921, 0
    %3924 = vrot.lane.b32.xlu0 %v3916, 32
    %v3925 = vpop.permute.xlu0 %3924
    %v3926 = vsel %vm128, %v3925, 0
    %3928 = vmatpush.msra.mxu0 0.0
    %3929 = vmatpush.msra.mxu0 0.0
    %3930 = vmatpush.msra.mxu0 0.0
    %3931 = vmatpush.msra.mxu0 0.0
    %3932 = vmatpush.msra.mxu0 0.0
    %3933 = vmatpush.msra.mxu0 0.0
    %3934 = vmatpush.msra.mxu0 0.0
    %3935 = vmatpush.msra.mxu0 0.0
    %3936 = vmatpush.msra.mxu0 0.0
    %3937 = vmatpush.msra.mxu0 0.0
    %3938 = vmatpush.msra.mxu0 0.0
    %3939 = vmatpush.msra.mxu0 0.0
    %v3940 = vand.u32 %v3920, 4294901760
    %3941 = vmatpush.msra.mxu0 %v3940
    %v3942 = vand.u32 %v3919, 4294901760
    %3943 = vmatpush.msra.mxu0 %v3942
    %v3944 = vand.u32 %v3918, 4294901760
    %3945 = vmatpush.msra.mxu0 %v3944
    %v3946 = vand.u32 %v3917, 4294901760
    %3947 = vmatpush.msra.mxu0 %v3946
    %v3948 = vand.u32 %v3926, 4294901760
    %v3949 = vsub.f32 %v3926, %v3948
    %v3950 = vand.u32 %v3949, 4294901760
    %v3951 = vsub.f32 %v3949, %v3950
    %v3952 = vand.u32 %v3951, 4294901760
    %3953 = vmatmul.f32.gmra.mxu0 %v3952
    %v3954 = vpop.f32.mrf.mxu0
    %v3955 = vadd.f32 %v3922, %v3954
    %3956 = vdwg.mxu0
    %3957 = vmatpush.msra.mxu0 0.0
    %3958 = vmatpush.msra.mxu0 0.0
    %3959 = vmatpush.msra.mxu0 0.0
    %3960 = vmatpush.msra.mxu0 0.0
    %3961 = vmatpush.msra.mxu0 0.0
    %3962 = vmatpush.msra.mxu0 0.0
    %3963 = vmatpush.msra.mxu0 0.0
    %3964 = vmatpush.msra.mxu0 0.0
    %3965 = vmatpush.msra.mxu0 0.0
    %3966 = vmatpush.msra.mxu0 0.0
    %3967 = vmatpush.msra.mxu0 0.0
    %3968 = vmatpush.msra.mxu0 0.0
    %v3969 = vand.u32 %v3920, 4294901760
    %v3970 = vsub.f32 %v3920, %v3969
    %v3971 = vand.u32 %v3970, 4294901760
    %v3972 = vsub.f32 %v3970, %v3971
    %v3973 = vand.u32 %v3972, 4294901760
    %3974 = vmatpush.msra.mxu0 %v3973
    %v3975 = vand.u32 %v3919, 4294901760
    %v3976 = vsub.f32 %v3919, %v3975
    %v3977 = vand.u32 %v3976, 4294901760
    %v3978 = vsub.f32 %v3976, %v3977
    %v3979 = vand.u32 %v3978, 4294901760
    %3980 = vmatpush.msra.mxu0 %v3979
    %v3981 = vand.u32 %v3918, 4294901760
    %v3982 = vsub.f32 %v3918, %v3981
    %v3983 = vand.u32 %v3982, 4294901760
    %v3984 = vsub.f32 %v3982, %v3983
    %v3985 = vand.u32 %v3984, 4294901760
    %3986 = vmatpush.msra.mxu0 %v3985
    %v3987 = vand.u32 %v3917, 4294901760
    %v3988 = vsub.f32 %v3917, %v3987
    %v3989 = vand.u32 %v3988, 4294901760
    %v3990 = vsub.f32 %v3988, %v3989
    %v3991 = vand.u32 %v3990, 4294901760
    %3992 = vmatpush.msra.mxu0 %v3991
    %v3993 = vand.u32 %v3926, 4294901760
    %3994 = vmatmul.f32.gmra.mxu0 %v3993
    %v3995 = vpop.f32.mrf.mxu0
    %v3996 = vadd.f32 %v3955, %v3995
    %3997 = vdwg.mxu0
    %3998 = vmatpush.msra.mxu0 0.0
    %3999 = vmatpush.msra.mxu0 0.0
    %4000 = vmatpush.msra.mxu0 0.0
    %4001 = vmatpush.msra.mxu0 0.0
    %4002 = vmatpush.msra.mxu0 0.0
    %4003 = vmatpush.msra.mxu0 0.0
    %4004 = vmatpush.msra.mxu0 0.0
    %4005 = vmatpush.msra.mxu0 0.0
    %4006 = vmatpush.msra.mxu0 0.0
    %4007 = vmatpush.msra.mxu0 0.0
    %4008 = vmatpush.msra.mxu0 0.0
    %4009 = vmatpush.msra.mxu0 0.0
    %v4010 = vand.u32 %v3920, 4294901760
    %v4011 = vsub.f32 %v3920, %v4010
    %4012 = vmatpush.msra.mxu0 %v4011
    %v4013 = vand.u32 %v3919, 4294901760
    %v4014 = vsub.f32 %v3919, %v4013
    %4015 = vmatpush.msra.mxu0 %v4014
    %v4016 = vand.u32 %v3918, 4294901760
    %v4017 = vsub.f32 %v3918, %v4016
    %4018 = vmatpush.msra.mxu0 %v4017
    %v4019 = vand.u32 %v3917, 4294901760
    %v4020 = vsub.f32 %v3917, %v4019
    %4021 = vmatpush.msra.mxu0 %v4020
    %v4022 = vand.u32 %v3926, 4294901760
    %v4023 = vsub.f32 %v3926, %v4022
    %4024 = vmatmul.f32.gmra.mxu0 %v4023
    %v4025 = vpop.f32.mrf.mxu0
    %v4026 = vadd.f32 %v3996, %v4025
    %4027 = vdwg.mxu0
    %4028 = vmatpush.msra.mxu0 0.0
    %4029 = vmatpush.msra.mxu0 0.0
    %4030 = vmatpush.msra.mxu0 0.0
    %4031 = vmatpush.msra.mxu0 0.0
    %4032 = vmatpush.msra.mxu0 0.0
    %4033 = vmatpush.msra.mxu0 0.0
    %4034 = vmatpush.msra.mxu0 0.0
    %4035 = vmatpush.msra.mxu0 0.0
    %4036 = vmatpush.msra.mxu0 0.0
    %4037 = vmatpush.msra.mxu0 0.0
    %4038 = vmatpush.msra.mxu0 0.0
    %4039 = vmatpush.msra.mxu0 0.0
    %v4040 = vand.u32 %v3920, 4294901760
    %4041 = vmatpush.msra.mxu0 %v4040
    %v4042 = vand.u32 %v3919, 4294901760
    %4043 = vmatpush.msra.mxu0 %v4042
    %v4044 = vand.u32 %v3918, 4294901760
    %4045 = vmatpush.msra.mxu0 %v4044
    %v4046 = vand.u32 %v3917, 4294901760
    %4047 = vmatpush.msra.mxu0 %v4046
    %v4048 = vand.u32 %v3926, 4294901760
    %v4049 = vsub.f32 %v3926, %v4048
    %v4050 = vand.u32 %v4049, 4294901760
    %4051 = vmatmul.f32.gmra.mxu0 %v4050
    %v4052 = vpop.f32.mrf.mxu0
    %v4053 = vadd.f32 %v4026, %v4052
    %4054 = vdwg.mxu0
    %4055 = vmatpush.msra.mxu0 0.0
    %4056 = vmatpush.msra.mxu0 0.0
    %4057 = vmatpush.msra.mxu0 0.0
    %4058 = vmatpush.msra.mxu0 0.0
    %4059 = vmatpush.msra.mxu0 0.0
    %4060 = vmatpush.msra.mxu0 0.0
    %4061 = vmatpush.msra.mxu0 0.0
    %4062 = vmatpush.msra.mxu0 0.0
    %4063 = vmatpush.msra.mxu0 0.0
    %4064 = vmatpush.msra.mxu0 0.0
    %4065 = vmatpush.msra.mxu0 0.0
    %4066 = vmatpush.msra.mxu0 0.0
    %v4067 = vand.u32 %v3920, 4294901760
    %v4068 = vsub.f32 %v3920, %v4067
    %v4069 = vand.u32 %v4068, 4294901760
    %4070 = vmatpush.msra.mxu0 %v4069
    %v4071 = vand.u32 %v3919, 4294901760
    %v4072 = vsub.f32 %v3919, %v4071
    %v4073 = vand.u32 %v4072, 4294901760
    %4074 = vmatpush.msra.mxu0 %v4073
    %v4075 = vand.u32 %v3918, 4294901760
    %v4076 = vsub.f32 %v3918, %v4075
    %v4077 = vand.u32 %v4076, 4294901760
    %4078 = vmatpush.msra.mxu0 %v4077
    %v4079 = vand.u32 %v3917, 4294901760
    %v4080 = vsub.f32 %v3917, %v4079
    %v4081 = vand.u32 %v4080, 4294901760
    %4082 = vmatpush.msra.mxu0 %v4081
    %v4083 = vand.u32 %v3926, 4294901760
    %4084 = vmatmul.f32.gmra.mxu0 %v4083
    %v4085 = vpop.f32.mrf.mxu0
    %v4086 = vadd.f32 %v4053, %v4085
    %4087 = vdwg.mxu0
    %4088 = vmatpush.msra.mxu0 0.0
    %4089 = vmatpush.msra.mxu0 0.0
    %4090 = vmatpush.msra.mxu0 0.0
    %4091 = vmatpush.msra.mxu0 0.0
    %4092 = vmatpush.msra.mxu0 0.0
    %4093 = vmatpush.msra.mxu0 0.0
    %4094 = vmatpush.msra.mxu0 0.0
    %4095 = vmatpush.msra.mxu0 0.0
    %4096 = vmatpush.msra.mxu0 0.0
    %4097 = vmatpush.msra.mxu0 0.0
    %4098 = vmatpush.msra.mxu0 0.0
    %4099 = vmatpush.msra.mxu0 0.0
    %v4100 = vand.u32 %v3920, 4294901760
    %4101 = vmatpush.msra.mxu0 %v4100
    %v4102 = vand.u32 %v3919, 4294901760
    %4103 = vmatpush.msra.mxu0 %v4102
    %v4104 = vand.u32 %v3918, 4294901760
    %4105 = vmatpush.msra.mxu0 %v4104
    %v4106 = vand.u32 %v3917, 4294901760
    %4107 = vmatpush.msra.mxu0 %v4106
    %v4108 = vand.u32 %v3926, 4294901760
    %4109 = vmatmul.f32.gmra.mxu0 %v4108
    %v4110 = vpop.f32.mrf.mxu0
    %v4111 = vadd.f32 %v4086, %v4110
    %4112 = vdwg.mxu0
    %v4113 = vld [vmem:[#allocation2 + $0x168] sm:$0xff]
    %v4114 = vld [vmem:[#allocation2 + $0x170] sm:$0xff]
    %v4115 = vld [vmem:[#allocation2 + $0x178] sm:$0xff]
    %v4116 = vld [vmem:[#allocation2 + $0x180] sm:$0xff]
    %v4117 = vld [vmem:[#allocation2 + $0x188] sm:$0x1]
    %v4118 = vperm.slane %v4117, 0
    %v4120 = vsel %vm128, %v3326, 0
    %v4123 = vsel %vm128, %v3327, 0
    %4125 = vmatpush.msra.mxu0 0.0
    %4126 = vmatpush.msra.mxu0 0.0
    %4127 = vmatpush.msra.mxu0 0.0
    %4128 = vmatpush.msra.mxu0 0.0
    %4129 = vmatpush.msra.mxu0 0.0
    %4130 = vmatpush.msra.mxu0 0.0
    %4131 = vmatpush.msra.mxu0 0.0
    %4132 = vmatpush.msra.mxu0 0.0
    %4133 = vmatpush.msra.mxu0 0.0
    %4134 = vmatpush.msra.mxu0 0.0
    %4135 = vmatpush.msra.mxu0 0.0
    %4136 = vmatpush.msra.mxu0 0.0
    %v4137 = vand.u32 %v4116, 4294901760
    %4138 = vmatpush.msra.mxu0 %v4137
    %v4139 = vand.u32 %v4115, 4294901760
    %4140 = vmatpush.msra.mxu0 %v4139
    %v4141 = vand.u32 %v4114, 4294901760
    %4142 = vmatpush.msra.mxu0 %v4141
    %v4143 = vand.u32 %v4113, 4294901760
    %4144 = vmatpush.msra.mxu0 %v4143
    %v4145 = vand.u32 %v4120, 4294901760
    %v4146 = vsub.f32 %v4120, %v4145
    %v4147 = vand.u32 %v4146, 4294901760
    %v4148 = vsub.f32 %v4146, %v4147
    %v4149 = vand.u32 %v4148, 4294901760
    %4150 = vmatmul.f32.gmra.mxu0 %v4149
    %v4151 = vpop.f32.mrf.mxu0
    %v4152 = vadd.f32 %v4118, %v4151
    %v4153 = vand.u32 %v4123, 4294901760
    %v4154 = vsub.f32 %v4123, %v4153
    %v4155 = vand.u32 %v4154, 4294901760
    %v4156 = vsub.f32 %v4154, %v4155
    %v4157 = vand.u32 %v4156, 4294901760
    %4158 = vmatmul.f32.gmra.mxu0 %v4157
    %v4159 = vpop.f32.mrf.mxu0
    %v4160 = vadd.f32 %v4118, %v4159
    %4161 = vdwg.mxu0
    %4162 = vmatpush.msra.mxu0 0.0
    %4163 = vmatpush.msra.mxu0 0.0
    %4164 = vmatpush.msra.mxu0 0.0
    %4165 = vmatpush.msra.mxu0 0.0
    %4166 = vmatpush.msra.mxu0 0.0
    %4167 = vmatpush.msra.mxu0 0.0
    %4168 = vmatpush.msra.mxu0 0.0
    %4169 = vmatpush.msra.mxu0 0.0
    %4170 = vmatpush.msra.mxu0 0.0
    %4171 = vmatpush.msra.mxu0 0.0
    %4172 = vmatpush.msra.mxu0 0.0
    %4173 = vmatpush.msra.mxu0 0.0
    %v4174 = vand.u32 %v4116, 4294901760
    %v4175 = vsub.f32 %v4116, %v4174
    %v4176 = vand.u32 %v4175, 4294901760
    %v4177 = vsub.f32 %v4175, %v4176
    %v4178 = vand.u32 %v4177, 4294901760
    %4179 = vmatpush.msra.mxu0 %v4178
    %v4180 = vand.u32 %v4115, 4294901760
    %v4181 = vsub.f32 %v4115, %v4180
    %v4182 = vand.u32 %v4181, 4294901760
    %v4183 = vsub.f32 %v4181, %v4182
    %v4184 = vand.u32 %v4183, 4294901760
    %4185 = vmatpush.msra.mxu0 %v4184
    %v4186 = vand.u32 %v4114, 4294901760
    %v4187 = vsub.f32 %v4114, %v4186
    %v4188 = vand.u32 %v4187, 4294901760
    %v4189 = vsub.f32 %v4187, %v4188
    %v4190 = vand.u32 %v4189, 4294901760
    %4191 = vmatpush.msra.mxu0 %v4190
    %v4192 = vand.u32 %v4113, 4294901760
    %v4193 = vsub.f32 %v4113, %v4192
    %v4194 = vand.u32 %v4193, 4294901760
    %v4195 = vsub.f32 %v4193, %v4194
    %v4196 = vand.u32 %v4195, 4294901760
    %4197 = vmatpush.msra.mxu0 %v4196
    %v4198 = vand.u32 %v4120, 4294901760
    %4199 = vmatmul.f32.gmra.mxu0 %v4198
    %v4200 = vpop.f32.mrf.mxu0
    %v4201 = vadd.f32 %v4152, %v4200
    %v4202 = vand.u32 %v4123, 4294901760
    %4203 = vmatmul.f32.gmra.mxu0 %v4202
    %v4204 = vpop.f32.mrf.mxu0
    %v4205 = vadd.f32 %v4160, %v4204
    %4206 = vdwg.mxu0
    %4207 = vmatpush.msra.mxu0 0.0
    %4208 = vmatpush.msra.mxu0 0.0
    %4209 = vmatpush.msra.mxu0 0.0
    %4210 = vmatpush.msra.mxu0 0.0
    %4211 = vmatpush.msra.mxu0 0.0
    %4212 = vmatpush.msra.mxu0 0.0
    %4213 = vmatpush.msra.mxu0 0.0
    %4214 = vmatpush.msra.mxu0 0.0
    %4215 = vmatpush.msra.mxu0 0.0
    %4216 = vmatpush.msra.mxu0 0.0
    %4217 = vmatpush.msra.mxu0 0.0
    %4218 = vmatpush.msra.mxu0 0.0
    %v4219 = vand.u32 %v4116, 4294901760
    %v4220 = vsub.f32 %v4116, %v4219
    %4221 = vmatpush.msra.mxu0 %v4220
    %v4222 = vand.u32 %v4115, 4294901760
    %v4223 = vsub.f32 %v4115, %v4222
    %4224 = vmatpush.msra.mxu0 %v4223
    %v4225 = vand.u32 %v4114, 4294901760
    %v4226 = vsub.f32 %v4114, %v4225
    %4227 = vmatpush.msra.mxu0 %v4226
    %v4228 = vand.u32 %v4113, 4294901760
    %v4229 = vsub.f32 %v4113, %v4228
    %4230 = vmatpush.msra.mxu0 %v4229
    %v4231 = vand.u32 %v4120, 4294901760
    %v4232 = vsub.f32 %v4120, %v4231
    %4233 = vmatmul.f32.gmra.mxu0 %v4232
    %v4234 = vpop.f32.mrf.mxu0
    %v4235 = vadd.f32 %v4201, %v4234
    %v4236 = vand.u32 %v4123, 4294901760
    %v4237 = vsub.f32 %v4123, %v4236
    %4238 = vmatmul.f32.gmra.mxu0 %v4237
    %v4239 = vpop.f32.mrf.mxu0
    %v4240 = vadd.f32 %v4205, %v4239
    %4241 = vdwg.mxu0
    %4242 = vmatpush.msra.mxu0 0.0
    %4243 = vmatpush.msra.mxu0 0.0
    %4244 = vmatpush.msra.mxu0 0.0
    %4245 = vmatpush.msra.mxu0 0.0
    %4246 = vmatpush.msra.mxu0 0.0
    %4247 = vmatpush.msra.mxu0 0.0
    %4248 = vmatpush.msra.mxu0 0.0
    %4249 = vmatpush.msra.mxu0 0.0
    %4250 = vmatpush.msra.mxu0 0.0
    %4251 = vmatpush.msra.mxu0 0.0
    %4252 = vmatpush.msra.mxu0 0.0
    %4253 = vmatpush.msra.mxu0 0.0
    %v4254 = vand.u32 %v4116, 4294901760
    %4255 = vmatpush.msra.mxu0 %v4254
    %v4256 = vand.u32 %v4115, 4294901760
    %4257 = vmatpush.msra.mxu0 %v4256
    %v4258 = vand.u32 %v4114, 4294901760
    %4259 = vmatpush.msra.mxu0 %v4258
    %v4260 = vand.u32 %v4113, 4294901760
    %4261 = vmatpush.msra.mxu0 %v4260
    %v4262 = vand.u32 %v4120, 4294901760
    %v4263 = vsub.f32 %v4120, %v4262
    %v4264 = vand.u32 %v4263, 4294901760
    %4265 = vmatmul.f32.gmra.mxu0 %v4264
    %v4266 = vpop.f32.mrf.mxu0
    %v4267 = vadd.f32 %v4235, %v4266
    %v4268 = vand.u32 %v4123, 4294901760
    %v4269 = vsub.f32 %v4123, %v4268
    %v4270 = vand.u32 %v4269, 4294901760
    %4271 = vmatmul.f32.gmra.mxu0 %v4270
    %v4272 = vpop.f32.mrf.mxu0
    %v4273 = vadd.f32 %v4240, %v4272
    %4274 = vdwg.mxu0
    %4275 = vmatpush.msra.mxu0 0.0
    %4276 = vmatpush.msra.mxu0 0.0
    %4277 = vmatpush.msra.mxu0 0.0
    %4278 = vmatpush.msra.mxu0 0.0
    %4279 = vmatpush.msra.mxu0 0.0
    %4280 = vmatpush.msra.mxu0 0.0
    %4281 = vmatpush.msra.mxu0 0.0
    %4282 = vmatpush.msra.mxu0 0.0
    %4283 = vmatpush.msra.mxu0 0.0
    %4284 = vmatpush.msra.mxu0 0.0
    %4285 = vmatpush.msra.mxu0 0.0
    %4286 = vmatpush.msra.mxu0 0.0
    %v4287 = vand.u32 %v4116, 4294901760
    %v4288 = vsub.f32 %v4116, %v4287
    %v4289 = vand.u32 %v4288, 4294901760
    %4290 = vmatpush.msra.mxu0 %v4289
    %v4291 = vand.u32 %v4115, 4294901760
    %v4292 = vsub.f32 %v4115, %v4291
    %v4293 = vand.u32 %v4292, 4294901760
    %4294 = vmatpush.msra.mxu0 %v4293
    %v4295 = vand.u32 %v4114, 4294901760
    %v4296 = vsub.f32 %v4114, %v4295
    %v4297 = vand.u32 %v4296, 4294901760
    %4298 = vmatpush.msra.mxu0 %v4297
    %v4299 = vand.u32 %v4113, 4294901760
    %v4300 = vsub.f32 %v4113, %v4299
    %v4301 = vand.u32 %v4300, 4294901760
    %4302 = vmatpush.msra.mxu0 %v4301
    %v4303 = vand.u32 %v4120, 4294901760
    %4304 = vmatmul.f32.gmra.mxu0 %v4303
    %v4305 = vpop.f32.mrf.mxu0
    %v4306 = vadd.f32 %v4267, %v4305
    %v4307 = vand.u32 %v4123, 4294901760
    %4308 = vmatmul.f32.gmra.mxu0 %v4307
    %v4309 = vpop.f32.mrf.mxu0
    %v4310 = vadd.f32 %v4273, %v4309
    %4311 = vdwg.mxu0
    %4312 = vmatpush.msra.mxu0 0.0
    %4313 = vmatpush.msra.mxu0 0.0
    %4314 = vmatpush.msra.mxu0 0.0
    %4315 = vmatpush.msra.mxu0 0.0
    %4316 = vmatpush.msra.mxu0 0.0
    %4317 = vmatpush.msra.mxu0 0.0
    %4318 = vmatpush.msra.mxu0 0.0
    %4319 = vmatpush.msra.mxu0 0.0
    %4320 = vmatpush.msra.mxu0 0.0
    %4321 = vmatpush.msra.mxu0 0.0
    %4322 = vmatpush.msra.mxu0 0.0
    %4323 = vmatpush.msra.mxu0 0.0
    %v4324 = vand.u32 %v4116, 4294901760
    %4325 = vmatpush.msra.mxu0 %v4324
    %v4326 = vand.u32 %v4115, 4294901760
    %4327 = vmatpush.msra.mxu0 %v4326
    %v4328 = vand.u32 %v4114, 4294901760
    %4329 = vmatpush.msra.mxu0 %v4328
    %v4330 = vand.u32 %v4113, 4294901760
    %4331 = vmatpush.msra.mxu0 %v4330
    %v4332 = vand.u32 %v4120, 4294901760
    %4333 = vmatmul.f32.gmra.mxu0 %v4332
    %v4334 = vpop.f32.mrf.mxu0
    %v4335 = vadd.f32 %v4306, %v4334
    %v4336 = vand.u32 %v4123, 4294901760
    %4337 = vmatmul.f32.gmra.mxu0 %v4336
    %v4338 = vpop.f32.mrf.mxu0
    %v4339 = vadd.f32 %v4310, %v4338
    %4340 = vdwg.mxu0
    %v4342 = vrot.slane %v4111, 1
    %v4343 = vperm.slane %v4111, 0
    %v4344 = vperm.slane %v4342, 0
    %v4347 = vadd.f32 %v4343, %v4335
    %v4348 = vadd.f32 %v4344, %v4339
    %v4349 = vtanh.pop %v4347
    %v4350 = vtanh.pop %v4348
    %v4351 = vld [vmem:[#allocation2 + $0x190] sm:$0x1]
    %v4352 = vperm.slane %v4351, 0
    %v4353 = vmul.f32 %v4349, %v4352
    %v4354 = vmul.f32 %v4350, %v4352
    %v4355 = vsel %vm128, %v4353, 0.0
    %4356 = vadd.xlane.f32.xlu0 %v4355
    %v4357 = vpop.xlane.xlu0 %4356
    %v4358 = vsel %vm128, %v4354, 0.0
    %4359 = vadd.xlane.f32.xlu0 %v4358
    %v4360 = vpop.xlane.xlu0 %4359
    %v4361 = vtanh.pop %v4357
    %v4362 = vtanh.pop %v4360
    %v4363 = vmul.f32 %v4361, 10.0
    %v4364 = vmul.f32 %v4362, 10.0
    %v4365 = vld [vmem:[%s2] sm:$0x3]
    %v4367 = vperm.slane %v4365, 0
    %v4368 = vlaneseq
    %v4369 = vshrl.u32 %v4368, 7
    %4371 = vset.pattern.permute.xlu0 %v4369
    %4372 = vperm.xlu0 %4371, %v4367
    %v4373 = vpop.permute.xlu0 %4372
    %v4374 = vperm.slane %v4365, 1
    %v4375 = vlaneseq
    %v4376 = vshrl.u32 %v4375, 7
    %4378 = vset.pattern.permute.xlu0 %v4376
    %4379 = vperm.xlu0 %4378, %v4374
    %v4380 = vpop.permute.xlu0 %4379
    %v4383 = vadd.f32 %v4363, %v4373
    %v4384 = vadd.f32 %v4364, %v4380
    %s4385 = sld [smem:[#allocation6 + $0x3]]
    %v4386 = vld [vmem:[%s3] sm:$0x3]
    %v4387 = vstv %s4385
    %v4388 = vmul.f32 %v4387, %v4386
    %v4390 = vperm.slane %v4388, 0
    %v4391 = vlaneseq
    %v4392 = vshrl.u32 %v4391, 7
    %4394 = vset.pattern.permute.xlu0 %v4392
    %4395 = vperm.xlu0 %4394, %v4390
    %v4396 = vpop.permute.xlu0 %4395
    %v4397 = vperm.slane %v4388, 1
    %v4398 = vlaneseq
    %v4399 = vshrl.u32 %v4398, 7
    %4401 = vset.pattern.permute.xlu0 %v4399
    %4402 = vperm.xlu0 %4401, %v4397
    %v4403 = vpop.permute.xlu0 %4402
    %v4406 = vadd.f32 %v4383, %v4396
    %v4407 = vadd.f32 %v4384, %v4403
    %4410 = vset.pattern.permute.xlu0 0
    %4411 = vperm.xlu0 %4410, %v4406
    %v4412 = vpop.permute.xlu0 %4411
    %4413 = vset.pattern.permute.xlu0 0
    %4414 = vperm.xlu0 %4413, %v4407
    %v4415 = vpop.permute.xlu0 %4414
    %v4416 = vlaneseq
    %v4417 = vand.u32 %v4416, 127
    %v4418 = vperm.slane %v4412, %v4417
    %v4419 = vperm.slane %v4415, %v4417
    %v4420 = vsel %vm630, %v4419, %v4418
    %vm4422 = vcmask 58368
    %v4423 = vsel %vm4422, %v4420, -inf
    %4424 = vmax.xlane.f32.xlu0 %v4423
    %v4425 = vpop.xlane.xlu0 %4424
    %v4427 = vperm.slane %v4425, 0
    %v4428 = vperm.slane %v4425, 1
    %v4431 = vsub.f32 %v4406, %v4427
    %v4432 = vsub.f32 %v4407, %v4428
    %v4433 = vmul.f32 %v4431, 1.442695
    %v4434 = vpow.pop %v4433
    %v4435 = vmul.f32 %v4432, 1.442695
    %v4436 = vpow.pop %v4435
    %4439 = vset.pattern.permute.xlu0 0
    %4440 = vperm.xlu0 %4439, %v4434
    %v4441 = vpop.permute.xlu0 %4440
    %4442 = vset.pattern.permute.xlu0 0
    %4443 = vperm.xlu0 %4442, %v4436
    %v4444 = vpop.permute.xlu0 %4443
    %v4445 = vperm.slane %v4441, %v4417
    %v4446 = vperm.slane %v4444, %v4417
    %v4447 = vsel %vm630, %v4446, %v4445
    %v4449 = vsel %vm4422, %v4447, 0.0
    %4450 = vadd.xlane.f32.xlu0 %v4449
    %v4451 = vpop.xlane.xlu0 %4450
    %v4452 = vrcp.pop %v4451
    %v4454 = vperm.slane %v4452, 0
    %v4455 = vperm.slane %v4452, 1
    %v4458 = vmul.f32 %v4434, %v4454
    %v4459 = vmul.f32 %v4436, %v4455
    %4462 = vset.pattern.permute.xlu0 0
    %4463 = vperm.xlu0 %4462, %v4458
    %v4464 = vpop.permute.xlu0 %4463
    %4465 = vset.pattern.permute.xlu0 0
    %4466 = vperm.xlu0 %4465, %v4459
    %v4467 = vpop.permute.xlu0 %4466
    %v4468 = vperm.slane %v4464, %v4417
    %v4469 = vperm.slane %v4467, %v4417
    %v4470 = vsel %vm630, %v4469, %v4468
    %v4474 = vadd.s32 %v4417, 4294967288
    %v4475 = vperm.slane %v4357, %v4474
    %v4476 = vperm.slane %v4360, %v4474
    %v4477 = vsel %vm630, %v4476, %v4475
    %4479 = vrot.lane.b32.xlu0 %v3916, 48
    %v4480 = vpop.permute.xlu0 %4479
    %4482 = vrot.lane.b32.xlu0 %v3685, 16
    %v4483 = vpop.permute.xlu0 %4482
    %vm4485 = vcmask 64512
    %v4486 = vsel %vm4485, %v4470, %v4477
    %vm4487 = vcmask 130048
    %v4488 = vsel %vm4487, %v4486, %v4480
    %vm4489 = vcmask 392192
    %v4490 = vsel %vm4489, %v4488, %v4483
    %vm4491 = vcmask 648192
    %4492 = vst.msk [vmem:[#allocation7] sm:$0x3] %vm4491, %v4490
    // Predicated region
    $region42: #{tpu_custom_call.1} parent=1 // pred_check
      _
    $region43: #{tpu_custom_call.1} parent=1 // pred_check_branch
      %4494 = sbr.rel (0) target = $region45
    $region44: #{tpu_custom_call.1} parent=1 // pred_region
      %4496 = vsyncadd [#allocation4], 0
      %s4498 = sshll.u32 [#allocation7], 4
      %s4499 = int_to_ptr.vmem [resolvable:$true] %s4498
      %s4500 = sshll.u32 %s8, 4
      %s4501 = int_to_ptr.hbm [resolvable:$true] %s4500
      %4503 = dma.vmem_to_hbm [thread:$0]  %s4499, 32, %s4501, [#allocation4]
    $region45: #{tpu_custom_call.1} parent=1 // pred_fallthru
      _
    // Predicated region
    $region46: #{tpu_custom_call.1} parent=1 // pred_check
      _
    $region47: #{tpu_custom_call.1} parent=1 // pred_check_branch
      %4505 = sbr.rel (0) target = $region49
    $region48: #{tpu_custom_call.1} parent=1 // pred_region
      %4507 = dma.done [#allocation4], 32
    $region49: #{tpu_custom_call.1} parent=1 // pred_fallthru
      _
    %4508 = vsyncpa [#allocation3], 1
    %4509 = vsyncpa [#allocation4], 1
    %4510 = vsyncpa [#allocation5], 1

</llo_original>
